<compile_context>
chip_gen: v5e
topology: v5e:2x2
jax: 0.10.0
libtpu: 0.0.40
codegen_flags: <defaults>
</compile_context>

<pallas_src>
import functools

import jax
import jax.numpy as jnp
from jax import lax
from jax.experimental import pallas as pl
from jax.experimental.pallas import tpu as pltpu

HIDDEN = 256
NEG_SLOPE = 0.01          # PyTorch LeakyReLU default
HEAD_PAD = 128            # lane-dense fused head: [adv(output_dim) | val(1) | zeros]


def _leaky(h):
    return jnp.where(h >= 0, h, NEG_SLOPE * h)


def _round_up(n, m):
    return ((n + m - 1) // m) * m


def dueling_dqn_kernel(x_ref, w1_ref, w2_ref, ws_ref, wh_ref, b_ref, out_ref,
                       *, output_dim):
    # Bias row is packed as [b1(256) | b2(256) | b_stream(512) | b_head(128)].
    b1 = b_ref[:, 0:HIDDEN]
    b2 = b_ref[:, HIDDEN:2 * HIDDEN]
    bs = b_ref[:, 2 * HIDDEN:4 * HIDDEN]
    bh = b_ref[:, 4 * HIDDEN:4 * HIDDEN + HEAD_PAD]

    x = x_ref[...].astype(jnp.bfloat16)

    # Feature trunk: Linear -> LeakyReLU -> Linear -> LeakyReLU  (f32 accum).
    h = _leaky(jnp.dot(x, w1_ref[...], preferred_element_type=jnp.float32) + b1)
    h = _leaky(jnp.dot(h.astype(jnp.bfloat16), w2_ref[...],
                       preferred_element_type=jnp.float32) + b2)

    # Fused value||advantage hidden layer: [v | a] = leaky(h @ [wv1 | wa1] + b).
    s = _leaky(jnp.dot(h.astype(jnp.bfloat16), ws_ref[...],
                       preferred_element_type=jnp.float32) + bs)

    # Fused block-diagonal head: cols [0, output_dim) = advantage, col
    # output_dim = value, remaining cols zero-weighted (lane padding).
    head = jnp.dot(s.astype(jnp.bfloat16), wh_ref[...],
                   preferred_element_type=jnp.float32) + bh      # (TB, HEAD_PAD)

    col = lax.broadcasted_iota(jnp.int32, head.shape, 1)
    adv_sum = jnp.sum(jnp.where(col < output_dim, head, 0.0),
                      axis=1, keepdims=True)
    val = jnp.sum(jnp.where(col == output_dim, head, 0.0),
                  axis=1, keepdims=True)

    # Q = V + A - mean_a(A); only cols [0, output_dim) are meaningful (wrapper
    # slices the lane padding off).
    out_ref[...] = head + val - adv_sum * (1.0 / output_dim)


def pack_params(params, output_dim):
    """Fuse/pack the per-layer f32 params into lane-dense bf16 weights + one f32 bias row."""
    (w1, b1, w2, b2, wv1, bv1, wv2, bv2, wa1, ba1, wa2, ba2) = params

    ws = jnp.concatenate([wv1, wa1], axis=1)                       # (256, 512)
    bs = jnp.concatenate([bv1.reshape(-1), ba1.reshape(-1)])       # (512,)

    # Block-diagonal fused head (512, 128):
    #   rows [0,256)   (value hidden)     -> column `output_dim`  gets wv2
    #   rows [256,512) (advantage hidden) -> columns [0,output_dim) get wa2
    wh = jnp.zeros((2 * HIDDEN, HEAD_PAD), jnp.float32)
    wh = wh.at[HIDDEN:, :output_dim].set(wa2)
    wh = wh.at[:HIDDEN, output_dim:output_dim + 1].set(wv2)
    bh = jnp.zeros((HEAD_PAD,), jnp.float32)
    bh = bh.at[:output_dim].set(ba2.reshape(-1))
    bh = bh.at[output_dim].set(bv2.reshape(-1)[0])

    biases = jnp.concatenate(
        [b1.reshape(-1), b2.reshape(-1), bs, bh]).reshape(1, -1)   # (1, 1152) f32

    bf = lambda w: w.astype(jnp.bfloat16)
    return bf(w1), bf(w2), bf(ws), bf(wh), biases


def dueling_dqn_forward(x, packed, output_dim, *, tb=256):
    """Run the fused DuelingDQN forward. x: (B, input_dim) f32 -> (B, output_dim) f32."""
    w1, w2, ws, wh, biases = packed
    B, input_dim = x.shape

    # Pad batch to a multiple of the batch tile so every MXU pass is row-dense
    # and the grid pipelines / megacore-shards cleanly.
    b_pad = _round_up(max(B, 8), tb)
    if b_pad != B:
        x = jnp.pad(x, ((0, b_pad - B), (0, 0)))
    grid = (b_pad // tb,)

    kernel = functools.partial(dueling_dqn_kernel, output_dim=output_dim)
    out = pl.pallas_call(
        kernel,
        out_shape=jax.ShapeDtypeStruct((b_pad, HEAD_PAD), jnp.float32),
        grid=grid,
        in_specs=[
            pl.BlockSpec((tb, input_dim), lambda i: (i, 0)),   # activations: tiled
            pl.BlockSpec(w1.shape, lambda i: (0, 0)),          # weights: resident
            pl.BlockSpec(w2.shape, lambda i: (0, 0)),
            pl.BlockSpec(ws.shape, lambda i: (0, 0)),
            pl.BlockSpec(wh.shape, lambda i: (0, 0)),
            pl.BlockSpec(biases.shape, lambda i: (0, 0)),
        ],
        out_specs=pl.BlockSpec((tb, HEAD_PAD), lambda i: (i, 0)),
        compiler_params=pltpu.CompilerParams(
            dimension_semantics=("parallel",)),
    )(x, w1, w2, ws, wh, biases)

    return out[:B, :output_dim]


def init_params(key, input_dim, output_dim):
    """Deterministic synthetic init (PyTorch-like uniform fan-in scaling), f32."""
    def linear(key, fan_in, fan_out):
        k_w, k_b = jax.random.split(key)
        bound = 1.0 / jnp.sqrt(fan_in)
        w = jax.random.uniform(k_w, (fan_in, fan_out), jnp.float32, -bound, bound)
        b = jax.random.uniform(k_b, (1, fan_out), jnp.float32, -bound, bound)
        return w, b

    keys = jax.random.split(key, 6)
    w1, b1 = linear(keys[0], input_dim, HIDDEN)
    w2, b2 = linear(keys[1], HIDDEN, HIDDEN)
    wv1, bv1 = linear(keys[2], HIDDEN, HIDDEN)
    wv2, bv2 = linear(keys[3], HIDDEN, 1)
    wa1, ba1 = linear(keys[4], HIDDEN, HIDDEN)
    wa2, ba2 = linear(keys[5], HIDDEN, output_dim)
    return (w1, b1, w2, b2, wv1, bv1, wv2, bv2, wa1, ba1, wa2, ba2)


def reference_forward(x, params):
    """Pure-JAX f32 reference matching the PyTorch module."""
    (w1, b1, w2, b2, wv1, bv1, wv2, bv2, wa1, ba1, wa2, ba2) = params
    h = _leaky(x @ w1 + b1)
    h = _leaky(h @ w2 + b2)
    val = _leaky(h @ wv1 + bv1) @ wv2 + bv2
    adv = _leaky(h @ wa1 + ba1) @ wa2 + ba2
    return val + adv - adv.mean(axis=1, keepdims=True)


if __name__ == "__main__":
    B, input_dim, output_dim = 8, 16, 8

    key = jax.random.PRNGKey(0)
    k_x, k_p = jax.random.split(key)
    x = jax.random.normal(k_x, (B, input_dim), jnp.float32)
    params = init_params(k_p, input_dim, output_dim)
    packed = pack_params(params, output_dim)

    out = dueling_dqn_forward(x, packed, output_dim)
    out = jax.block_until_ready(out)

    ref = reference_forward(x, params)
    assert out.shape == (B, output_dim)
    # bf16 matmul inputs -> relaxed tolerance vs the f32 reference.
    assert jnp.allclose(out, ref, atol=5e-2, rtol=5e-2), "mismatch vs reference"

    print("KERNEL_OK")
</pallas_src>

<mosaic_0001>
module attributes {stable_mosaic.version = 11 : i64} {
  func.func @dueling_dqn_kernel(%arg0: i32, %arg1: memref<256x16xf32, #tpu.memory_space<vmem>>, %arg2: memref<16x256xbf16, #tpu.memory_space<vmem>>, %arg3: memref<256x256xbf16, #tpu.memory_space<vmem>>, %arg4: memref<256x512xbf16, #tpu.memory_space<vmem>>, %arg5: memref<512x128xbf16, #tpu.memory_space<vmem>>, %arg6: memref<1x1152xf32, #tpu.memory_space<vmem>>, %arg7: memref<256x128xf32, #tpu.memory_space<vmem>>) attributes {dimension_semantics = [#tpu.dimension_semantics<parallel>], iteration_bounds = array<i64: 1>, scalar_prefetch = 0 : i64, scratch_operands = 0 : i64, tpu.core_type = #tpu.core_type<tc>, window_params = [{transform_indices = @transform_0, window_bounds = array<i64: 256, 16>}, {pipeline_mode = #tpu.pipeline_mode<synchronous>, transform_indices = @transform_1, window_bounds = array<i64: 16, 256>}, {pipeline_mode = #tpu.pipeline_mode<synchronous>, transform_indices = @transform_2, window_bounds = array<i64: 256, 256>}, {pipeline_mode = #tpu.pipeline_mode<synchronous>, transform_indices = @transform_3, window_bounds = array<i64: 256, 512>}, {pipeline_mode = #tpu.pipeline_mode<synchronous>, transform_indices = @transform_4, window_bounds = array<i64: 512, 128>}, {pipeline_mode = #tpu.pipeline_mode<synchronous>, transform_indices = @transform_5, window_bounds = array<i64: 1, 1152>}, {transform_indices = @transform_6, window_bounds = array<i64: 256, 128>}]} {
    %c0 = arith.constant 0 : index
    %c0_0 = arith.constant 0 : index
    %0 = vector.load %arg6[%c0, %c0_0] : memref<1x1152xf32, #tpu.memory_space<vmem>>, vector<1x256xf32>
    %c0_1 = arith.constant 0 : index
    %c256 = arith.constant 256 : index
    %1 = vector.load %arg6[%c0_1, %c256] : memref<1x1152xf32, #tpu.memory_space<vmem>>, vector<1x256xf32>
    %c0_2 = arith.constant 0 : index
    %c512 = arith.constant 512 : index
    %2 = vector.load %arg6[%c0_2, %c512] : memref<1x1152xf32, #tpu.memory_space<vmem>>, vector<1x512xf32>
    %c0_3 = arith.constant 0 : index
    %c1024 = arith.constant 1024 : index
    %3 = vector.load %arg6[%c0_3, %c1024] : memref<1x1152xf32, #tpu.memory_space<vmem>>, vector<1x128xf32>
    %c0_4 = arith.constant 0 : index
    %c0_5 = arith.constant 0 : index
    %4 = vector.load %arg1[%c0_4, %c0_5] : memref<256x16xf32, #tpu.memory_space<vmem>>, vector<256x16xf32>
    %5 = arith.truncf %4 : vector<256x16xf32> to vector<256x16xbf16>
    %c0_6 = arith.constant 0 : index
    %c0_7 = arith.constant 0 : index
    %6 = vector.load %arg2[%c0_6, %c0_7] : memref<16x256xbf16, #tpu.memory_space<vmem>>, vector<16x256xbf16>
    %cst = arith.constant dense<0.000000e+00> : vector<256x256xf32>
    %7 = tpu.matmul %5, %6, %cst {dimension_numbers = #tpu.dot_dimension_numbers<[1], [0], [0], [1], [0, 0, 1, 1], [], []>} : vector<256x16xbf16>, vector<16x256xbf16>, vector<256x256xf32> -> vector<256x256xf32>
    %8 = vector.broadcast %0 : vector<1x256xf32> to vector<256x256xf32>
    %9 = arith.addf %7, %8 : vector<256x256xf32>
    %cst_8 = arith.constant 0.000000e+00 : f32
    %10 = vector.broadcast %cst_8 : f32 to vector<256x256xf32>
    %11 = arith.cmpf oge, %9, %10 : vector<256x256xf32>
    %cst_9 = arith.constant 0.00999999977 : f32
    %12 = vector.broadcast %cst_9 : f32 to vector<256x256xf32>
    %13 = arith.mulf %12, %9 : vector<256x256xf32>
    %14 = arith.select %11, %9, %13 : vector<256x256xi1>, vector<256x256xf32>
    %15 = arith.truncf %14 : vector<256x256xf32> to vector<256x256xbf16>
    %c0_10 = arith.constant 0 : index
    %c0_11 = arith.constant 0 : index
    %16 = vector.load %arg3[%c0_10, %c0_11] : memref<256x256xbf16, #tpu.memory_space<vmem>>, vector<256x256xbf16>
    %cst_12 = arith.constant dense<0.000000e+00> : vector<256x256xf32>
    %17 = tpu.matmul %15, %16, %cst_12 {dimension_numbers = #tpu.dot_dimension_numbers<[1], [0], [0], [1], [0, 0, 1, 1], [], []>} : vector<256x256xbf16>, vector<256x256xbf16>, vector<256x256xf32> -> vector<256x256xf32>
    %18 = vector.broadcast %1 : vector<1x256xf32> to vector<256x256xf32>
    %19 = arith.addf %17, %18 : vector<256x256xf32>
    %cst_13 = arith.constant 0.000000e+00 : f32
    %20 = vector.broadcast %cst_13 : f32 to vector<256x256xf32>
    %21 = arith.cmpf oge, %19, %20 : vector<256x256xf32>
    %cst_14 = arith.constant 0.00999999977 : f32
    %22 = vector.broadcast %cst_14 : f32 to vector<256x256xf32>
    %23 = arith.mulf %22, %19 : vector<256x256xf32>
    %24 = arith.select %21, %19, %23 : vector<256x256xi1>, vector<256x256xf32>
    %25 = arith.truncf %24 : vector<256x256xf32> to vector<256x256xbf16>
    %c0_15 = arith.constant 0 : index
    %c0_16 = arith.constant 0 : index
    %26 = vector.load %arg4[%c0_15, %c0_16] : memref<256x512xbf16, #tpu.memory_space<vmem>>, vector<256x512xbf16>
    %cst_17 = arith.constant dense<0.000000e+00> : vector<256x512xf32>
    %27 = tpu.matmul %25, %26, %cst_17 {dimension_numbers = #tpu.dot_dimension_numbers<[1], [0], [0], [1], [0, 0, 1, 1], [], []>} : vector<256x256xbf16>, vector<256x512xbf16>, vector<256x512xf32> -> vector<256x512xf32>
    %28 = vector.broadcast %2 : vector<1x512xf32> to vector<256x512xf32>
    %29 = arith.addf %27, %28 : vector<256x512xf32>
    %cst_18 = arith.constant 0.000000e+00 : f32
    %30 = vector.broadcast %cst_18 : f32 to vector<256x512xf32>
    %31 = arith.cmpf oge, %29, %30 : vector<256x512xf32>
    %cst_19 = arith.constant 0.00999999977 : f32
    %32 = vector.broadcast %cst_19 : f32 to vector<256x512xf32>
    %33 = arith.mulf %32, %29 : vector<256x512xf32>
    %34 = arith.select %31, %29, %33 : vector<256x512xi1>, vector<256x512xf32>
    %35 = arith.truncf %34 : vector<256x512xf32> to vector<256x512xbf16>
    %c0_20 = arith.constant 0 : index
    %c0_21 = arith.constant 0 : index
    %36 = vector.load %arg5[%c0_20, %c0_21] : memref<512x128xbf16, #tpu.memory_space<vmem>>, vector<512x128xbf16>
    %cst_22 = arith.constant dense<0.000000e+00> : vector<256x128xf32>
    %37 = tpu.matmul %35, %36, %cst_22 {dimension_numbers = #tpu.dot_dimension_numbers<[1], [0], [0], [1], [0, 0, 1, 1], [], []>} : vector<256x512xbf16>, vector<512x128xbf16>, vector<256x128xf32> -> vector<256x128xf32>
    %38 = vector.broadcast %3 : vector<1x128xf32> to vector<256x128xf32>
    %39 = arith.addf %37, %38 : vector<256x128xf32>
    %40 = tpu.iota {dimensions = array<i32: 1>} : vector<256x128xi32>
    %c8_i32 = arith.constant 8 : i32
    %41 = vector.broadcast %c8_i32 : i32 to vector<256x128xi32>
    %42 = arith.cmpi slt, %40, %41 : vector<256x128xi32>
    %cst_23 = arith.constant 0.000000e+00 : f32
    %43 = vector.broadcast %cst_23 : f32 to vector<256x128xf32>
    %44 = arith.select %42, %39, %43 : vector<256x128xi1>, vector<256x128xf32>
    %cst_24 = arith.constant dense<0.000000e+00> : vector<256xf32>
    %45 = vector.multi_reduction <add>, %44, %cst_24 [1] : vector<256x128xf32> to vector<256xf32>
    %46 = vector.shape_cast %45 : vector<256xf32> to vector<256x1xf32>
    %c8_i32_25 = arith.constant 8 : i32
    %47 = vector.broadcast %c8_i32_25 : i32 to vector<256x128xi32>
    %48 = arith.cmpi eq, %40, %47 : vector<256x128xi32>
    %cst_26 = arith.constant 0.000000e+00 : f32
    %49 = vector.broadcast %cst_26 : f32 to vector<256x128xf32>
    %50 = arith.select %48, %39, %49 : vector<256x128xi1>, vector<256x128xf32>
    %cst_27 = arith.constant dense<0.000000e+00> : vector<256xf32>
    %51 = vector.multi_reduction <add>, %50, %cst_27 [1] : vector<256x128xf32> to vector<256xf32>
    %52 = vector.shape_cast %51 : vector<256xf32> to vector<256x1xf32>
    %53 = vector.broadcast %52 : vector<256x1xf32> to vector<256x128xf32>
    %54 = arith.addf %39, %53 : vector<256x128xf32>
    %cst_28 = arith.constant 1.250000e-01 : f32
    %55 = vector.broadcast %cst_28 : f32 to vector<256x1xf32>
    %56 = arith.mulf %46, %55 : vector<256x1xf32>
    %57 = vector.broadcast %56 : vector<256x1xf32> to vector<256x128xf32>
    %58 = arith.subf %54, %57 : vector<256x128xf32>
    %c0_29 = arith.constant 0 : index
    %c0_30 = arith.constant 0 : index
    %59 = vector.load %arg7[%c0_29, %c0_30] : memref<256x128xf32, #tpu.memory_space<vmem>>, vector<256x128xf32>
    tpu.vector_store %arg7[%c0_29, %c0_30], %58 {strides = array<i32>} : memref<256x128xf32, #tpu.memory_space<vmem>>, vector<256x128xf32>,
    return
  }
  func.func @transform_0(%arg0: i32) -> (i32, i32) {
    %c0_i32 = arith.constant 0 : i32
    %c0_i32_0 = arith.constant 0 : i32
    return %arg0, %c0_i32 : i32, i32
  }
  func.func @transform_1(%arg0: i32) -> (i32, i32) {
    %c0_i32 = arith.constant 0 : i32
    %c0_i32_0 = arith.constant 0 : i32
    %c0_i32_1 = arith.constant 0 : i32
    return %c0_i32, %c0_i32_0 : i32, i32
  }
  func.func @transform_2(%arg0: i32) -> (i32, i32) {
    %c0_i32 = arith.constant 0 : i32
    %c0_i32_0 = arith.constant 0 : i32
    %c0_i32_1 = arith.constant 0 : i32
    return %c0_i32, %c0_i32_0 : i32, i32
  }
  func.func @transform_3(%arg0: i32) -> (i32, i32) {
    %c0_i32 = arith.constant 0 : i32
    %c0_i32_0 = arith.constant 0 : i32
    %c0_i32_1 = arith.constant 0 : i32
    return %c0_i32, %c0_i32_0 : i32, i32
  }
  func.func @transform_4(%arg0: i32) -> (i32, i32) {
    %c0_i32 = arith.constant 0 : i32
    %c0_i32_0 = arith.constant 0 : i32
    %c0_i32_1 = arith.constant 0 : i32
    return %c0_i32, %c0_i32_0 : i32, i32
  }
  func.func @transform_5(%arg0: i32) -> (i32, i32) {
    %c0_i32 = arith.constant 0 : i32
    %c0_i32_0 = arith.constant 0 : i32
    %c0_i32_1 = arith.constant 0 : i32
    return %c0_i32, %c0_i32_0 : i32, i32
  }
  func.func @transform_6(%arg0: i32) -> (i32, i32) {
    %c0_i32 = arith.constant 0 : i32
    %c0_i32_0 = arith.constant 0 : i32
    return %arg0, %c0_i32 : i32, i32
  }
}

</mosaic_0001>

<llo_original>
// kernel: tpu_custom_call.1
$region0: #{tpu_custom_call.1}
  #allocation0 [shape = 'u32[]', space=smem, size = 0x4, offset = 0x4, fixed_abs, tag = 'smem constant byte address 0x4 - core index']
  #allocation1 [shape = 'u32[72,128]{1,0:T(1,128)}', space=vmem, size = 0x9000, scoped, tag = 'internal scratch']
  %s0 = inlined_call_operand.vmem [shape: f32[256,16], index: 0, kind: input, shape index: {}]
  %s1 = inlined_call_operand.vmem [shape: bf16[16,256], index: 1, kind: input, shape index: {}]
  %s2 = inlined_call_operand.vmem [shape: bf16[256,256], index: 2, kind: input, shape index: {}]
  %s3 = inlined_call_operand.hbm [shape: bf16[256,512], index: 3, kind: input, shape index: {}]
  %s4 = inlined_call_operand.hbm [shape: bf16[512,128], index: 4, kind: input, shape index: {}]
  %s5 = inlined_call_operand.vmem [shape: f32[1,1152], index: 5, kind: input, shape index: {}]
  %s6 = inlined_call_operand.hbm [shape: f32[256,128], index: 6, kind: output, shape index: {}]
  %s7 = sld [smem:[#allocation0]]
  $region42: #{tpu_custom_call.1} parent=0
    _
  %s9 = ssub.s32 1, %s7
  %s10 = scalar_select 0, %s9, %s7
  $region1: #{tpu_custom_call.1} parent=0
    #allocation2 [shape = 'u8[262144]{0}', space=vmem, size = 0x40000, scoped, tag = 'input window, operand 3, single buffered']
    #allocation3 [shape = 's32[1]{0}', space=sflag, size = 0x4, scoped, tag = 'scoped memory for tpu_custom_call.1']
    #allocation4 [shape = 's32[1]{0}', space=sflag, size = 0x4, scoped, tag = 'scoped memory for tpu_custom_call.1']
    #allocation5 [shape = 'u8[131072]{0}', space=vmem, size = 0x20000, scoped, tag = 'input window, operand 4, single buffered']
    #allocation6 [shape = 's32[1]{0}', space=sflag, size = 0x4, scoped, tag = 'scoped memory for tpu_custom_call.1']
    #allocation7 [shape = 'u8[131072]{0}', space=vmem, size = 0x20000, scoped, tag = 'output window, operand 0, single buffered']
    %11 = vsyncpa [#allocation3], 0
    %12 = vsyncpa [#allocation6], 0
    %13 = vsyncpa [#allocation4], 0
    // Predicated region
    $region2: #{tpu_custom_call.1} parent=1 // pred_check
      _
    $region3: #{tpu_custom_call.1} parent=1 // pred_check_branch
      %15 = sbr.rel (0) target = $region5
    $region4: #{tpu_custom_call.1} parent=1 // pred_region
      _
    $region5: #{tpu_custom_call.1} parent=1 // pred_fallthru
      _
    // Predicated region
    $region6: #{tpu_custom_call.1} parent=1 // pred_check
      _
    $region7: #{tpu_custom_call.1} parent=1 // pred_check_branch
      %17 = sbr.rel (0) target = $region9
    $region8: #{tpu_custom_call.1} parent=1 // pred_region
      _
    $region9: #{tpu_custom_call.1} parent=1 // pred_fallthru
      _
    // Predicated region
    $region10: #{tpu_custom_call.1} parent=1 // pred_check
      _
    $region11: #{tpu_custom_call.1} parent=1 // pred_check_branch
      %19 = sbr.rel (0) target = $region13
    $region12: #{tpu_custom_call.1} parent=1 // pred_region
      _
    $region13: #{tpu_custom_call.1} parent=1 // pred_fallthru
      _
    // Predicated region
    $region14: #{tpu_custom_call.1} parent=1 // pred_check
      _
    $region15: #{tpu_custom_call.1} parent=1 // pred_check_branch
      %21 = sbr.rel (0) target = $region17
    $region16: #{tpu_custom_call.1} parent=1 // pred_region
      %23 = vsyncadd [#allocation3], 0
      %s24 = sshll.u32 %s3, 4
      %s25 = int_to_ptr.hbm [resolvable:$true] %s24
      %s26 = sshll.u32 [#allocation2], 4
      %s27 = int_to_ptr.vmem [resolvable:$true] %s26
      %32 = dma.hbm_to_vmem [thread:$0]  %s25, 8192, %s27, [#allocation3], 256, 256, 16
    $region17: #{tpu_custom_call.1} parent=1 // pred_fallthru
      _
    // Predicated region
    $region18: #{tpu_custom_call.1} parent=1 // pred_check
      _
    $region19: #{tpu_custom_call.1} parent=1 // pred_check_branch
      %34 = sbr.rel (0) target = $region21
    $region20: #{tpu_custom_call.1} parent=1 // pred_region
      %36 = vsyncadd [#allocation6], 0
      %s37 = sshll.u32 %s4, 4
      %s38 = int_to_ptr.hbm [resolvable:$true] %s37
      %s39 = sshll.u32 [#allocation5], 4
      %s40 = int_to_ptr.vmem [resolvable:$true] %s39
      %45 = dma.hbm_to_vmem [thread:$0]  %s38, 4096, %s40, [#allocation6], 64, 64, 4
    $region21: #{tpu_custom_call.1} parent=1 // pred_fallthru
      _
    // Predicated region
    $region22: #{tpu_custom_call.1} parent=1 // pred_check
      _
    $region23: #{tpu_custom_call.1} parent=1 // pred_check_branch
      %47 = sbr.rel (0) target = $region25
    $region24: #{tpu_custom_call.1} parent=1 // pred_region
      _
    $region25: #{tpu_custom_call.1} parent=1 // pred_fallthru
      _
    // Predicated region
    $region26: #{tpu_custom_call.1} parent=1 // pred_check
      _
    $region27: #{tpu_custom_call.1} parent=1 // pred_check_branch
      %49 = sbr.rel (0) target = $region29
    $region28: #{tpu_custom_call.1} parent=1 // pred_region
      %51 = dma.done [#allocation3], 8192
    $region29: #{tpu_custom_call.1} parent=1 // pred_fallthru
      _
    // Predicated region
    $region30: #{tpu_custom_call.1} parent=1 // pred_check
      _
    $region31: #{tpu_custom_call.1} parent=1 // pred_check_branch
      %53 = sbr.rel (0) target = $region33
    $region32: #{tpu_custom_call.1} parent=1 // pred_region
      %55 = dma.done [#allocation6], 4096
    $region33: #{tpu_custom_call.1} parent=1 // pred_fallthru
      _
    %v57 = vld [vmem:[%s5] sm:$0x3]
    %v58 = vld [vmem:[%s5 + $0x2] sm:$0x3]
    %v59 = vld [vmem:[%s5 + $0x4] sm:$0xf]
    %v60 = vld [vmem:[%s5 + $0x8] sm:$0x1]
    %v61 = vld [vmem:[%s0] sm:$0xff]
    %v62 = vld [vmem:[%s0 + $0x8] sm:$0xff]
    %v63 = vld [vmem:[%s0 + $0x10] sm:$0xff]
    %v64 = vld [vmem:[%s0 + $0x18] sm:$0xff]
    %v65 = vld [vmem:[%s0 + $0x20] sm:$0xff]
    %v66 = vld [vmem:[%s0 + $0x28] sm:$0xff]
    %v67 = vld [vmem:[%s0 + $0x30] sm:$0xff]
    %v68 = vld [vmem:[%s0 + $0x38] sm:$0xff]
    %v69 = vld [vmem:[%s0 + $0x40] sm:$0xff]
    %v70 = vld [vmem:[%s0 + $0x48] sm:$0xff]
    %v71 = vld [vmem:[%s0 + $0x50] sm:$0xff]
    %v72 = vld [vmem:[%s0 + $0x58] sm:$0xff]
    %v73 = vld [vmem:[%s0 + $0x60] sm:$0xff]
    %v74 = vld [vmem:[%s0 + $0x68] sm:$0xff]
    %v75 = vld [vmem:[%s0 + $0x70] sm:$0xff]
    %v76 = vld [vmem:[%s0 + $0x78] sm:$0xff]
    %v77 = vld [vmem:[%s0 + $0x80] sm:$0xff]
    %v78 = vld [vmem:[%s0 + $0x88] sm:$0xff]
    %v79 = vld [vmem:[%s0 + $0x90] sm:$0xff]
    %v80 = vld [vmem:[%s0 + $0x98] sm:$0xff]
    %v81 = vld [vmem:[%s0 + $0xa0] sm:$0xff]
    %v82 = vld [vmem:[%s0 + $0xa8] sm:$0xff]
    %v83 = vld [vmem:[%s0 + $0xb0] sm:$0xff]
    %v84 = vld [vmem:[%s0 + $0xb8] sm:$0xff]
    %v85 = vld [vmem:[%s0 + $0xc0] sm:$0xff]
    %v86 = vld [vmem:[%s0 + $0xc8] sm:$0xff]
    %v87 = vld [vmem:[%s0 + $0xd0] sm:$0xff]
    %v88 = vld [vmem:[%s0 + $0xd8] sm:$0xff]
    %v89 = vld [vmem:[%s0 + $0xe0] sm:$0xff]
    %v90 = vld [vmem:[%s0 + $0xe8] sm:$0xff]
    %v91 = vld [vmem:[%s0 + $0xf0] sm:$0xff]
    %v92 = vld [vmem:[%s0 + $0xf8] sm:$0xff]
    %v93 = vpack.c.bf16 %v62, %v61
    %v94 = vpack.c.bf16 %v64, %v63
    %v95 = vpack.c.bf16 %v66, %v65
    %v96 = vpack.c.bf16 %v68, %v67
    %v97 = vpack.c.bf16 %v70, %v69
    %v98 = vpack.c.bf16 %v72, %v71
    %v99 = vpack.c.bf16 %v74, %v73
    %v100 = vpack.c.bf16 %v76, %v75
    %v101 = vpack.c.bf16 %v78, %v77
    %v102 = vpack.c.bf16 %v80, %v79
    %v103 = vpack.c.bf16 %v82, %v81
    %v104 = vpack.c.bf16 %v84, %v83
    %v105 = vpack.c.bf16 %v86, %v85
    %v106 = vpack.c.bf16 %v88, %v87
    %v107 = vpack.c.bf16 %v90, %v89
    %v108 = vpack.c.bf16 %v92, %v91
    %v109 = vld [vmem:[%s1] sm:$0xff]
    %v110 = vld [vmem:[%s1 + $0x8] sm:$0xff]
    %v112 = vperm.slane %v57, 0
    %v113 = vperm.slane %v57, 1
    %v118 = vunpack.c.l.b16 %v109
    %v119 = vunpack.c.h.b16 %v109
    %v120 = vunpack.c.l.b16 %v110
    %v121 = vunpack.c.h.b16 %v110
    %v122 = vpack.c.b16 %v120, %v118
    %v123 = vpack.c.b16 %v121, %v119
    %vm126 = vcmask 130048
    %v128 = vsel %vm126, %v93, 0
    %v131 = vsel %vm126, %v94, 0
    %v134 = vsel %vm126, %v95, 0
    %v137 = vsel %vm126, %v96, 0
    %v140 = vsel %vm126, %v97, 0
    %v143 = vsel %vm126, %v98, 0
    %v146 = vsel %vm126, %v99, 0
    %v149 = vsel %vm126, %v100, 0
    %v152 = vsel %vm126, %v101, 0
    %v155 = vsel %vm126, %v102, 0
    %v158 = vsel %vm126, %v103, 0
    %v161 = vsel %vm126, %v104, 0
    %v164 = vsel %vm126, %v105, 0
    %v167 = vsel %vm126, %v106, 0
    %v170 = vsel %vm126, %v107, 0
    %v173 = vsel %vm126, %v108, 0
    %175 = vmatpush.bf16.msra.mxu0 0
    %176 = vmatpush.bf16.msra.mxu0 0
    %177 = vmatpush.bf16.msra.mxu0 0
    %178 = vmatpush.bf16.msra.mxu0 0
    %179 = vmatpush.bf16.msra.mxu0 0
    %180 = vmatpush.bf16.msra.mxu0 0
    %181 = vmatpush.bf16.msra.mxu0 0
    %182 = vmatpush.bf16.msra.mxu0 %v122
    %183 = vmatmul.bf16.gmra.mxu0 %v128
    %v184 = vpop.f32.mrf.mxu0
    %v185 = vadd.f32 %v112, %v184
    %v186 = vpop.f32.mrf.mxu0
    %v187 = vadd.f32 %v112, %v186
    %188 = vmatmul.bf16.gmra.mxu0 %v131
    %v189 = vpop.f32.mrf.mxu0
    %v190 = vadd.f32 %v112, %v189
    %v191 = vpop.f32.mrf.mxu0
    %v192 = vadd.f32 %v112, %v191
    %193 = vmatmul.bf16.gmra.mxu0 %v134
    %v194 = vpop.f32.mrf.mxu0
    %v195 = vadd.f32 %v112, %v194
    %v196 = vpop.f32.mrf.mxu0
    %v197 = vadd.f32 %v112, %v196
    %198 = vmatmul.bf16.gmra.mxu0 %v137
    %v199 = vpop.f32.mrf.mxu0
    %v200 = vadd.f32 %v112, %v199
    %v201 = vpop.f32.mrf.mxu0
    %v202 = vadd.f32 %v112, %v201
    %203 = vmatmul.bf16.gmra.mxu0 %v140
    %v204 = vpop.f32.mrf.mxu0
    %v205 = vadd.f32 %v112, %v204
    %v206 = vpop.f32.mrf.mxu0
    %v207 = vadd.f32 %v112, %v206
    %208 = vmatmul.bf16.gmra.mxu0 %v143
    %v209 = vpop.f32.mrf.mxu0
    %v210 = vadd.f32 %v112, %v209
    %v211 = vpop.f32.mrf.mxu0
    %v212 = vadd.f32 %v112, %v211
    %213 = vmatmul.bf16.gmra.mxu0 %v146
    %v214 = vpop.f32.mrf.mxu0
    %v215 = vadd.f32 %v112, %v214
    %v216 = vpop.f32.mrf.mxu0
    %v217 = vadd.f32 %v112, %v216
    %218 = vmatmul.bf16.gmra.mxu0 %v149
    %v219 = vpop.f32.mrf.mxu0
    %v220 = vadd.f32 %v112, %v219
    %v221 = vpop.f32.mrf.mxu0
    %v222 = vadd.f32 %v112, %v221
    %223 = vmatmul.bf16.gmra.mxu0 %v152
    %v224 = vpop.f32.mrf.mxu0
    %v225 = vadd.f32 %v112, %v224
    %v226 = vpop.f32.mrf.mxu0
    %v227 = vadd.f32 %v112, %v226
    %228 = vmatmul.bf16.gmra.mxu0 %v155
    %v229 = vpop.f32.mrf.mxu0
    %v230 = vadd.f32 %v112, %v229
    %v231 = vpop.f32.mrf.mxu0
    %v232 = vadd.f32 %v112, %v231
    %233 = vmatmul.bf16.gmra.mxu0 %v158
    %v234 = vpop.f32.mrf.mxu0
    %v235 = vadd.f32 %v112, %v234
    %v236 = vpop.f32.mrf.mxu0
    %v237 = vadd.f32 %v112, %v236
    %238 = vmatmul.bf16.gmra.mxu0 %v161
    %v239 = vpop.f32.mrf.mxu0
    %v240 = vadd.f32 %v112, %v239
    %v241 = vpop.f32.mrf.mxu0
    %v242 = vadd.f32 %v112, %v241
    %243 = vmatmul.bf16.gmra.mxu0 %v164
    %v244 = vpop.f32.mrf.mxu0
    %v245 = vadd.f32 %v112, %v244
    %v246 = vpop.f32.mrf.mxu0
    %v247 = vadd.f32 %v112, %v246
    %248 = vmatmul.bf16.gmra.mxu0 %v167
    %v249 = vpop.f32.mrf.mxu0
    %v250 = vadd.f32 %v112, %v249
    %v251 = vpop.f32.mrf.mxu0
    %v252 = vadd.f32 %v112, %v251
    %253 = vmatmul.bf16.gmra.mxu0 %v170
    %v254 = vpop.f32.mrf.mxu0
    %v255 = vadd.f32 %v112, %v254
    %v256 = vpop.f32.mrf.mxu0
    %v257 = vadd.f32 %v112, %v256
    %258 = vmatmul.bf16.gmra.mxu0 %v173
    %v259 = vpop.f32.mrf.mxu0
    %v260 = vadd.f32 %v112, %v259
    %v261 = vpop.f32.mrf.mxu0
    %v262 = vadd.f32 %v112, %v261
    %263 = vdwg.mxu0
    %264 = vmatpush.bf16.msra.mxu0 0
    %265 = vmatpush.bf16.msra.mxu0 0
    %266 = vmatpush.bf16.msra.mxu0 0
    %267 = vmatpush.bf16.msra.mxu0 0
    %268 = vmatpush.bf16.msra.mxu0 0
    %269 = vmatpush.bf16.msra.mxu0 0
    %270 = vmatpush.bf16.msra.mxu0 0
    %271 = vmatpush.bf16.msra.mxu0 %v123
    %272 = vmatmul.bf16.gmra.mxu0 %v128
    %v273 = vpop.f32.mrf.mxu0
    %v274 = vadd.f32 %v113, %v273
    %v275 = vpop.f32.mrf.mxu0
    %v276 = vadd.f32 %v113, %v275
    %277 = vmatmul.bf16.gmra.mxu0 %v131
    %v278 = vpop.f32.mrf.mxu0
    %v279 = vadd.f32 %v113, %v278
    %v280 = vpop.f32.mrf.mxu0
    %v281 = vadd.f32 %v113, %v280
    %282 = vmatmul.bf16.gmra.mxu0 %v134
    %v283 = vpop.f32.mrf.mxu0
    %v284 = vadd.f32 %v113, %v283
    %v285 = vpop.f32.mrf.mxu0
    %v286 = vadd.f32 %v113, %v285
    %287 = vmatmul.bf16.gmra.mxu0 %v137
    %v288 = vpop.f32.mrf.mxu0
    %v289 = vadd.f32 %v113, %v288
    %v290 = vpop.f32.mrf.mxu0
    %v291 = vadd.f32 %v113, %v290
    %292 = vmatmul.bf16.gmra.mxu0 %v140
    %v293 = vpop.f32.mrf.mxu0
    %v294 = vadd.f32 %v113, %v293
    %v295 = vpop.f32.mrf.mxu0
    %v296 = vadd.f32 %v113, %v295
    %297 = vmatmul.bf16.gmra.mxu0 %v143
    %v298 = vpop.f32.mrf.mxu0
    %v299 = vadd.f32 %v113, %v298
    %v300 = vpop.f32.mrf.mxu0
    %v301 = vadd.f32 %v113, %v300
    %302 = vmatmul.bf16.gmra.mxu0 %v146
    %v303 = vpop.f32.mrf.mxu0
    %v304 = vadd.f32 %v113, %v303
    %v305 = vpop.f32.mrf.mxu0
    %v306 = vadd.f32 %v113, %v305
    %307 = vmatmul.bf16.gmra.mxu0 %v149
    %v308 = vpop.f32.mrf.mxu0
    %v309 = vadd.f32 %v113, %v308
    %v310 = vpop.f32.mrf.mxu0
    %v311 = vadd.f32 %v113, %v310
    %312 = vmatmul.bf16.gmra.mxu0 %v152
    %v313 = vpop.f32.mrf.mxu0
    %v314 = vadd.f32 %v113, %v313
    %v315 = vpop.f32.mrf.mxu0
    %v316 = vadd.f32 %v113, %v315
    %317 = vmatmul.bf16.gmra.mxu0 %v155
    %v318 = vpop.f32.mrf.mxu0
    %v319 = vadd.f32 %v113, %v318
    %v320 = vpop.f32.mrf.mxu0
    %v321 = vadd.f32 %v113, %v320
    %322 = vmatmul.bf16.gmra.mxu0 %v158
    %v323 = vpop.f32.mrf.mxu0
    %v324 = vadd.f32 %v113, %v323
    %v325 = vpop.f32.mrf.mxu0
    %v326 = vadd.f32 %v113, %v325
    %327 = vmatmul.bf16.gmra.mxu0 %v161
    %v328 = vpop.f32.mrf.mxu0
    %v329 = vadd.f32 %v113, %v328
    %v330 = vpop.f32.mrf.mxu0
    %v331 = vadd.f32 %v113, %v330
    %332 = vmatmul.bf16.gmra.mxu0 %v164
    %v333 = vpop.f32.mrf.mxu0
    %v334 = vadd.f32 %v113, %v333
    %v335 = vpop.f32.mrf.mxu0
    %v336 = vadd.f32 %v113, %v335
    %337 = vmatmul.bf16.gmra.mxu0 %v167
    %v338 = vpop.f32.mrf.mxu0
    %v339 = vadd.f32 %v113, %v338
    %v340 = vpop.f32.mrf.mxu0
    %v341 = vadd.f32 %v113, %v340
    %342 = vmatmul.bf16.gmra.mxu0 %v170
    %v343 = vpop.f32.mrf.mxu0
    %v344 = vadd.f32 %v113, %v343
    %v345 = vpop.f32.mrf.mxu0
    %v346 = vadd.f32 %v113, %v345
    %347 = vmatmul.bf16.gmra.mxu0 %v173
    %v348 = vpop.f32.mrf.mxu0
    %v349 = vadd.f32 %v113, %v348
    %v350 = vpop.f32.mrf.mxu0
    %v351 = vadd.f32 %v113, %v350
    %352 = vdwg.mxu0
    %vm353 = vcmp.ge.f32.partialorder %v185, 0.0
    %vm354 = vcmp.ge.f32.partialorder %v274, 0.0
    %vm355 = vcmp.ge.f32.partialorder %v187, 0.0
    %vm356 = vcmp.ge.f32.partialorder %v276, 0.0
    %vm357 = vcmp.ge.f32.partialorder %v190, 0.0
    %vm358 = vcmp.ge.f32.partialorder %v279, 0.0
    %vm359 = vcmp.ge.f32.partialorder %v192, 0.0
    %vm360 = vcmp.ge.f32.partialorder %v281, 0.0
    %vm361 = vcmp.ge.f32.partialorder %v195, 0.0
    %vm362 = vcmp.ge.f32.partialorder %v284, 0.0
    %vm363 = vcmp.ge.f32.partialorder %v197, 0.0
    %vm364 = vcmp.ge.f32.partialorder %v286, 0.0
    %vm365 = vcmp.ge.f32.partialorder %v200, 0.0
    %vm366 = vcmp.ge.f32.partialorder %v289, 0.0
    %vm367 = vcmp.ge.f32.partialorder %v202, 0.0
    %vm368 = vcmp.ge.f32.partialorder %v291, 0.0
    %vm369 = vcmp.ge.f32.partialorder %v205, 0.0
    %vm370 = vcmp.ge.f32.partialorder %v294, 0.0
    %vm371 = vcmp.ge.f32.partialorder %v207, 0.0
    %vm372 = vcmp.ge.f32.partialorder %v296, 0.0
    %vm373 = vcmp.ge.f32.partialorder %v210, 0.0
    %vm374 = vcmp.ge.f32.partialorder %v299, 0.0
    %vm375 = vcmp.ge.f32.partialorder %v212, 0.0
    %vm376 = vcmp.ge.f32.partialorder %v301, 0.0
    %vm377 = vcmp.ge.f32.partialorder %v215, 0.0
    %vm378 = vcmp.ge.f32.partialorder %v304, 0.0
    %vm379 = vcmp.ge.f32.partialorder %v217, 0.0
    %vm380 = vcmp.ge.f32.partialorder %v306, 0.0
    %vm381 = vcmp.ge.f32.partialorder %v220, 0.0
    %vm382 = vcmp.ge.f32.partialorder %v309, 0.0
    %vm383 = vcmp.ge.f32.partialorder %v222, 0.0
    %vm384 = vcmp.ge.f32.partialorder %v311, 0.0
    %vm385 = vcmp.ge.f32.partialorder %v225, 0.0
    %vm386 = vcmp.ge.f32.partialorder %v314, 0.0
    %vm387 = vcmp.ge.f32.partialorder %v227, 0.0
    %vm388 = vcmp.ge.f32.partialorder %v316, 0.0
    %vm389 = vcmp.ge.f32.partialorder %v230, 0.0
    %vm390 = vcmp.ge.f32.partialorder %v319, 0.0
    %vm391 = vcmp.ge.f32.partialorder %v232, 0.0
    %vm392 = vcmp.ge.f32.partialorder %v321, 0.0
    %vm393 = vcmp.ge.f32.partialorder %v235, 0.0
    %vm394 = vcmp.ge.f32.partialorder %v324, 0.0
    %vm395 = vcmp.ge.f32.partialorder %v237, 0.0
    %vm396 = vcmp.ge.f32.partialorder %v326, 0.0
    %vm397 = vcmp.ge.f32.partialorder %v240, 0.0
    %vm398 = vcmp.ge.f32.partialorder %v329, 0.0
    %vm399 = vcmp.ge.f32.partialorder %v242, 0.0
    %vm400 = vcmp.ge.f32.partialorder %v331, 0.0
    %vm401 = vcmp.ge.f32.partialorder %v245, 0.0
    %vm402 = vcmp.ge.f32.partialorder %v334, 0.0
    %vm403 = vcmp.ge.f32.partialorder %v247, 0.0
    %vm404 = vcmp.ge.f32.partialorder %v336, 0.0
    %vm405 = vcmp.ge.f32.partialorder %v250, 0.0
    %vm406 = vcmp.ge.f32.partialorder %v339, 0.0
    %vm407 = vcmp.ge.f32.partialorder %v252, 0.0
    %vm408 = vcmp.ge.f32.partialorder %v341, 0.0
    %vm409 = vcmp.ge.f32.partialorder %v255, 0.0
    %vm410 = vcmp.ge.f32.partialorder %v344, 0.0
    %vm411 = vcmp.ge.f32.partialorder %v257, 0.0
    %vm412 = vcmp.ge.f32.partialorder %v346, 0.0
    %vm413 = vcmp.ge.f32.partialorder %v260, 0.0
    %vm414 = vcmp.ge.f32.partialorder %v349, 0.0
    %vm415 = vcmp.ge.f32.partialorder %v262, 0.0
    %vm416 = vcmp.ge.f32.partialorder %v351, 0.0
    %v417 = vmul.f32 %v185, 0.01
    %v418 = vmul.f32 %v274, 0.01
    %v419 = vmul.f32 %v187, 0.01
    %v420 = vmul.f32 %v276, 0.01
    %v421 = vmul.f32 %v190, 0.01
    %v422 = vmul.f32 %v279, 0.01
    %v423 = vmul.f32 %v192, 0.01
    %v424 = vmul.f32 %v281, 0.01
    %v425 = vmul.f32 %v195, 0.01
    %v426 = vmul.f32 %v284, 0.01
    %v427 = vmul.f32 %v197, 0.01
    %v428 = vmul.f32 %v286, 0.01
    %v429 = vmul.f32 %v200, 0.01
    %v430 = vmul.f32 %v289, 0.01
    %v431 = vmul.f32 %v202, 0.01
    %v432 = vmul.f32 %v291, 0.01
    %v433 = vmul.f32 %v205, 0.01
    %v434 = vmul.f32 %v294, 0.01
    %v435 = vmul.f32 %v207, 0.01
    %v436 = vmul.f32 %v296, 0.01
    %v437 = vmul.f32 %v210, 0.01
    %v438 = vmul.f32 %v299, 0.01
    %v439 = vmul.f32 %v212, 0.01
    %v440 = vmul.f32 %v301, 0.01
    %v441 = vmul.f32 %v215, 0.01
    %v442 = vmul.f32 %v304, 0.01
    %v443 = vmul.f32 %v217, 0.01
    %v444 = vmul.f32 %v306, 0.01
    %v445 = vmul.f32 %v220, 0.01
    %v446 = vmul.f32 %v309, 0.01
    %v447 = vmul.f32 %v222, 0.01
    %v448 = vmul.f32 %v311, 0.01
    %v449 = vmul.f32 %v225, 0.01
    %v450 = vmul.f32 %v314, 0.01
    %v451 = vmul.f32 %v227, 0.01
    %v452 = vmul.f32 %v316, 0.01
    %v453 = vmul.f32 %v230, 0.01
    %v454 = vmul.f32 %v319, 0.01
    %v455 = vmul.f32 %v232, 0.01
    %v456 = vmul.f32 %v321, 0.01
    %v457 = vmul.f32 %v235, 0.01
    %v458 = vmul.f32 %v324, 0.01
    %v459 = vmul.f32 %v237, 0.01
    %v460 = vmul.f32 %v326, 0.01
    %v461 = vmul.f32 %v240, 0.01
    %v462 = vmul.f32 %v329, 0.01
    %v463 = vmul.f32 %v242, 0.01
    %v464 = vmul.f32 %v331, 0.01
    %v465 = vmul.f32 %v245, 0.01
    %v466 = vmul.f32 %v334, 0.01
    %v467 = vmul.f32 %v247, 0.01
    %v468 = vmul.f32 %v336, 0.01
    %v469 = vmul.f32 %v250, 0.01
    %v470 = vmul.f32 %v339, 0.01
    %v471 = vmul.f32 %v252, 0.01
    %v472 = vmul.f32 %v341, 0.01
    %v473 = vmul.f32 %v255, 0.01
    %v474 = vmul.f32 %v344, 0.01
    %v475 = vmul.f32 %v257, 0.01
    %v476 = vmul.f32 %v346, 0.01
    %v477 = vmul.f32 %v260, 0.01
    %v478 = vmul.f32 %v349, 0.01
    %v479 = vmul.f32 %v262, 0.01
    %v480 = vmul.f32 %v351, 0.01
    %v481 = vsel %vm353, %v185, %v417
    %v482 = vsel %vm354, %v274, %v418
    %v483 = vsel %vm355, %v187, %v419
    %v484 = vsel %vm356, %v276, %v420
    %v485 = vsel %vm357, %v190, %v421
    %v486 = vsel %vm358, %v279, %v422
    %v487 = vsel %vm359, %v192, %v423
    %v488 = vsel %vm360, %v281, %v424
    %v489 = vsel %vm361, %v195, %v425
    %v490 = vsel %vm362, %v284, %v426
    %v491 = vsel %vm363, %v197, %v427
    %v492 = vsel %vm364, %v286, %v428
    %v493 = vsel %vm365, %v200, %v429
    %v494 = vsel %vm366, %v289, %v430
    %v495 = vsel %vm367, %v202, %v431
    %v496 = vsel %vm368, %v291, %v432
    %v497 = vsel %vm369, %v205, %v433
    %v498 = vsel %vm370, %v294, %v434
    %v499 = vsel %vm371, %v207, %v435
    %v500 = vsel %vm372, %v296, %v436
    %v501 = vsel %vm373, %v210, %v437
    %v502 = vsel %vm374, %v299, %v438
    %v503 = vsel %vm375, %v212, %v439
    %v504 = vsel %vm376, %v301, %v440
    %v505 = vsel %vm377, %v215, %v441
    %v506 = vsel %vm378, %v304, %v442
    %v507 = vsel %vm379, %v217, %v443
    %v508 = vsel %vm380, %v306, %v444
    %v509 = vsel %vm381, %v220, %v445
    %v510 = vsel %vm382, %v309, %v446
    %v511 = vsel %vm383, %v222, %v447
    %v512 = vsel %vm384, %v311, %v448
    %v513 = vsel %vm385, %v225, %v449
    %v514 = vsel %vm386, %v314, %v450
    %v515 = vsel %vm387, %v227, %v451
    %v516 = vsel %vm388, %v316, %v452
    %v517 = vsel %vm389, %v230, %v453
    %v518 = vsel %vm390, %v319, %v454
    %v519 = vsel %vm391, %v232, %v455
    %v520 = vsel %vm392, %v321, %v456
    %v521 = vsel %vm393, %v235, %v457
    %v522 = vsel %vm394, %v324, %v458
    %v523 = vsel %vm395, %v237, %v459
    %v524 = vsel %vm396, %v326, %v460
    %v525 = vsel %vm397, %v240, %v461
    %v526 = vsel %vm398, %v329, %v462
    %v527 = vsel %vm399, %v242, %v463
    %v528 = vsel %vm400, %v331, %v464
    %v529 = vsel %vm401, %v245, %v465
    %v530 = vsel %vm402, %v334, %v466
    %v531 = vsel %vm403, %v247, %v467
    %v532 = vsel %vm404, %v336, %v468
    %v533 = vsel %vm405, %v250, %v469
    %v534 = vsel %vm406, %v339, %v470
    %v535 = vsel %vm407, %v252, %v471
    %v536 = vsel %vm408, %v341, %v472
    %v537 = vsel %vm409, %v255, %v473
    %v538 = vsel %vm410, %v344, %v474
    %v539 = vsel %vm411, %v257, %v475
    %v540 = vsel %vm412, %v346, %v476
    %v541 = vsel %vm413, %v260, %v477
    %v542 = vsel %vm414, %v349, %v478
    %v543 = vsel %vm415, %v262, %v479
    %v544 = vsel %vm416, %v351, %v480
    %v545 = vpack.c.bf16 %v483, %v481
    %v546 = vpack.c.bf16 %v484, %v482
    %v547 = vpack.c.bf16 %v487, %v485
    %v548 = vpack.c.bf16 %v488, %v486
    %v549 = vpack.c.bf16 %v491, %v489
    %v550 = vpack.c.bf16 %v492, %v490
    %v551 = vpack.c.bf16 %v495, %v493
    %v552 = vpack.c.bf16 %v496, %v494
    %v553 = vpack.c.bf16 %v499, %v497
    %v554 = vpack.c.bf16 %v500, %v498
    %v555 = vpack.c.bf16 %v503, %v501
    %v556 = vpack.c.bf16 %v504, %v502
    %v557 = vpack.c.bf16 %v507, %v505
    %v558 = vpack.c.bf16 %v508, %v506
    %v559 = vpack.c.bf16 %v511, %v509
    %v560 = vpack.c.bf16 %v512, %v510
    %v561 = vpack.c.bf16 %v515, %v513
    %v562 = vpack.c.bf16 %v516, %v514
    %v563 = vpack.c.bf16 %v519, %v517
    %v564 = vpack.c.bf16 %v520, %v518
    %v565 = vpack.c.bf16 %v523, %v521
    %v566 = vpack.c.bf16 %v524, %v522
    %v567 = vpack.c.bf16 %v527, %v525
    %v568 = vpack.c.bf16 %v528, %v526
    %v569 = vpack.c.bf16 %v531, %v529
    %v570 = vpack.c.bf16 %v532, %v530
    %v571 = vpack.c.bf16 %v535, %v533
    %v572 = vpack.c.bf16 %v536, %v534
    %v573 = vpack.c.bf16 %v539, %v537
    %v574 = vpack.c.bf16 %v540, %v538
    %v575 = vpack.c.bf16 %v543, %v541
    %v576 = vpack.c.bf16 %v544, %v542
    %v577 = vld [vmem:[%s2] sm:$0xff]
    %v578 = vld [vmem:[%s2 + $0x8] sm:$0xff]
    %v579 = vld [vmem:[%s2 + $0x10] sm:$0xff]
    %v580 = vld [vmem:[%s2 + $0x18] sm:$0xff]
    %v581 = vld [vmem:[%s2 + $0x20] sm:$0xff]
    %v582 = vld [vmem:[%s2 + $0x28] sm:$0xff]
    %v583 = vld [vmem:[%s2 + $0x30] sm:$0xff]
    %v584 = vld [vmem:[%s2 + $0x38] sm:$0xff]
    %v585 = vld [vmem:[%s2 + $0x40] sm:$0xff]
    %v586 = vld [vmem:[%s2 + $0x48] sm:$0xff]
    %v587 = vld [vmem:[%s2 + $0x50] sm:$0xff]
    %v588 = vld [vmem:[%s2 + $0x58] sm:$0xff]
    %v589 = vld [vmem:[%s2 + $0x60] sm:$0xff]
    %v590 = vld [vmem:[%s2 + $0x68] sm:$0xff]
    %v591 = vld [vmem:[%s2 + $0x70] sm:$0xff]
    %v592 = vld [vmem:[%s2 + $0x78] sm:$0xff]
    %v593 = vld [vmem:[%s2 + $0x80] sm:$0xff]
    %v594 = vld [vmem:[%s2 + $0x88] sm:$0xff]
    %v595 = vld [vmem:[%s2 + $0x90] sm:$0xff]
    %v596 = vld [vmem:[%s2 + $0x98] sm:$0xff]
    %v597 = vld [vmem:[%s2 + $0xa0] sm:$0xff]
    %v598 = vld [vmem:[%s2 + $0xa8] sm:$0xff]
    %v599 = vld [vmem:[%s2 + $0xb0] sm:$0xff]
    %v600 = vld [vmem:[%s2 + $0xb8] sm:$0xff]
    %v601 = vld [vmem:[%s2 + $0xc0] sm:$0xff]
    %v602 = vld [vmem:[%s2 + $0xc8] sm:$0xff]
    %v603 = vld [vmem:[%s2 + $0xd0] sm:$0xff]
    %v604 = vld [vmem:[%s2 + $0xd8] sm:$0xff]
    %v605 = vld [vmem:[%s2 + $0xe0] sm:$0xff]
    %v606 = vld [vmem:[%s2 + $0xe8] sm:$0xff]
    %v607 = vld [vmem:[%s2 + $0xf0] sm:$0xff]
    %v608 = vld [vmem:[%s2 + $0xf8] sm:$0xff]
    %v610 = vperm.slane %v58, 0
    %v611 = vperm.slane %v58, 1
    %v646 = vunpack.c.l.b16 %v577
    %v647 = vunpack.c.h.b16 %v577
    %v648 = vunpack.c.l.b16 %v578
    %v649 = vunpack.c.h.b16 %v578
    %v650 = vunpack.c.l.b16 %v579
    %v651 = vunpack.c.h.b16 %v579
    %v652 = vunpack.c.l.b16 %v580
    %v653 = vunpack.c.h.b16 %v580
    %v654 = vunpack.c.l.b16 %v581
    %v655 = vunpack.c.h.b16 %v581
    %v656 = vunpack.c.l.b16 %v582
    %v657 = vunpack.c.h.b16 %v582
    %v658 = vunpack.c.l.b16 %v583
    %v659 = vunpack.c.h.b16 %v583
    %v660 = vunpack.c.l.b16 %v584
    %v661 = vunpack.c.h.b16 %v584
    %v662 = vunpack.c.l.b16 %v585
    %v663 = vunpack.c.h.b16 %v585
    %v664 = vunpack.c.l.b16 %v586
    %v665 = vunpack.c.h.b16 %v586
    %v666 = vunpack.c.l.b16 %v587
    %v667 = vunpack.c.h.b16 %v587
    %v668 = vunpack.c.l.b16 %v588
    %v669 = vunpack.c.h.b16 %v588
    %v670 = vunpack.c.l.b16 %v589
    %v671 = vunpack.c.h.b16 %v589
    %v672 = vunpack.c.l.b16 %v590
    %v673 = vunpack.c.h.b16 %v590
    %v674 = vunpack.c.l.b16 %v591
    %v675 = vunpack.c.h.b16 %v591
    %v676 = vunpack.c.l.b16 %v592
    %v677 = vunpack.c.h.b16 %v592
    %v678 = vunpack.c.l.b16 %v593
    %v679 = vunpack.c.h.b16 %v593
    %v680 = vunpack.c.l.b16 %v594
    %v681 = vunpack.c.h.b16 %v594
    %v682 = vunpack.c.l.b16 %v595
    %v683 = vunpack.c.h.b16 %v595
    %v684 = vunpack.c.l.b16 %v596
    %v685 = vunpack.c.h.b16 %v596
    %v686 = vunpack.c.l.b16 %v597
    %v687 = vunpack.c.h.b16 %v597
    %v688 = vunpack.c.l.b16 %v598
    %v689 = vunpack.c.h.b16 %v598
    %v690 = vunpack.c.l.b16 %v599
    %v691 = vunpack.c.h.b16 %v599
    %v692 = vunpack.c.l.b16 %v600
    %v693 = vunpack.c.h.b16 %v600
    %v694 = vunpack.c.l.b16 %v601
    %v695 = vunpack.c.h.b16 %v601
    %v696 = vunpack.c.l.b16 %v602
    %v697 = vunpack.c.h.b16 %v602
    %v698 = vunpack.c.l.b16 %v603
    %v699 = vunpack.c.h.b16 %v603
    %v700 = vunpack.c.l.b16 %v604
    %v701 = vunpack.c.h.b16 %v604
    %v702 = vunpack.c.l.b16 %v605
    %v703 = vunpack.c.h.b16 %v605
    %v704 = vunpack.c.l.b16 %v606
    %v705 = vunpack.c.h.b16 %v606
    %v706 = vunpack.c.l.b16 %v607
    %v707 = vunpack.c.h.b16 %v607
    %v708 = vunpack.c.l.b16 %v608
    %v709 = vunpack.c.h.b16 %v608
    %v710 = vpack.c.b16 %v648, %v646
    %v711 = vpack.c.b16 %v649, %v647
    %v712 = vpack.c.b16 %v652, %v650
    %v713 = vpack.c.b16 %v653, %v651
    %v714 = vpack.c.b16 %v656, %v654
    %v715 = vpack.c.b16 %v657, %v655
    %v716 = vpack.c.b16 %v660, %v658
    %v717 = vpack.c.b16 %v661, %v659
    %v718 = vpack.c.b16 %v664, %v662
    %v719 = vpack.c.b16 %v665, %v663
    %v720 = vpack.c.b16 %v668, %v666
    %v721 = vpack.c.b16 %v669, %v667
    %v722 = vpack.c.b16 %v672, %v670
    %v723 = vpack.c.b16 %v673, %v671
    %v724 = vpack.c.b16 %v676, %v674
    %v725 = vpack.c.b16 %v677, %v675
    %v726 = vpack.c.b16 %v680, %v678
    %v727 = vpack.c.b16 %v681, %v679
    %v728 = vpack.c.b16 %v684, %v682
    %v729 = vpack.c.b16 %v685, %v683
    %v730 = vpack.c.b16 %v688, %v686
    %v731 = vpack.c.b16 %v689, %v687
    %v732 = vpack.c.b16 %v692, %v690
    %v733 = vpack.c.b16 %v693, %v691
    %v734 = vpack.c.b16 %v696, %v694
    %v735 = vpack.c.b16 %v697, %v695
    %v736 = vpack.c.b16 %v700, %v698
    %v737 = vpack.c.b16 %v701, %v699
    %v738 = vpack.c.b16 %v704, %v702
    %v739 = vpack.c.b16 %v705, %v703
    %v740 = vpack.c.b16 %v708, %v706
    %v741 = vpack.c.b16 %v709, %v707
    %774 = vmatpush.bf16.msra.mxu0 %v724
    %775 = vmatpush.bf16.msra.mxu0 %v722
    %776 = vmatpush.bf16.msra.mxu0 %v720
    %777 = vmatpush.bf16.msra.mxu0 %v718
    %778 = vmatpush.bf16.msra.mxu0 %v716
    %779 = vmatpush.bf16.msra.mxu0 %v714
    %780 = vmatpush.bf16.msra.mxu0 %v712
    %781 = vmatpush.bf16.msra.mxu0 %v710
    %782 = vmatmul.bf16.gmra.mxu0 %v545
    %v783 = vpop.f32.mrf.mxu0
    %v784 = vadd.f32 %v610, %v783
    %v785 = vpop.f32.mrf.mxu0
    %v786 = vadd.f32 %v610, %v785
    %787 = vmatmul.bf16.gmra.mxu0 %v547
    %v788 = vpop.f32.mrf.mxu0
    %v789 = vadd.f32 %v610, %v788
    %v790 = vpop.f32.mrf.mxu0
    %v791 = vadd.f32 %v610, %v790
    %792 = vmatmul.bf16.gmra.mxu0 %v549
    %v793 = vpop.f32.mrf.mxu0
    %v794 = vadd.f32 %v610, %v793
    %v795 = vpop.f32.mrf.mxu0
    %v796 = vadd.f32 %v610, %v795
    %797 = vmatmul.bf16.gmra.mxu0 %v551
    %v798 = vpop.f32.mrf.mxu0
    %v799 = vadd.f32 %v610, %v798
    %v800 = vpop.f32.mrf.mxu0
    %v801 = vadd.f32 %v610, %v800
    %802 = vmatmul.bf16.gmra.mxu0 %v553
    %v803 = vpop.f32.mrf.mxu0
    %v804 = vadd.f32 %v610, %v803
    %v805 = vpop.f32.mrf.mxu0
    %v806 = vadd.f32 %v610, %v805
    %807 = vmatmul.bf16.gmra.mxu0 %v555
    %v808 = vpop.f32.mrf.mxu0
    %v809 = vadd.f32 %v610, %v808
    %v810 = vpop.f32.mrf.mxu0
    %v811 = vadd.f32 %v610, %v810
    %812 = vmatmul.bf16.gmra.mxu0 %v557
    %v813 = vpop.f32.mrf.mxu0
    %v814 = vadd.f32 %v610, %v813
    %v815 = vpop.f32.mrf.mxu0
    %v816 = vadd.f32 %v610, %v815
    %817 = vmatmul.bf16.gmra.mxu0 %v559
    %v818 = vpop.f32.mrf.mxu0
    %v819 = vadd.f32 %v610, %v818
    %v820 = vpop.f32.mrf.mxu0
    %v821 = vadd.f32 %v610, %v820
    %822 = vmatmul.bf16.gmra.mxu0 %v561
    %v823 = vpop.f32.mrf.mxu0
    %v824 = vadd.f32 %v610, %v823
    %v825 = vpop.f32.mrf.mxu0
    %v826 = vadd.f32 %v610, %v825
    %827 = vmatmul.bf16.gmra.mxu0 %v563
    %v828 = vpop.f32.mrf.mxu0
    %v829 = vadd.f32 %v610, %v828
    %v830 = vpop.f32.mrf.mxu0
    %v831 = vadd.f32 %v610, %v830
    %832 = vmatmul.bf16.gmra.mxu0 %v565
    %v833 = vpop.f32.mrf.mxu0
    %v834 = vadd.f32 %v610, %v833
    %v835 = vpop.f32.mrf.mxu0
    %v836 = vadd.f32 %v610, %v835
    %837 = vmatmul.bf16.gmra.mxu0 %v567
    %v838 = vpop.f32.mrf.mxu0
    %v839 = vadd.f32 %v610, %v838
    %v840 = vpop.f32.mrf.mxu0
    %v841 = vadd.f32 %v610, %v840
    %842 = vmatmul.bf16.gmra.mxu0 %v569
    %v843 = vpop.f32.mrf.mxu0
    %v844 = vadd.f32 %v610, %v843
    %v845 = vpop.f32.mrf.mxu0
    %v846 = vadd.f32 %v610, %v845
    %847 = vmatmul.bf16.gmra.mxu0 %v571
    %v848 = vpop.f32.mrf.mxu0
    %v849 = vadd.f32 %v610, %v848
    %v850 = vpop.f32.mrf.mxu0
    %v851 = vadd.f32 %v610, %v850
    %852 = vmatmul.bf16.gmra.mxu0 %v573
    %v853 = vpop.f32.mrf.mxu0
    %v854 = vadd.f32 %v610, %v853
    %v855 = vpop.f32.mrf.mxu0
    %v856 = vadd.f32 %v610, %v855
    %857 = vmatmul.bf16.gmra.mxu0 %v575
    %v858 = vpop.f32.mrf.mxu0
    %v859 = vadd.f32 %v610, %v858
    %v860 = vpop.f32.mrf.mxu0
    %v861 = vadd.f32 %v610, %v860
    %862 = vdwg.mxu0
    %863 = vmatpush.bf16.msra.mxu0 %v740
    %864 = vmatpush.bf16.msra.mxu0 %v738
    %865 = vmatpush.bf16.msra.mxu0 %v736
    %866 = vmatpush.bf16.msra.mxu0 %v734
    %867 = vmatpush.bf16.msra.mxu0 %v732
    %868 = vmatpush.bf16.msra.mxu0 %v730
    %869 = vmatpush.bf16.msra.mxu0 %v728
    %870 = vmatpush.bf16.msra.mxu0 %v726
    %871 = vmatmul.bf16.gmra.mxu0 %v546
    %v872 = vpop.f32.mrf.mxu0
    %v873 = vadd.f32 %v784, %v872
    %v874 = vpop.f32.mrf.mxu0
    %v875 = vadd.f32 %v786, %v874
    %876 = vmatmul.bf16.gmra.mxu0 %v548
    %v877 = vpop.f32.mrf.mxu0
    %v878 = vadd.f32 %v789, %v877
    %v879 = vpop.f32.mrf.mxu0
    %v880 = vadd.f32 %v791, %v879
    %881 = vmatmul.bf16.gmra.mxu0 %v550
    %v882 = vpop.f32.mrf.mxu0
    %v883 = vadd.f32 %v794, %v882
    %v884 = vpop.f32.mrf.mxu0
    %v885 = vadd.f32 %v796, %v884
    %886 = vmatmul.bf16.gmra.mxu0 %v552
    %v887 = vpop.f32.mrf.mxu0
    %v888 = vadd.f32 %v799, %v887
    %v889 = vpop.f32.mrf.mxu0
    %v890 = vadd.f32 %v801, %v889
    %891 = vmatmul.bf16.gmra.mxu0 %v554
    %v892 = vpop.f32.mrf.mxu0
    %v893 = vadd.f32 %v804, %v892
    %v894 = vpop.f32.mrf.mxu0
    %v895 = vadd.f32 %v806, %v894
    %896 = vmatmul.bf16.gmra.mxu0 %v556
    %v897 = vpop.f32.mrf.mxu0
    %v898 = vadd.f32 %v809, %v897
    %v899 = vpop.f32.mrf.mxu0
    %v900 = vadd.f32 %v811, %v899
    %901 = vmatmul.bf16.gmra.mxu0 %v558
    %v902 = vpop.f32.mrf.mxu0
    %v903 = vadd.f32 %v814, %v902
    %v904 = vpop.f32.mrf.mxu0
    %v905 = vadd.f32 %v816, %v904
    %906 = vmatmul.bf16.gmra.mxu0 %v560
    %v907 = vpop.f32.mrf.mxu0
    %v908 = vadd.f32 %v819, %v907
    %v909 = vpop.f32.mrf.mxu0
    %v910 = vadd.f32 %v821, %v909
    %911 = vmatmul.bf16.gmra.mxu0 %v562
    %v912 = vpop.f32.mrf.mxu0
    %v913 = vadd.f32 %v824, %v912
    %v914 = vpop.f32.mrf.mxu0
    %v915 = vadd.f32 %v826, %v914
    %916 = vmatmul.bf16.gmra.mxu0 %v564
    %v917 = vpop.f32.mrf.mxu0
    %v918 = vadd.f32 %v829, %v917
    %v919 = vpop.f32.mrf.mxu0
    %v920 = vadd.f32 %v831, %v919
    %921 = vmatmul.bf16.gmra.mxu0 %v566
    %v922 = vpop.f32.mrf.mxu0
    %v923 = vadd.f32 %v834, %v922
    %v924 = vpop.f32.mrf.mxu0
    %v925 = vadd.f32 %v836, %v924
    %926 = vmatmul.bf16.gmra.mxu0 %v568
    %v927 = vpop.f32.mrf.mxu0
    %v928 = vadd.f32 %v839, %v927
    %v929 = vpop.f32.mrf.mxu0
    %v930 = vadd.f32 %v841, %v929
    %931 = vmatmul.bf16.gmra.mxu0 %v570
    %v932 = vpop.f32.mrf.mxu0
    %v933 = vadd.f32 %v844, %v932
    %v934 = vpop.f32.mrf.mxu0
    %v935 = vadd.f32 %v846, %v934
    %936 = vmatmul.bf16.gmra.mxu0 %v572
    %v937 = vpop.f32.mrf.mxu0
    %v938 = vadd.f32 %v849, %v937
    %v939 = vpop.f32.mrf.mxu0
    %v940 = vadd.f32 %v851, %v939
    %941 = vmatmul.bf16.gmra.mxu0 %v574
    %v942 = vpop.f32.mrf.mxu0
    %v943 = vadd.f32 %v854, %v942
    %v944 = vpop.f32.mrf.mxu0
    %v945 = vadd.f32 %v856, %v944
    %946 = vmatmul.bf16.gmra.mxu0 %v576
    %v947 = vpop.f32.mrf.mxu0
    %v948 = vadd.f32 %v859, %v947
    %v949 = vpop.f32.mrf.mxu0
    %v950 = vadd.f32 %v861, %v949
    %951 = vdwg.mxu0
    %952 = vmatpush.bf16.msra.mxu0 %v725
    %953 = vmatpush.bf16.msra.mxu0 %v723
    %954 = vmatpush.bf16.msra.mxu0 %v721
    %955 = vmatpush.bf16.msra.mxu0 %v719
    %956 = vmatpush.bf16.msra.mxu0 %v717
    %957 = vmatpush.bf16.msra.mxu0 %v715
    %958 = vmatpush.bf16.msra.mxu0 %v713
    %959 = vmatpush.bf16.msra.mxu0 %v711
    %960 = vmatmul.bf16.gmra.mxu0 %v545
    %v961 = vpop.f32.mrf.mxu0
    %v962 = vadd.f32 %v611, %v961
    %v963 = vpop.f32.mrf.mxu0
    %v964 = vadd.f32 %v611, %v963
    %965 = vmatmul.bf16.gmra.mxu0 %v547
    %v966 = vpop.f32.mrf.mxu0
    %v967 = vadd.f32 %v611, %v966
    %v968 = vpop.f32.mrf.mxu0
    %v969 = vadd.f32 %v611, %v968
    %970 = vmatmul.bf16.gmra.mxu0 %v549
    %v971 = vpop.f32.mrf.mxu0
    %v972 = vadd.f32 %v611, %v971
    %v973 = vpop.f32.mrf.mxu0
    %v974 = vadd.f32 %v611, %v973
    %975 = vmatmul.bf16.gmra.mxu0 %v551
    %v976 = vpop.f32.mrf.mxu0
    %v977 = vadd.f32 %v611, %v976
    %v978 = vpop.f32.mrf.mxu0
    %v979 = vadd.f32 %v611, %v978
    %980 = vmatmul.bf16.gmra.mxu0 %v553
    %v981 = vpop.f32.mrf.mxu0
    %v982 = vadd.f32 %v611, %v981
    %v983 = vpop.f32.mrf.mxu0
    %v984 = vadd.f32 %v611, %v983
    %985 = vmatmul.bf16.gmra.mxu0 %v555
    %v986 = vpop.f32.mrf.mxu0
    %v987 = vadd.f32 %v611, %v986
    %v988 = vpop.f32.mrf.mxu0
    %v989 = vadd.f32 %v611, %v988
    %990 = vmatmul.bf16.gmra.mxu0 %v557
    %v991 = vpop.f32.mrf.mxu0
    %v992 = vadd.f32 %v611, %v991
    %v993 = vpop.f32.mrf.mxu0
    %v994 = vadd.f32 %v611, %v993
    %995 = vmatmul.bf16.gmra.mxu0 %v559
    %v996 = vpop.f32.mrf.mxu0
    %v997 = vadd.f32 %v611, %v996
    %v998 = vpop.f32.mrf.mxu0
    %v999 = vadd.f32 %v611, %v998
    %1000 = vmatmul.bf16.gmra.mxu0 %v561
    %v1001 = vpop.f32.mrf.mxu0
    %v1002 = vadd.f32 %v611, %v1001
    %v1003 = vpop.f32.mrf.mxu0
    %v1004 = vadd.f32 %v611, %v1003
    %1005 = vmatmul.bf16.gmra.mxu0 %v563
    %v1006 = vpop.f32.mrf.mxu0
    %v1007 = vadd.f32 %v611, %v1006
    %v1008 = vpop.f32.mrf.mxu0
    %v1009 = vadd.f32 %v611, %v1008
    %1010 = vmatmul.bf16.gmra.mxu0 %v565
    %v1011 = vpop.f32.mrf.mxu0
    %v1012 = vadd.f32 %v611, %v1011
    %v1013 = vpop.f32.mrf.mxu0
    %v1014 = vadd.f32 %v611, %v1013
    %1015 = vmatmul.bf16.gmra.mxu0 %v567
    %v1016 = vpop.f32.mrf.mxu0
    %v1017 = vadd.f32 %v611, %v1016
    %v1018 = vpop.f32.mrf.mxu0
    %v1019 = vadd.f32 %v611, %v1018
    %1020 = vmatmul.bf16.gmra.mxu0 %v569
    %v1021 = vpop.f32.mrf.mxu0
    %v1022 = vadd.f32 %v611, %v1021
    %v1023 = vpop.f32.mrf.mxu0
    %v1024 = vadd.f32 %v611, %v1023
    %1025 = vmatmul.bf16.gmra.mxu0 %v571
    %v1026 = vpop.f32.mrf.mxu0
    %v1027 = vadd.f32 %v611, %v1026
    %v1028 = vpop.f32.mrf.mxu0
    %v1029 = vadd.f32 %v611, %v1028
    %1030 = vmatmul.bf16.gmra.mxu0 %v573
    %v1031 = vpop.f32.mrf.mxu0
    %v1032 = vadd.f32 %v611, %v1031
    %v1033 = vpop.f32.mrf.mxu0
    %v1034 = vadd.f32 %v611, %v1033
    %1035 = vmatmul.bf16.gmra.mxu0 %v575
    %v1036 = vpop.f32.mrf.mxu0
    %v1037 = vadd.f32 %v611, %v1036
    %v1038 = vpop.f32.mrf.mxu0
    %v1039 = vadd.f32 %v611, %v1038
    %1040 = vdwg.mxu0
    %1041 = vmatpush.bf16.msra.mxu0 %v741
    %1042 = vmatpush.bf16.msra.mxu0 %v739
    %1043 = vmatpush.bf16.msra.mxu0 %v737
    %1044 = vmatpush.bf16.msra.mxu0 %v735
    %1045 = vmatpush.bf16.msra.mxu0 %v733
    %1046 = vmatpush.bf16.msra.mxu0 %v731
    %1047 = vmatpush.bf16.msra.mxu0 %v729
    %1048 = vmatpush.bf16.msra.mxu0 %v727
    %1049 = vmatmul.bf16.gmra.mxu0 %v546
    %v1050 = vpop.f32.mrf.mxu0
    %v1051 = vadd.f32 %v962, %v1050
    %v1052 = vpop.f32.mrf.mxu0
    %v1053 = vadd.f32 %v964, %v1052
    %1054 = vmatmul.bf16.gmra.mxu0 %v548
    %v1055 = vpop.f32.mrf.mxu0
    %v1056 = vadd.f32 %v967, %v1055
    %v1057 = vpop.f32.mrf.mxu0
    %v1058 = vadd.f32 %v969, %v1057
    %1059 = vmatmul.bf16.gmra.mxu0 %v550
    %v1060 = vpop.f32.mrf.mxu0
    %v1061 = vadd.f32 %v972, %v1060
    %v1062 = vpop.f32.mrf.mxu0
    %v1063 = vadd.f32 %v974, %v1062
    %1064 = vmatmul.bf16.gmra.mxu0 %v552
    %v1065 = vpop.f32.mrf.mxu0
    %v1066 = vadd.f32 %v977, %v1065
    %v1067 = vpop.f32.mrf.mxu0
    %v1068 = vadd.f32 %v979, %v1067
    %1069 = vmatmul.bf16.gmra.mxu0 %v554
    %v1070 = vpop.f32.mrf.mxu0
    %v1071 = vadd.f32 %v982, %v1070
    %v1072 = vpop.f32.mrf.mxu0
    %v1073 = vadd.f32 %v984, %v1072
    %1074 = vmatmul.bf16.gmra.mxu0 %v556
    %v1075 = vpop.f32.mrf.mxu0
    %v1076 = vadd.f32 %v987, %v1075
    %v1077 = vpop.f32.mrf.mxu0
    %v1078 = vadd.f32 %v989, %v1077
    %1079 = vmatmul.bf16.gmra.mxu0 %v558
    %v1080 = vpop.f32.mrf.mxu0
    %v1081 = vadd.f32 %v992, %v1080
    %v1082 = vpop.f32.mrf.mxu0
    %v1083 = vadd.f32 %v994, %v1082
    %1084 = vmatmul.bf16.gmra.mxu0 %v560
    %v1085 = vpop.f32.mrf.mxu0
    %v1086 = vadd.f32 %v997, %v1085
    %v1087 = vpop.f32.mrf.mxu0
    %v1088 = vadd.f32 %v999, %v1087
    %1089 = vmatmul.bf16.gmra.mxu0 %v562
    %v1090 = vpop.f32.mrf.mxu0
    %v1091 = vadd.f32 %v1002, %v1090
    %v1092 = vpop.f32.mrf.mxu0
    %v1093 = vadd.f32 %v1004, %v1092
    %1094 = vmatmul.bf16.gmra.mxu0 %v564
    %v1095 = vpop.f32.mrf.mxu0
    %v1096 = vadd.f32 %v1007, %v1095
    %v1097 = vpop.f32.mrf.mxu0
    %v1098 = vadd.f32 %v1009, %v1097
    %1099 = vmatmul.bf16.gmra.mxu0 %v566
    %v1100 = vpop.f32.mrf.mxu0
    %v1101 = vadd.f32 %v1012, %v1100
    %v1102 = vpop.f32.mrf.mxu0
    %v1103 = vadd.f32 %v1014, %v1102
    %1104 = vmatmul.bf16.gmra.mxu0 %v568
    %v1105 = vpop.f32.mrf.mxu0
    %v1106 = vadd.f32 %v1017, %v1105
    %v1107 = vpop.f32.mrf.mxu0
    %v1108 = vadd.f32 %v1019, %v1107
    %1109 = vmatmul.bf16.gmra.mxu0 %v570
    %v1110 = vpop.f32.mrf.mxu0
    %v1111 = vadd.f32 %v1022, %v1110
    %v1112 = vpop.f32.mrf.mxu0
    %v1113 = vadd.f32 %v1024, %v1112
    %1114 = vmatmul.bf16.gmra.mxu0 %v572
    %v1115 = vpop.f32.mrf.mxu0
    %v1116 = vadd.f32 %v1027, %v1115
    %v1117 = vpop.f32.mrf.mxu0
    %v1118 = vadd.f32 %v1029, %v1117
    %1119 = vmatmul.bf16.gmra.mxu0 %v574
    %v1120 = vpop.f32.mrf.mxu0
    %v1121 = vadd.f32 %v1032, %v1120
    %v1122 = vpop.f32.mrf.mxu0
    %v1123 = vadd.f32 %v1034, %v1122
    %1124 = vmatmul.bf16.gmra.mxu0 %v576
    %v1125 = vpop.f32.mrf.mxu0
    %v1126 = vadd.f32 %v1037, %v1125
    %v1127 = vpop.f32.mrf.mxu0
    %v1128 = vadd.f32 %v1039, %v1127
    %1129 = vdwg.mxu0
    %vm1130 = vcmp.ge.f32.partialorder %v873, 0.0
    %vm1131 = vcmp.ge.f32.partialorder %v1051, 0.0
    %vm1132 = vcmp.ge.f32.partialorder %v875, 0.0
    %vm1133 = vcmp.ge.f32.partialorder %v1053, 0.0
    %vm1134 = vcmp.ge.f32.partialorder %v878, 0.0
    %vm1135 = vcmp.ge.f32.partialorder %v1056, 0.0
    %vm1136 = vcmp.ge.f32.partialorder %v880, 0.0
    %vm1137 = vcmp.ge.f32.partialorder %v1058, 0.0
    %vm1138 = vcmp.ge.f32.partialorder %v883, 0.0
    %vm1139 = vcmp.ge.f32.partialorder %v1061, 0.0
    %vm1140 = vcmp.ge.f32.partialorder %v885, 0.0
    %vm1141 = vcmp.ge.f32.partialorder %v1063, 0.0
    %vm1142 = vcmp.ge.f32.partialorder %v888, 0.0
    %vm1143 = vcmp.ge.f32.partialorder %v1066, 0.0
    %vm1144 = vcmp.ge.f32.partialorder %v890, 0.0
    %vm1145 = vcmp.ge.f32.partialorder %v1068, 0.0
    %vm1146 = vcmp.ge.f32.partialorder %v893, 0.0
    %vm1147 = vcmp.ge.f32.partialorder %v1071, 0.0
    %vm1148 = vcmp.ge.f32.partialorder %v895, 0.0
    %vm1149 = vcmp.ge.f32.partialorder %v1073, 0.0
    %vm1150 = vcmp.ge.f32.partialorder %v898, 0.0
    %vm1151 = vcmp.ge.f32.partialorder %v1076, 0.0
    %vm1152 = vcmp.ge.f32.partialorder %v900, 0.0
    %vm1153 = vcmp.ge.f32.partialorder %v1078, 0.0
    %vm1154 = vcmp.ge.f32.partialorder %v903, 0.0
    %vm1155 = vcmp.ge.f32.partialorder %v1081, 0.0
    %vm1156 = vcmp.ge.f32.partialorder %v905, 0.0
    %vm1157 = vcmp.ge.f32.partialorder %v1083, 0.0
    %vm1158 = vcmp.ge.f32.partialorder %v908, 0.0
    %vm1159 = vcmp.ge.f32.partialorder %v1086, 0.0
    %vm1160 = vcmp.ge.f32.partialorder %v910, 0.0
    %vm1161 = vcmp.ge.f32.partialorder %v1088, 0.0
    %vm1162 = vcmp.ge.f32.partialorder %v913, 0.0
    %vm1163 = vcmp.ge.f32.partialorder %v1091, 0.0
    %vm1164 = vcmp.ge.f32.partialorder %v915, 0.0
    %vm1165 = vcmp.ge.f32.partialorder %v1093, 0.0
    %vm1166 = vcmp.ge.f32.partialorder %v918, 0.0
    %vm1167 = vcmp.ge.f32.partialorder %v1096, 0.0
    %vm1168 = vcmp.ge.f32.partialorder %v920, 0.0
    %vm1169 = vcmp.ge.f32.partialorder %v1098, 0.0
    %vm1170 = vcmp.ge.f32.partialorder %v923, 0.0
    %vm1171 = vcmp.ge.f32.partialorder %v1101, 0.0
    %vm1172 = vcmp.ge.f32.partialorder %v925, 0.0
    %vm1173 = vcmp.ge.f32.partialorder %v1103, 0.0
    %vm1174 = vcmp.ge.f32.partialorder %v928, 0.0
    %vm1175 = vcmp.ge.f32.partialorder %v1106, 0.0
    %vm1176 = vcmp.ge.f32.partialorder %v930, 0.0
    %vm1177 = vcmp.ge.f32.partialorder %v1108, 0.0
    %vm1178 = vcmp.ge.f32.partialorder %v933, 0.0
    %vm1179 = vcmp.ge.f32.partialorder %v1111, 0.0
    %vm1180 = vcmp.ge.f32.partialorder %v935, 0.0
    %vm1181 = vcmp.ge.f32.partialorder %v1113, 0.0
    %vm1182 = vcmp.ge.f32.partialorder %v938, 0.0
    %vm1183 = vcmp.ge.f32.partialorder %v1116, 0.0
    %vm1184 = vcmp.ge.f32.partialorder %v940, 0.0
    %vm1185 = vcmp.ge.f32.partialorder %v1118, 0.0
    %vm1186 = vcmp.ge.f32.partialorder %v943, 0.0
    %vm1187 = vcmp.ge.f32.partialorder %v1121, 0.0
    %vm1188 = vcmp.ge.f32.partialorder %v945, 0.0
    %vm1189 = vcmp.ge.f32.partialorder %v1123, 0.0
    %vm1190 = vcmp.ge.f32.partialorder %v948, 0.0
    %vm1191 = vcmp.ge.f32.partialorder %v1126, 0.0
    %vm1192 = vcmp.ge.f32.partialorder %v950, 0.0
    %vm1193 = vcmp.ge.f32.partialorder %v1128, 0.0
    %v1194 = vmul.f32 %v873, 0.01
    %v1195 = vmul.f32 %v1051, 0.01
    %v1196 = vmul.f32 %v875, 0.01
    %v1197 = vmul.f32 %v1053, 0.01
    %v1198 = vmul.f32 %v878, 0.01
    %v1199 = vmul.f32 %v1056, 0.01
    %v1200 = vmul.f32 %v880, 0.01
    %v1201 = vmul.f32 %v1058, 0.01
    %v1202 = vmul.f32 %v883, 0.01
    %v1203 = vmul.f32 %v1061, 0.01
    %v1204 = vmul.f32 %v885, 0.01
    %v1205 = vmul.f32 %v1063, 0.01
    %v1206 = vmul.f32 %v888, 0.01
    %v1207 = vmul.f32 %v1066, 0.01
    %v1208 = vmul.f32 %v890, 0.01
    %v1209 = vmul.f32 %v1068, 0.01
    %v1210 = vmul.f32 %v893, 0.01
    %v1211 = vmul.f32 %v1071, 0.01
    %v1212 = vmul.f32 %v895, 0.01
    %v1213 = vmul.f32 %v1073, 0.01
    %v1214 = vmul.f32 %v898, 0.01
    %v1215 = vmul.f32 %v1076, 0.01
    %v1216 = vmul.f32 %v900, 0.01
    %v1217 = vmul.f32 %v1078, 0.01
    %v1218 = vmul.f32 %v903, 0.01
    %v1219 = vmul.f32 %v1081, 0.01
    %v1220 = vmul.f32 %v905, 0.01
    %v1221 = vmul.f32 %v1083, 0.01
    %v1222 = vmul.f32 %v908, 0.01
    %v1223 = vmul.f32 %v1086, 0.01
    %v1224 = vmul.f32 %v910, 0.01
    %v1225 = vmul.f32 %v1088, 0.01
    %v1226 = vmul.f32 %v913, 0.01
    %v1227 = vmul.f32 %v1091, 0.01
    %v1228 = vmul.f32 %v915, 0.01
    %v1229 = vmul.f32 %v1093, 0.01
    %v1230 = vmul.f32 %v918, 0.01
    %v1231 = vmul.f32 %v1096, 0.01
    %v1232 = vmul.f32 %v920, 0.01
    %v1233 = vmul.f32 %v1098, 0.01
    %v1234 = vmul.f32 %v923, 0.01
    %v1235 = vmul.f32 %v1101, 0.01
    %v1236 = vmul.f32 %v925, 0.01
    %v1237 = vmul.f32 %v1103, 0.01
    %v1238 = vmul.f32 %v928, 0.01
    %v1239 = vmul.f32 %v1106, 0.01
    %v1240 = vmul.f32 %v930, 0.01
    %v1241 = vmul.f32 %v1108, 0.01
    %v1242 = vmul.f32 %v933, 0.01
    %v1243 = vmul.f32 %v1111, 0.01
    %v1244 = vmul.f32 %v935, 0.01
    %v1245 = vmul.f32 %v1113, 0.01
    %v1246 = vmul.f32 %v938, 0.01
    %v1247 = vmul.f32 %v1116, 0.01
    %v1248 = vmul.f32 %v940, 0.01
    %v1249 = vmul.f32 %v1118, 0.01
    %v1250 = vmul.f32 %v943, 0.01
    %v1251 = vmul.f32 %v1121, 0.01
    %v1252 = vmul.f32 %v945, 0.01
    %v1253 = vmul.f32 %v1123, 0.01
    %v1254 = vmul.f32 %v948, 0.01
    %v1255 = vmul.f32 %v1126, 0.01
    %v1256 = vmul.f32 %v950, 0.01
    %v1257 = vmul.f32 %v1128, 0.01
    %v1258 = vsel %vm1130, %v873, %v1194
    %v1259 = vsel %vm1131, %v1051, %v1195
    %v1260 = vsel %vm1132, %v875, %v1196
    %v1261 = vsel %vm1133, %v1053, %v1197
    %v1262 = vsel %vm1134, %v878, %v1198
    %v1263 = vsel %vm1135, %v1056, %v1199
    %v1264 = vsel %vm1136, %v880, %v1200
    %v1265 = vsel %vm1137, %v1058, %v1201
    %v1266 = vsel %vm1138, %v883, %v1202
    %v1267 = vsel %vm1139, %v1061, %v1203
    %v1268 = vsel %vm1140, %v885, %v1204
    %v1269 = vsel %vm1141, %v1063, %v1205
    %v1270 = vsel %vm1142, %v888, %v1206
    %v1271 = vsel %vm1143, %v1066, %v1207
    %v1272 = vsel %vm1144, %v890, %v1208
    %v1273 = vsel %vm1145, %v1068, %v1209
    %v1274 = vsel %vm1146, %v893, %v1210
    %v1275 = vsel %vm1147, %v1071, %v1211
    %v1276 = vsel %vm1148, %v895, %v1212
    %v1277 = vsel %vm1149, %v1073, %v1213
    %v1278 = vsel %vm1150, %v898, %v1214
    %v1279 = vsel %vm1151, %v1076, %v1215
    %v1280 = vsel %vm1152, %v900, %v1216
    %v1281 = vsel %vm1153, %v1078, %v1217
    %v1282 = vsel %vm1154, %v903, %v1218
    %v1283 = vsel %vm1155, %v1081, %v1219
    %v1284 = vsel %vm1156, %v905, %v1220
    %v1285 = vsel %vm1157, %v1083, %v1221
    %v1286 = vsel %vm1158, %v908, %v1222
    %v1287 = vsel %vm1159, %v1086, %v1223
    %v1288 = vsel %vm1160, %v910, %v1224
    %v1289 = vsel %vm1161, %v1088, %v1225
    %v1290 = vsel %vm1162, %v913, %v1226
    %v1291 = vsel %vm1163, %v1091, %v1227
    %v1292 = vsel %vm1164, %v915, %v1228
    %v1293 = vsel %vm1165, %v1093, %v1229
    %v1294 = vsel %vm1166, %v918, %v1230
    %v1295 = vsel %vm1167, %v1096, %v1231
    %v1296 = vsel %vm1168, %v920, %v1232
    %v1297 = vsel %vm1169, %v1098, %v1233
    %v1298 = vsel %vm1170, %v923, %v1234
    %v1299 = vsel %vm1171, %v1101, %v1235
    %v1300 = vsel %vm1172, %v925, %v1236
    %v1301 = vsel %vm1173, %v1103, %v1237
    %v1302 = vsel %vm1174, %v928, %v1238
    %v1303 = vsel %vm1175, %v1106, %v1239
    %v1304 = vsel %vm1176, %v930, %v1240
    %v1305 = vsel %vm1177, %v1108, %v1241
    %v1306 = vsel %vm1178, %v933, %v1242
    %v1307 = vsel %vm1179, %v1111, %v1243
    %v1308 = vsel %vm1180, %v935, %v1244
    %v1309 = vsel %vm1181, %v1113, %v1245
    %v1310 = vsel %vm1182, %v938, %v1246
    %v1311 = vsel %vm1183, %v1116, %v1247
    %v1312 = vsel %vm1184, %v940, %v1248
    %v1313 = vsel %vm1185, %v1118, %v1249
    %v1314 = vsel %vm1186, %v943, %v1250
    %v1315 = vsel %vm1187, %v1121, %v1251
    %v1316 = vsel %vm1188, %v945, %v1252
    %v1317 = vsel %vm1189, %v1123, %v1253
    %v1318 = vsel %vm1190, %v948, %v1254
    %v1319 = vsel %vm1191, %v1126, %v1255
    %v1320 = vsel %vm1192, %v950, %v1256
    %v1321 = vsel %vm1193, %v1128, %v1257
    %v1322 = vpack.c.bf16 %v1260, %v1258
    %v1323 = vpack.c.bf16 %v1261, %v1259
    %v1324 = vpack.c.bf16 %v1264, %v1262
    %v1325 = vpack.c.bf16 %v1265, %v1263
    %v1326 = vpack.c.bf16 %v1268, %v1266
    %v1327 = vpack.c.bf16 %v1269, %v1267
    %v1328 = vpack.c.bf16 %v1272, %v1270
    %v1329 = vpack.c.bf16 %v1273, %v1271
    %v1330 = vpack.c.bf16 %v1276, %v1274
    %v1331 = vpack.c.bf16 %v1277, %v1275
    %v1332 = vpack.c.bf16 %v1280, %v1278
    %v1333 = vpack.c.bf16 %v1281, %v1279
    %v1334 = vpack.c.bf16 %v1284, %v1282
    %v1335 = vpack.c.bf16 %v1285, %v1283
    %v1336 = vpack.c.bf16 %v1288, %v1286
    %v1337 = vpack.c.bf16 %v1289, %v1287
    %v1338 = vpack.c.bf16 %v1292, %v1290
    %v1339 = vpack.c.bf16 %v1293, %v1291
    %v1340 = vpack.c.bf16 %v1296, %v1294
    %v1341 = vpack.c.bf16 %v1297, %v1295
    %v1342 = vpack.c.bf16 %v1300, %v1298
    %v1343 = vpack.c.bf16 %v1301, %v1299
    %v1344 = vpack.c.bf16 %v1304, %v1302
    %v1345 = vpack.c.bf16 %v1305, %v1303
    %v1346 = vpack.c.bf16 %v1308, %v1306
    %v1347 = vpack.c.bf16 %v1309, %v1307
    %v1348 = vpack.c.bf16 %v1312, %v1310
    %v1349 = vpack.c.bf16 %v1313, %v1311
    %v1350 = vpack.c.bf16 %v1316, %v1314
    %v1351 = vpack.c.bf16 %v1317, %v1315
    %v1352 = vpack.c.bf16 %v1320, %v1318
    %v1353 = vpack.c.bf16 %v1321, %v1319
    %v1354 = vld [vmem:[#allocation2] sm:$0xff]
    %v1355 = vld [vmem:[#allocation2 + $0x8] sm:$0xff]
    %v1356 = vld [vmem:[#allocation2 + $0x10] sm:$0xff]
    %v1357 = vld [vmem:[#allocation2 + $0x18] sm:$0xff]
    %v1358 = vld [vmem:[#allocation2 + $0x20] sm:$0xff]
    %v1359 = vld [vmem:[#allocation2 + $0x28] sm:$0xff]
    %v1360 = vld [vmem:[#allocation2 + $0x30] sm:$0xff]
    %v1361 = vld [vmem:[#allocation2 + $0x38] sm:$0xff]
    %v1362 = vld [vmem:[#allocation2 + $0x40] sm:$0xff]
    %v1363 = vld [vmem:[#allocation2 + $0x48] sm:$0xff]
    %v1364 = vld [vmem:[#allocation2 + $0x50] sm:$0xff]
    %v1365 = vld [vmem:[#allocation2 + $0x58] sm:$0xff]
    %v1366 = vld [vmem:[#allocation2 + $0x60] sm:$0xff]
    %v1367 = vld [vmem:[#allocation2 + $0x68] sm:$0xff]
    %v1368 = vld [vmem:[#allocation2 + $0x70] sm:$0xff]
    %v1369 = vld [vmem:[#allocation2 + $0x78] sm:$0xff]
    %v1370 = vld [vmem:[#allocation2 + $0x80] sm:$0xff]
    %v1371 = vld [vmem:[#allocation2 + $0x88] sm:$0xff]
    %v1372 = vld [vmem:[#allocation2 + $0x90] sm:$0xff]
    %v1373 = vld [vmem:[#allocation2 + $0x98] sm:$0xff]
    %v1374 = vld [vmem:[#allocation2 + $0xa0] sm:$0xff]
    %v1375 = vld [vmem:[#allocation2 + $0xa8] sm:$0xff]
    %v1376 = vld [vmem:[#allocation2 + $0xb0] sm:$0xff]
    %v1377 = vld [vmem:[#allocation2 + $0xb8] sm:$0xff]
    %v1378 = vld [vmem:[#allocation2 + $0xc0] sm:$0xff]
    %v1379 = vld [vmem:[#allocation2 + $0xc8] sm:$0xff]
    %v1380 = vld [vmem:[#allocation2 + $0xd0] sm:$0xff]
    %v1381 = vld [vmem:[#allocation2 + $0xd8] sm:$0xff]
    %v1382 = vld [vmem:[#allocation2 + $0xe0] sm:$0xff]
    %v1383 = vld [vmem:[#allocation2 + $0xe8] sm:$0xff]
    %v1384 = vld [vmem:[#allocation2 + $0xf0] sm:$0xff]
    %v1385 = vld [vmem:[#allocation2 + $0xf8] sm:$0xff]
    %v1386 = vld [vmem:[#allocation2 + $0x100] sm:$0xff]
    %v1387 = vld [vmem:[#allocation2 + $0x108] sm:$0xff]
    %v1388 = vld [vmem:[#allocation2 + $0x110] sm:$0xff]
    %v1389 = vld [vmem:[#allocation2 + $0x118] sm:$0xff]
    %v1390 = vld [vmem:[#allocation2 + $0x120] sm:$0xff]
    %v1391 = vld [vmem:[#allocation2 + $0x128] sm:$0xff]
    %v1392 = vld [vmem:[#allocation2 + $0x130] sm:$0xff]
    %v1393 = vld [vmem:[#allocation2 + $0x138] sm:$0xff]
    %v1394 = vld [vmem:[#allocation2 + $0x140] sm:$0xff]
    %v1395 = vld [vmem:[#allocation2 + $0x148] sm:$0xff]
    %v1396 = vld [vmem:[#allocation2 + $0x150] sm:$0xff]
    %v1397 = vld [vmem:[#allocation2 + $0x158] sm:$0xff]
    %v1398 = vld [vmem:[#allocation2 + $0x160] sm:$0xff]
    %v1399 = vld [vmem:[#allocation2 + $0x168] sm:$0xff]
    %v1400 = vld [vmem:[#allocation2 + $0x170] sm:$0xff]
    %v1401 = vld [vmem:[#allocation2 + $0x178] sm:$0xff]
    %v1402 = vld [vmem:[#allocation2 + $0x180] sm:$0xff]
    %v1403 = vld [vmem:[#allocation2 + $0x188] sm:$0xff]
    %v1404 = vld [vmem:[#allocation2 + $0x190] sm:$0xff]
    %v1405 = vld [vmem:[#allocation2 + $0x198] sm:$0xff]
    %v1406 = vld [vmem:[#allocation2 + $0x1a0] sm:$0xff]
    %v1407 = vld [vmem:[#allocation2 + $0x1a8] sm:$0xff]
    %v1408 = vld [vmem:[#allocation2 + $0x1b0] sm:$0xff]
    %v1409 = vld [vmem:[#allocation2 + $0x1b8] sm:$0xff]
    %v1410 = vld [vmem:[#allocation2 + $0x1c0] sm:$0xff]
    %v1411 = vld [vmem:[#allocation2 + $0x1c8] sm:$0xff]
    %v1412 = vld [vmem:[#allocation2 + $0x1d0] sm:$0xff]
    %v1413 = vld [vmem:[#allocation2 + $0x1d8] sm:$0xff]
    %v1414 = vld [vmem:[#allocation2 + $0x1e0] sm:$0xff]
    %v1415 = vld [vmem:[#allocation2 + $0x1e8] sm:$0xff]
    %v1416 = vld [vmem:[#allocation2 + $0x1f0] sm:$0xff]
    %v1417 = vld [vmem:[#allocation2 + $0x1f8] sm:$0xff]
    %v1419 = vperm.slane %v59, 0
    %v1420 = vperm.slane %v59, 1
    %v1421 = vperm.slane %v59, 2
    %v1422 = vperm.slane %v59, 3
    %v1491 = vunpack.c.l.b16 %v1354
    %v1492 = vunpack.c.h.b16 %v1354
    %v1493 = vunpack.c.l.b16 %v1355
    %v1494 = vunpack.c.h.b16 %v1355
    %v1495 = vunpack.c.l.b16 %v1356
    %v1496 = vunpack.c.h.b16 %v1356
    %v1497 = vunpack.c.l.b16 %v1357
    %v1498 = vunpack.c.h.b16 %v1357
    %v1499 = vunpack.c.l.b16 %v1358
    %v1500 = vunpack.c.h.b16 %v1358
    %v1501 = vunpack.c.l.b16 %v1359
    %v1502 = vunpack.c.h.b16 %v1359
    %v1503 = vunpack.c.l.b16 %v1360
    %v1504 = vunpack.c.h.b16 %v1360
    %v1505 = vunpack.c.l.b16 %v1361
    %v1506 = vunpack.c.h.b16 %v1361
    %v1507 = vunpack.c.l.b16 %v1362
    %v1508 = vunpack.c.h.b16 %v1362
    %v1509 = vunpack.c.l.b16 %v1363
    %v1510 = vunpack.c.h.b16 %v1363
    %v1511 = vunpack.c.l.b16 %v1364
    %v1512 = vunpack.c.h.b16 %v1364
    %v1513 = vunpack.c.l.b16 %v1365
    %v1514 = vunpack.c.h.b16 %v1365
    %v1515 = vunpack.c.l.b16 %v1366
    %v1516 = vunpack.c.h.b16 %v1366
    %v1517 = vunpack.c.l.b16 %v1367
    %v1518 = vunpack.c.h.b16 %v1367
    %v1519 = vunpack.c.l.b16 %v1368
    %v1520 = vunpack.c.h.b16 %v1368
    %v1521 = vunpack.c.l.b16 %v1369
    %v1522 = vunpack.c.h.b16 %v1369
    %v1523 = vunpack.c.l.b16 %v1370
    %v1524 = vunpack.c.h.b16 %v1370
    %v1525 = vunpack.c.l.b16 %v1371
    %v1526 = vunpack.c.h.b16 %v1371
    %v1527 = vunpack.c.l.b16 %v1372
    %v1528 = vunpack.c.h.b16 %v1372
    %v1529 = vunpack.c.l.b16 %v1373
    %v1530 = vunpack.c.h.b16 %v1373
    %v1531 = vunpack.c.l.b16 %v1374
    %v1532 = vunpack.c.h.b16 %v1374
    %v1533 = vunpack.c.l.b16 %v1375
    %v1534 = vunpack.c.h.b16 %v1375
    %v1535 = vunpack.c.l.b16 %v1376
    %v1536 = vunpack.c.h.b16 %v1376
    %v1537 = vunpack.c.l.b16 %v1377
    %v1538 = vunpack.c.h.b16 %v1377
    %v1539 = vunpack.c.l.b16 %v1378
    %v1540 = vunpack.c.h.b16 %v1378
    %v1541 = vunpack.c.l.b16 %v1379
    %v1542 = vunpack.c.h.b16 %v1379
    %v1543 = vunpack.c.l.b16 %v1380
    %v1544 = vunpack.c.h.b16 %v1380
    %v1545 = vunpack.c.l.b16 %v1381
    %v1546 = vunpack.c.h.b16 %v1381
    %v1547 = vunpack.c.l.b16 %v1382
    %v1548 = vunpack.c.h.b16 %v1382
    %v1549 = vunpack.c.l.b16 %v1383
    %v1550 = vunpack.c.h.b16 %v1383
    %v1551 = vunpack.c.l.b16 %v1384
    %v1552 = vunpack.c.h.b16 %v1384
    %v1553 = vunpack.c.l.b16 %v1385
    %v1554 = vunpack.c.h.b16 %v1385
    %v1555 = vunpack.c.l.b16 %v1386
    %v1556 = vunpack.c.h.b16 %v1386
    %v1557 = vunpack.c.l.b16 %v1387
    %v1558 = vunpack.c.h.b16 %v1387
    %v1559 = vunpack.c.l.b16 %v1388
    %v1560 = vunpack.c.h.b16 %v1388
    %v1561 = vunpack.c.l.b16 %v1389
    %v1562 = vunpack.c.h.b16 %v1389
    %v1563 = vunpack.c.l.b16 %v1390
    %v1564 = vunpack.c.h.b16 %v1390
    %v1565 = vunpack.c.l.b16 %v1391
    %v1566 = vunpack.c.h.b16 %v1391
    %v1567 = vunpack.c.l.b16 %v1392
    %v1568 = vunpack.c.h.b16 %v1392
    %v1569 = vunpack.c.l.b16 %v1393
    %v1570 = vunpack.c.h.b16 %v1393
    %v1571 = vunpack.c.l.b16 %v1394
    %v1572 = vunpack.c.h.b16 %v1394
    %v1573 = vunpack.c.l.b16 %v1395
    %v1574 = vunpack.c.h.b16 %v1395
    %v1575 = vunpack.c.l.b16 %v1396
    %v1576 = vunpack.c.h.b16 %v1396
    %v1577 = vunpack.c.l.b16 %v1397
    %v1578 = vunpack.c.h.b16 %v1397
    %v1579 = vunpack.c.l.b16 %v1398
    %v1580 = vunpack.c.h.b16 %v1398
    %v1581 = vunpack.c.l.b16 %v1399
    %v1582 = vunpack.c.h.b16 %v1399
    %v1583 = vunpack.c.l.b16 %v1400
    %v1584 = vunpack.c.h.b16 %v1400
    %v1585 = vunpack.c.l.b16 %v1401
    %v1586 = vunpack.c.h.b16 %v1401
    %v1587 = vunpack.c.l.b16 %v1402
    %v1588 = vunpack.c.h.b16 %v1402
    %v1589 = vunpack.c.l.b16 %v1403
    %v1590 = vunpack.c.h.b16 %v1403
    %v1591 = vunpack.c.l.b16 %v1404
    %v1592 = vunpack.c.h.b16 %v1404
    %v1593 = vunpack.c.l.b16 %v1405
    %v1594 = vunpack.c.h.b16 %v1405
    %v1595 = vunpack.c.l.b16 %v1406
    %v1596 = vunpack.c.h.b16 %v1406
    %v1597 = vunpack.c.l.b16 %v1407
    %v1598 = vunpack.c.h.b16 %v1407
    %v1599 = vunpack.c.l.b16 %v1408
    %v1600 = vunpack.c.h.b16 %v1408
    %v1601 = vunpack.c.l.b16 %v1409
    %v1602 = vunpack.c.h.b16 %v1409
    %v1603 = vunpack.c.l.b16 %v1410
    %v1604 = vunpack.c.h.b16 %v1410
    %v1605 = vunpack.c.l.b16 %v1411
    %v1606 = vunpack.c.h.b16 %v1411
    %v1607 = vunpack.c.l.b16 %v1412
    %v1608 = vunpack.c.h.b16 %v1412
    %v1609 = vunpack.c.l.b16 %v1413
    %v1610 = vunpack.c.h.b16 %v1413
    %v1611 = vunpack.c.l.b16 %v1414
    %v1612 = vunpack.c.h.b16 %v1414
    %v1613 = vunpack.c.l.b16 %v1415
    %v1614 = vunpack.c.h.b16 %v1415
    %v1615 = vunpack.c.l.b16 %v1416
    %v1616 = vunpack.c.h.b16 %v1416
    %v1617 = vunpack.c.l.b16 %v1417
    %v1618 = vunpack.c.h.b16 %v1417
    %v1619 = vpack.c.b16 %v1495, %v1491
    %v1620 = vpack.c.b16 %v1496, %v1492
    %v1621 = vpack.c.b16 %v1497, %v1493
    %v1622 = vpack.c.b16 %v1498, %v1494
    %v1623 = vpack.c.b16 %v1503, %v1499
    %v1624 = vpack.c.b16 %v1504, %v1500
    %v1625 = vpack.c.b16 %v1505, %v1501
    %v1626 = vpack.c.b16 %v1506, %v1502
    %v1627 = vpack.c.b16 %v1511, %v1507
    %v1628 = vpack.c.b16 %v1512, %v1508
    %v1629 = vpack.c.b16 %v1513, %v1509
    %v1630 = vpack.c.b16 %v1514, %v1510
    %v1631 = vpack.c.b16 %v1519, %v1515
    %v1632 = vpack.c.b16 %v1520, %v1516
    %v1633 = vpack.c.b16 %v1521, %v1517
    %v1634 = vpack.c.b16 %v1522, %v1518
    %v1635 = vpack.c.b16 %v1527, %v1523
    %v1636 = vpack.c.b16 %v1528, %v1524
    %v1637 = vpack.c.b16 %v1529, %v1525
    %v1638 = vpack.c.b16 %v1530, %v1526
    %v1639 = vpack.c.b16 %v1535, %v1531
    %v1640 = vpack.c.b16 %v1536, %v1532
    %v1641 = vpack.c.b16 %v1537, %v1533
    %v1642 = vpack.c.b16 %v1538, %v1534
    %v1643 = vpack.c.b16 %v1543, %v1539
    %v1644 = vpack.c.b16 %v1544, %v1540
    %v1645 = vpack.c.b16 %v1545, %v1541
    %v1646 = vpack.c.b16 %v1546, %v1542
    %v1647 = vpack.c.b16 %v1551, %v1547
    %v1648 = vpack.c.b16 %v1552, %v1548
    %v1649 = vpack.c.b16 %v1553, %v1549
    %v1650 = vpack.c.b16 %v1554, %v1550
    %v1651 = vpack.c.b16 %v1559, %v1555
    %v1652 = vpack.c.b16 %v1560, %v1556
    %v1653 = vpack.c.b16 %v1561, %v1557
    %v1654 = vpack.c.b16 %v1562, %v1558
    %v1655 = vpack.c.b16 %v1567, %v1563
    %v1656 = vpack.c.b16 %v1568, %v1564
    %v1657 = vpack.c.b16 %v1569, %v1565
    %v1658 = vpack.c.b16 %v1570, %v1566
    %v1659 = vpack.c.b16 %v1575, %v1571
    %v1660 = vpack.c.b16 %v1576, %v1572
    %v1661 = vpack.c.b16 %v1577, %v1573
    %v1662 = vpack.c.b16 %v1578, %v1574
    %v1663 = vpack.c.b16 %v1583, %v1579
    %v1664 = vpack.c.b16 %v1584, %v1580
    %v1665 = vpack.c.b16 %v1585, %v1581
    %v1666 = vpack.c.b16 %v1586, %v1582
    %v1667 = vpack.c.b16 %v1591, %v1587
    %v1668 = vpack.c.b16 %v1592, %v1588
    %v1669 = vpack.c.b16 %v1593, %v1589
    %v1670 = vpack.c.b16 %v1594, %v1590
    %v1671 = vpack.c.b16 %v1599, %v1595
    %v1672 = vpack.c.b16 %v1600, %v1596
    %v1673 = vpack.c.b16 %v1601, %v1597
    %v1674 = vpack.c.b16 %v1602, %v1598
    %v1675 = vpack.c.b16 %v1607, %v1603
    %v1676 = vpack.c.b16 %v1608, %v1604
    %v1677 = vpack.c.b16 %v1609, %v1605
    %v1678 = vpack.c.b16 %v1610, %v1606
    %v1679 = vpack.c.b16 %v1615, %v1611
    %v1680 = vpack.c.b16 %v1616, %v1612
    %v1681 = vpack.c.b16 %v1617, %v1613
    %v1682 = vpack.c.b16 %v1618, %v1614
    %1747 = vmatpush.bf16.msra.mxu0 %v1647
    %1748 = vmatpush.bf16.msra.mxu0 %v1643
    %1749 = vmatpush.bf16.msra.mxu0 %v1639
    %1750 = vmatpush.bf16.msra.mxu0 %v1635
    %1751 = vmatpush.bf16.msra.mxu0 %v1631
    %1752 = vmatpush.bf16.msra.mxu0 %v1627
    %1753 = vmatpush.bf16.msra.mxu0 %v1623
    %1754 = vmatpush.bf16.msra.mxu0 %v1619
    %1755 = vmatmul.bf16.gmra.mxu0 %v1322
    %v1756 = vpop.f32.mrf.mxu0
    %v1757 = vadd.f32 %v1419, %v1756
    %v1758 = vpop.f32.mrf.mxu0
    %v1759 = vadd.f32 %v1419, %v1758
    %1760 = vmatmul.bf16.gmra.mxu0 %v1324
    %v1761 = vpop.f32.mrf.mxu0
    %v1762 = vadd.f32 %v1419, %v1761
    %v1763 = vpop.f32.mrf.mxu0
    %v1764 = vadd.f32 %v1419, %v1763
    %1765 = vmatmul.bf16.gmra.mxu0 %v1326
    %v1766 = vpop.f32.mrf.mxu0
    %v1767 = vadd.f32 %v1419, %v1766
    %v1768 = vpop.f32.mrf.mxu0
    %v1769 = vadd.f32 %v1419, %v1768
    %1770 = vmatmul.bf16.gmra.mxu0 %v1328
    %v1771 = vpop.f32.mrf.mxu0
    %v1772 = vadd.f32 %v1419, %v1771
    %v1773 = vpop.f32.mrf.mxu0
    %v1774 = vadd.f32 %v1419, %v1773
    %1775 = vmatmul.bf16.gmra.mxu0 %v1330
    %v1776 = vpop.f32.mrf.mxu0
    %v1777 = vadd.f32 %v1419, %v1776
    %v1778 = vpop.f32.mrf.mxu0
    %v1779 = vadd.f32 %v1419, %v1778
    %1780 = vmatmul.bf16.gmra.mxu0 %v1332
    %v1781 = vpop.f32.mrf.mxu0
    %v1782 = vadd.f32 %v1419, %v1781
    %v1783 = vpop.f32.mrf.mxu0
    %v1784 = vadd.f32 %v1419, %v1783
    %1785 = vmatmul.bf16.gmra.mxu0 %v1334
    %v1786 = vpop.f32.mrf.mxu0
    %v1787 = vadd.f32 %v1419, %v1786
    %v1788 = vpop.f32.mrf.mxu0
    %v1789 = vadd.f32 %v1419, %v1788
    %1790 = vmatmul.bf16.gmra.mxu0 %v1336
    %v1791 = vpop.f32.mrf.mxu0
    %v1792 = vadd.f32 %v1419, %v1791
    %v1793 = vpop.f32.mrf.mxu0
    %v1794 = vadd.f32 %v1419, %v1793
    %1795 = vmatmul.bf16.gmra.mxu0 %v1338
    %v1796 = vpop.f32.mrf.mxu0
    %v1797 = vadd.f32 %v1419, %v1796
    %v1798 = vpop.f32.mrf.mxu0
    %v1799 = vadd.f32 %v1419, %v1798
    %1800 = vmatmul.bf16.gmra.mxu0 %v1340
    %v1801 = vpop.f32.mrf.mxu0
    %v1802 = vadd.f32 %v1419, %v1801
    %v1803 = vpop.f32.mrf.mxu0
    %v1804 = vadd.f32 %v1419, %v1803
    %1805 = vmatmul.bf16.gmra.mxu0 %v1342
    %v1806 = vpop.f32.mrf.mxu0
    %v1807 = vadd.f32 %v1419, %v1806
    %v1808 = vpop.f32.mrf.mxu0
    %v1809 = vadd.f32 %v1419, %v1808
    %1810 = vmatmul.bf16.gmra.mxu0 %v1344
    %v1811 = vpop.f32.mrf.mxu0
    %v1812 = vadd.f32 %v1419, %v1811
    %v1813 = vpop.f32.mrf.mxu0
    %v1814 = vadd.f32 %v1419, %v1813
    %1815 = vmatmul.bf16.gmra.mxu0 %v1346
    %v1816 = vpop.f32.mrf.mxu0
    %v1817 = vadd.f32 %v1419, %v1816
    %v1818 = vpop.f32.mrf.mxu0
    %v1819 = vadd.f32 %v1419, %v1818
    %1820 = vmatmul.bf16.gmra.mxu0 %v1348
    %v1821 = vpop.f32.mrf.mxu0
    %v1822 = vadd.f32 %v1419, %v1821
    %v1823 = vpop.f32.mrf.mxu0
    %v1824 = vadd.f32 %v1419, %v1823
    %1825 = vmatmul.bf16.gmra.mxu0 %v1350
    %v1826 = vpop.f32.mrf.mxu0
    %v1827 = vadd.f32 %v1419, %v1826
    %v1828 = vpop.f32.mrf.mxu0
    %v1829 = vadd.f32 %v1419, %v1828
    %1830 = vmatmul.bf16.gmra.mxu0 %v1352
    %v1831 = vpop.f32.mrf.mxu0
    %v1832 = vadd.f32 %v1419, %v1831
    %v1833 = vpop.f32.mrf.mxu0
    %v1834 = vadd.f32 %v1419, %v1833
    %1835 = vdwg.mxu0
    %1836 = vmatpush.bf16.msra.mxu0 %v1679
    %1837 = vmatpush.bf16.msra.mxu0 %v1675
    %1838 = vmatpush.bf16.msra.mxu0 %v1671
    %1839 = vmatpush.bf16.msra.mxu0 %v1667
    %1840 = vmatpush.bf16.msra.mxu0 %v1663
    %1841 = vmatpush.bf16.msra.mxu0 %v1659
    %1842 = vmatpush.bf16.msra.mxu0 %v1655
    %1843 = vmatpush.bf16.msra.mxu0 %v1651
    %1844 = vmatmul.bf16.gmra.mxu0 %v1323
    %v1845 = vpop.f32.mrf.mxu0
    %v1846 = vadd.f32 %v1757, %v1845
    %v1847 = vpop.f32.mrf.mxu0
    %v1848 = vadd.f32 %v1759, %v1847
    %1849 = vmatmul.bf16.gmra.mxu0 %v1325
    %v1850 = vpop.f32.mrf.mxu0
    %v1851 = vadd.f32 %v1762, %v1850
    %v1852 = vpop.f32.mrf.mxu0
    %v1853 = vadd.f32 %v1764, %v1852
    %1854 = vmatmul.bf16.gmra.mxu0 %v1327
    %v1855 = vpop.f32.mrf.mxu0
    %v1856 = vadd.f32 %v1767, %v1855
    %v1857 = vpop.f32.mrf.mxu0
    %v1858 = vadd.f32 %v1769, %v1857
    %1859 = vmatmul.bf16.gmra.mxu0 %v1329
    %v1860 = vpop.f32.mrf.mxu0
    %v1861 = vadd.f32 %v1772, %v1860
    %v1862 = vpop.f32.mrf.mxu0
    %v1863 = vadd.f32 %v1774, %v1862
    %1864 = vmatmul.bf16.gmra.mxu0 %v1331
    %v1865 = vpop.f32.mrf.mxu0
    %v1866 = vadd.f32 %v1777, %v1865
    %v1867 = vpop.f32.mrf.mxu0
    %v1868 = vadd.f32 %v1779, %v1867
    %1869 = vmatmul.bf16.gmra.mxu0 %v1333
    %v1870 = vpop.f32.mrf.mxu0
    %v1871 = vadd.f32 %v1782, %v1870
    %v1872 = vpop.f32.mrf.mxu0
    %v1873 = vadd.f32 %v1784, %v1872
    %1874 = vmatmul.bf16.gmra.mxu0 %v1335
    %v1875 = vpop.f32.mrf.mxu0
    %v1876 = vadd.f32 %v1787, %v1875
    %v1877 = vpop.f32.mrf.mxu0
    %v1878 = vadd.f32 %v1789, %v1877
    %1879 = vmatmul.bf16.gmra.mxu0 %v1337
    %v1880 = vpop.f32.mrf.mxu0
    %v1881 = vadd.f32 %v1792, %v1880
    %v1882 = vpop.f32.mrf.mxu0
    %v1883 = vadd.f32 %v1794, %v1882
    %1884 = vmatmul.bf16.gmra.mxu0 %v1339
    %v1885 = vpop.f32.mrf.mxu0
    %v1886 = vadd.f32 %v1797, %v1885
    %v1887 = vpop.f32.mrf.mxu0
    %v1888 = vadd.f32 %v1799, %v1887
    %1889 = vmatmul.bf16.gmra.mxu0 %v1341
    %v1890 = vpop.f32.mrf.mxu0
    %v1891 = vadd.f32 %v1802, %v1890
    %v1892 = vpop.f32.mrf.mxu0
    %v1893 = vadd.f32 %v1804, %v1892
    %1894 = vmatmul.bf16.gmra.mxu0 %v1343
    %v1895 = vpop.f32.mrf.mxu0
    %v1896 = vadd.f32 %v1807, %v1895
    %v1897 = vpop.f32.mrf.mxu0
    %v1898 = vadd.f32 %v1809, %v1897
    %1899 = vmatmul.bf16.gmra.mxu0 %v1345
    %v1900 = vpop.f32.mrf.mxu0
    %v1901 = vadd.f32 %v1812, %v1900
    %v1902 = vpop.f32.mrf.mxu0
    %v1903 = vadd.f32 %v1814, %v1902
    %1904 = vmatmul.bf16.gmra.mxu0 %v1347
    %v1905 = vpop.f32.mrf.mxu0
    %v1906 = vadd.f32 %v1817, %v1905
    %v1907 = vpop.f32.mrf.mxu0
    %v1908 = vadd.f32 %v1819, %v1907
    %1909 = vmatmul.bf16.gmra.mxu0 %v1349
    %v1910 = vpop.f32.mrf.mxu0
    %v1911 = vadd.f32 %v1822, %v1910
    %v1912 = vpop.f32.mrf.mxu0
    %v1913 = vadd.f32 %v1824, %v1912
    %1914 = vmatmul.bf16.gmra.mxu0 %v1351
    %v1915 = vpop.f32.mrf.mxu0
    %v1916 = vadd.f32 %v1827, %v1915
    %v1917 = vpop.f32.mrf.mxu0
    %v1918 = vadd.f32 %v1829, %v1917
    %1919 = vmatmul.bf16.gmra.mxu0 %v1353
    %v1920 = vpop.f32.mrf.mxu0
    %v1921 = vadd.f32 %v1832, %v1920
    %v1922 = vpop.f32.mrf.mxu0
    %v1923 = vadd.f32 %v1834, %v1922
    %1924 = vdwg.mxu0
    %1925 = vmatpush.bf16.msra.mxu0 %v1648
    %1926 = vmatpush.bf16.msra.mxu0 %v1644
    %1927 = vmatpush.bf16.msra.mxu0 %v1640
    %1928 = vmatpush.bf16.msra.mxu0 %v1636
    %1929 = vmatpush.bf16.msra.mxu0 %v1632
    %1930 = vmatpush.bf16.msra.mxu0 %v1628
    %1931 = vmatpush.bf16.msra.mxu0 %v1624
    %1932 = vmatpush.bf16.msra.mxu0 %v1620
    %1933 = vmatmul.bf16.gmra.mxu0 %v1322
    %v1934 = vpop.f32.mrf.mxu0
    %v1935 = vadd.f32 %v1420, %v1934
    %v1936 = vpop.f32.mrf.mxu0
    %v1937 = vadd.f32 %v1420, %v1936
    %1938 = vmatmul.bf16.gmra.mxu0 %v1324
    %v1939 = vpop.f32.mrf.mxu0
    %v1940 = vadd.f32 %v1420, %v1939
    %v1941 = vpop.f32.mrf.mxu0
    %v1942 = vadd.f32 %v1420, %v1941
    %1943 = vmatmul.bf16.gmra.mxu0 %v1326
    %v1944 = vpop.f32.mrf.mxu0
    %v1945 = vadd.f32 %v1420, %v1944
    %v1946 = vpop.f32.mrf.mxu0
    %v1947 = vadd.f32 %v1420, %v1946
    %1948 = vmatmul.bf16.gmra.mxu0 %v1328
    %v1949 = vpop.f32.mrf.mxu0
    %v1950 = vadd.f32 %v1420, %v1949
    %v1951 = vpop.f32.mrf.mxu0
    %v1952 = vadd.f32 %v1420, %v1951
    %1953 = vmatmul.bf16.gmra.mxu0 %v1330
    %v1954 = vpop.f32.mrf.mxu0
    %v1955 = vadd.f32 %v1420, %v1954
    %v1956 = vpop.f32.mrf.mxu0
    %v1957 = vadd.f32 %v1420, %v1956
    %1958 = vmatmul.bf16.gmra.mxu0 %v1332
    %v1959 = vpop.f32.mrf.mxu0
    %v1960 = vadd.f32 %v1420, %v1959
    %v1961 = vpop.f32.mrf.mxu0
    %v1962 = vadd.f32 %v1420, %v1961
    %1963 = vmatmul.bf16.gmra.mxu0 %v1334
    %v1964 = vpop.f32.mrf.mxu0
    %v1965 = vadd.f32 %v1420, %v1964
    %v1966 = vpop.f32.mrf.mxu0
    %v1967 = vadd.f32 %v1420, %v1966
    %1968 = vmatmul.bf16.gmra.mxu0 %v1336
    %v1969 = vpop.f32.mrf.mxu0
    %v1970 = vadd.f32 %v1420, %v1969
    %v1971 = vpop.f32.mrf.mxu0
    %v1972 = vadd.f32 %v1420, %v1971
    %1973 = vmatmul.bf16.gmra.mxu0 %v1338
    %v1974 = vpop.f32.mrf.mxu0
    %v1975 = vadd.f32 %v1420, %v1974
    %v1976 = vpop.f32.mrf.mxu0
    %v1977 = vadd.f32 %v1420, %v1976
    %1978 = vmatmul.bf16.gmra.mxu0 %v1340
    %v1979 = vpop.f32.mrf.mxu0
    %v1980 = vadd.f32 %v1420, %v1979
    %v1981 = vpop.f32.mrf.mxu0
    %v1982 = vadd.f32 %v1420, %v1981
    %1983 = vmatmul.bf16.gmra.mxu0 %v1342
    %v1984 = vpop.f32.mrf.mxu0
    %v1985 = vadd.f32 %v1420, %v1984
    %v1986 = vpop.f32.mrf.mxu0
    %v1987 = vadd.f32 %v1420, %v1986
    %1988 = vmatmul.bf16.gmra.mxu0 %v1344
    %v1989 = vpop.f32.mrf.mxu0
    %v1990 = vadd.f32 %v1420, %v1989
    %v1991 = vpop.f32.mrf.mxu0
    %v1992 = vadd.f32 %v1420, %v1991
    %1993 = vmatmul.bf16.gmra.mxu0 %v1346
    %v1994 = vpop.f32.mrf.mxu0
    %v1995 = vadd.f32 %v1420, %v1994
    %v1996 = vpop.f32.mrf.mxu0
    %v1997 = vadd.f32 %v1420, %v1996
    %1998 = vmatmul.bf16.gmra.mxu0 %v1348
    %v1999 = vpop.f32.mrf.mxu0
    %v2000 = vadd.f32 %v1420, %v1999
    %v2001 = vpop.f32.mrf.mxu0
    %v2002 = vadd.f32 %v1420, %v2001
    %2003 = vmatmul.bf16.gmra.mxu0 %v1350
    %v2004 = vpop.f32.mrf.mxu0
    %v2005 = vadd.f32 %v1420, %v2004
    %v2006 = vpop.f32.mrf.mxu0
    %v2007 = vadd.f32 %v1420, %v2006
    %2008 = vmatmul.bf16.gmra.mxu0 %v1352
    %v2009 = vpop.f32.mrf.mxu0
    %v2010 = vadd.f32 %v1420, %v2009
    %v2011 = vpop.f32.mrf.mxu0
    %v2012 = vadd.f32 %v1420, %v2011
    %2013 = vdwg.mxu0
    %2014 = vmatpush.bf16.msra.mxu0 %v1680
    %2015 = vmatpush.bf16.msra.mxu0 %v1676
    %2016 = vmatpush.bf16.msra.mxu0 %v1672
    %2017 = vmatpush.bf16.msra.mxu0 %v1668
    %2018 = vmatpush.bf16.msra.mxu0 %v1664
    %2019 = vmatpush.bf16.msra.mxu0 %v1660
    %2020 = vmatpush.bf16.msra.mxu0 %v1656
    %2021 = vmatpush.bf16.msra.mxu0 %v1652
    %2022 = vmatmul.bf16.gmra.mxu0 %v1323
    %v2023 = vpop.f32.mrf.mxu0
    %v2024 = vadd.f32 %v1935, %v2023
    %v2025 = vpop.f32.mrf.mxu0
    %v2026 = vadd.f32 %v1937, %v2025
    %2027 = vmatmul.bf16.gmra.mxu0 %v1325
    %v2028 = vpop.f32.mrf.mxu0
    %v2029 = vadd.f32 %v1940, %v2028
    %v2030 = vpop.f32.mrf.mxu0
    %v2031 = vadd.f32 %v1942, %v2030
    %2032 = vmatmul.bf16.gmra.mxu0 %v1327
    %v2033 = vpop.f32.mrf.mxu0
    %v2034 = vadd.f32 %v1945, %v2033
    %v2035 = vpop.f32.mrf.mxu0
    %v2036 = vadd.f32 %v1947, %v2035
    %2037 = vmatmul.bf16.gmra.mxu0 %v1329
    %v2038 = vpop.f32.mrf.mxu0
    %v2039 = vadd.f32 %v1950, %v2038
    %v2040 = vpop.f32.mrf.mxu0
    %v2041 = vadd.f32 %v1952, %v2040
    %2042 = vmatmul.bf16.gmra.mxu0 %v1331
    %v2043 = vpop.f32.mrf.mxu0
    %v2044 = vadd.f32 %v1955, %v2043
    %v2045 = vpop.f32.mrf.mxu0
    %v2046 = vadd.f32 %v1957, %v2045
    %2047 = vmatmul.bf16.gmra.mxu0 %v1333
    %v2048 = vpop.f32.mrf.mxu0
    %v2049 = vadd.f32 %v1960, %v2048
    %v2050 = vpop.f32.mrf.mxu0
    %v2051 = vadd.f32 %v1962, %v2050
    %2052 = vmatmul.bf16.gmra.mxu0 %v1335
    %v2053 = vpop.f32.mrf.mxu0
    %v2054 = vadd.f32 %v1965, %v2053
    %v2055 = vpop.f32.mrf.mxu0
    %v2056 = vadd.f32 %v1967, %v2055
    %2057 = vmatmul.bf16.gmra.mxu0 %v1337
    %v2058 = vpop.f32.mrf.mxu0
    %v2059 = vadd.f32 %v1970, %v2058
    %v2060 = vpop.f32.mrf.mxu0
    %v2061 = vadd.f32 %v1972, %v2060
    %2062 = vmatmul.bf16.gmra.mxu0 %v1339
    %v2063 = vpop.f32.mrf.mxu0
    %v2064 = vadd.f32 %v1975, %v2063
    %v2065 = vpop.f32.mrf.mxu0
    %v2066 = vadd.f32 %v1977, %v2065
    %2067 = vmatmul.bf16.gmra.mxu0 %v1341
    %v2068 = vpop.f32.mrf.mxu0
    %v2069 = vadd.f32 %v1980, %v2068
    %v2070 = vpop.f32.mrf.mxu0
    %v2071 = vadd.f32 %v1982, %v2070
    %2072 = vmatmul.bf16.gmra.mxu0 %v1343
    %v2073 = vpop.f32.mrf.mxu0
    %v2074 = vadd.f32 %v1985, %v2073
    %v2075 = vpop.f32.mrf.mxu0
    %v2076 = vadd.f32 %v1987, %v2075
    %2077 = vmatmul.bf16.gmra.mxu0 %v1345
    %v2078 = vpop.f32.mrf.mxu0
    %v2079 = vadd.f32 %v1990, %v2078
    %v2080 = vpop.f32.mrf.mxu0
    %v2081 = vadd.f32 %v1992, %v2080
    %2082 = vmatmul.bf16.gmra.mxu0 %v1347
    %v2083 = vpop.f32.mrf.mxu0
    %v2084 = vadd.f32 %v1995, %v2083
    %v2085 = vpop.f32.mrf.mxu0
    %v2086 = vadd.f32 %v1997, %v2085
    %2087 = vmatmul.bf16.gmra.mxu0 %v1349
    %v2088 = vpop.f32.mrf.mxu0
    %v2089 = vadd.f32 %v2000, %v2088
    %v2090 = vpop.f32.mrf.mxu0
    %v2091 = vadd.f32 %v2002, %v2090
    %2092 = vmatmul.bf16.gmra.mxu0 %v1351
    %v2093 = vpop.f32.mrf.mxu0
    %v2094 = vadd.f32 %v2005, %v2093
    %v2095 = vpop.f32.mrf.mxu0
    %v2096 = vadd.f32 %v2007, %v2095
    %2097 = vmatmul.bf16.gmra.mxu0 %v1353
    %v2098 = vpop.f32.mrf.mxu0
    %v2099 = vadd.f32 %v2010, %v2098
    %v2100 = vpop.f32.mrf.mxu0
    %v2101 = vadd.f32 %v2012, %v2100
    %2102 = vdwg.mxu0
    %2103 = vmatpush.bf16.msra.mxu0 %v1649
    %2104 = vmatpush.bf16.msra.mxu0 %v1645
    %2105 = vmatpush.bf16.msra.mxu0 %v1641
    %2106 = vmatpush.bf16.msra.mxu0 %v1637
    %2107 = vmatpush.bf16.msra.mxu0 %v1633
    %2108 = vmatpush.bf16.msra.mxu0 %v1629
    %2109 = vmatpush.bf16.msra.mxu0 %v1625
    %2110 = vmatpush.bf16.msra.mxu0 %v1621
    %2111 = vmatmul.bf16.gmra.mxu0 %v1322
    %v2112 = vpop.f32.mrf.mxu0
    %v2113 = vadd.f32 %v1421, %v2112
    %v2114 = vpop.f32.mrf.mxu0
    %v2115 = vadd.f32 %v1421, %v2114
    %2116 = vmatmul.bf16.gmra.mxu0 %v1324
    %v2117 = vpop.f32.mrf.mxu0
    %v2118 = vadd.f32 %v1421, %v2117
    %v2119 = vpop.f32.mrf.mxu0
    %v2120 = vadd.f32 %v1421, %v2119
    %2121 = vmatmul.bf16.gmra.mxu0 %v1326
    %v2122 = vpop.f32.mrf.mxu0
    %v2123 = vadd.f32 %v1421, %v2122
    %v2124 = vpop.f32.mrf.mxu0
    %v2125 = vadd.f32 %v1421, %v2124
    %2126 = vmatmul.bf16.gmra.mxu0 %v1328
    %v2127 = vpop.f32.mrf.mxu0
    %v2128 = vadd.f32 %v1421, %v2127
    %v2129 = vpop.f32.mrf.mxu0
    %v2130 = vadd.f32 %v1421, %v2129
    %2131 = vmatmul.bf16.gmra.mxu0 %v1330
    %v2132 = vpop.f32.mrf.mxu0
    %v2133 = vadd.f32 %v1421, %v2132
    %v2134 = vpop.f32.mrf.mxu0
    %v2135 = vadd.f32 %v1421, %v2134
    %2136 = vmatmul.bf16.gmra.mxu0 %v1332
    %v2137 = vpop.f32.mrf.mxu0
    %v2138 = vadd.f32 %v1421, %v2137
    %v2139 = vpop.f32.mrf.mxu0
    %v2140 = vadd.f32 %v1421, %v2139
    %2141 = vmatmul.bf16.gmra.mxu0 %v1334
    %v2142 = vpop.f32.mrf.mxu0
    %v2143 = vadd.f32 %v1421, %v2142
    %v2144 = vpop.f32.mrf.mxu0
    %v2145 = vadd.f32 %v1421, %v2144
    %2146 = vmatmul.bf16.gmra.mxu0 %v1336
    %v2147 = vpop.f32.mrf.mxu0
    %v2148 = vadd.f32 %v1421, %v2147
    %v2149 = vpop.f32.mrf.mxu0
    %v2150 = vadd.f32 %v1421, %v2149
    %2151 = vmatmul.bf16.gmra.mxu0 %v1338
    %v2152 = vpop.f32.mrf.mxu0
    %v2153 = vadd.f32 %v1421, %v2152
    %v2154 = vpop.f32.mrf.mxu0
    %v2155 = vadd.f32 %v1421, %v2154
    %2156 = vmatmul.bf16.gmra.mxu0 %v1340
    %v2157 = vpop.f32.mrf.mxu0
    %v2158 = vadd.f32 %v1421, %v2157
    %v2159 = vpop.f32.mrf.mxu0
    %v2160 = vadd.f32 %v1421, %v2159
    %2161 = vmatmul.bf16.gmra.mxu0 %v1342
    %v2162 = vpop.f32.mrf.mxu0
    %v2163 = vadd.f32 %v1421, %v2162
    %v2164 = vpop.f32.mrf.mxu0
    %v2165 = vadd.f32 %v1421, %v2164
    %2166 = vmatmul.bf16.gmra.mxu0 %v1344
    %v2167 = vpop.f32.mrf.mxu0
    %v2168 = vadd.f32 %v1421, %v2167
    %v2169 = vpop.f32.mrf.mxu0
    %v2170 = vadd.f32 %v1421, %v2169
    %2171 = vmatmul.bf16.gmra.mxu0 %v1346
    %v2172 = vpop.f32.mrf.mxu0
    %v2173 = vadd.f32 %v1421, %v2172
    %v2174 = vpop.f32.mrf.mxu0
    %v2175 = vadd.f32 %v1421, %v2174
    %2176 = vmatmul.bf16.gmra.mxu0 %v1348
    %v2177 = vpop.f32.mrf.mxu0
    %v2178 = vadd.f32 %v1421, %v2177
    %v2179 = vpop.f32.mrf.mxu0
    %v2180 = vadd.f32 %v1421, %v2179
    %2181 = vmatmul.bf16.gmra.mxu0 %v1350
    %v2182 = vpop.f32.mrf.mxu0
    %v2183 = vadd.f32 %v1421, %v2182
    %v2184 = vpop.f32.mrf.mxu0
    %v2185 = vadd.f32 %v1421, %v2184
    %2186 = vmatmul.bf16.gmra.mxu0 %v1352
    %v2187 = vpop.f32.mrf.mxu0
    %v2188 = vadd.f32 %v1421, %v2187
    %v2189 = vpop.f32.mrf.mxu0
    %v2190 = vadd.f32 %v1421, %v2189
    %2191 = vdwg.mxu0
    %2192 = vmatpush.bf16.msra.mxu0 %v1681
    %2193 = vmatpush.bf16.msra.mxu0 %v1677
    %2194 = vmatpush.bf16.msra.mxu0 %v1673
    %2195 = vmatpush.bf16.msra.mxu0 %v1669
    %2196 = vmatpush.bf16.msra.mxu0 %v1665
    %2197 = vmatpush.bf16.msra.mxu0 %v1661
    %2198 = vmatpush.bf16.msra.mxu0 %v1657
    %2199 = vmatpush.bf16.msra.mxu0 %v1653
    %2200 = vmatmul.bf16.gmra.mxu0 %v1323
    %v2201 = vpop.f32.mrf.mxu0
    %v2202 = vadd.f32 %v2113, %v2201
    %v2203 = vpop.f32.mrf.mxu0
    %v2204 = vadd.f32 %v2115, %v2203
    %2205 = vmatmul.bf16.gmra.mxu0 %v1325
    %v2206 = vpop.f32.mrf.mxu0
    %v2207 = vadd.f32 %v2118, %v2206
    %v2208 = vpop.f32.mrf.mxu0
    %v2209 = vadd.f32 %v2120, %v2208
    %2210 = vmatmul.bf16.gmra.mxu0 %v1327
    %v2211 = vpop.f32.mrf.mxu0
    %v2212 = vadd.f32 %v2123, %v2211
    %v2213 = vpop.f32.mrf.mxu0
    %v2214 = vadd.f32 %v2125, %v2213
    %2215 = vmatmul.bf16.gmra.mxu0 %v1329
    %v2216 = vpop.f32.mrf.mxu0
    %v2217 = vadd.f32 %v2128, %v2216
    %v2218 = vpop.f32.mrf.mxu0
    %v2219 = vadd.f32 %v2130, %v2218
    %2220 = vmatmul.bf16.gmra.mxu0 %v1331
    %v2221 = vpop.f32.mrf.mxu0
    %v2222 = vadd.f32 %v2133, %v2221
    %v2223 = vpop.f32.mrf.mxu0
    %v2224 = vadd.f32 %v2135, %v2223
    %2225 = vmatmul.bf16.gmra.mxu0 %v1333
    %v2226 = vpop.f32.mrf.mxu0
    %v2227 = vadd.f32 %v2138, %v2226
    %v2228 = vpop.f32.mrf.mxu0
    %v2229 = vadd.f32 %v2140, %v2228
    %2230 = vmatmul.bf16.gmra.mxu0 %v1335
    %v2231 = vpop.f32.mrf.mxu0
    %v2232 = vadd.f32 %v2143, %v2231
    %v2233 = vpop.f32.mrf.mxu0
    %v2234 = vadd.f32 %v2145, %v2233
    %2235 = vmatmul.bf16.gmra.mxu0 %v1337
    %v2236 = vpop.f32.mrf.mxu0
    %v2237 = vadd.f32 %v2148, %v2236
    %v2238 = vpop.f32.mrf.mxu0
    %v2239 = vadd.f32 %v2150, %v2238
    %2240 = vmatmul.bf16.gmra.mxu0 %v1339
    %v2241 = vpop.f32.mrf.mxu0
    %v2242 = vadd.f32 %v2153, %v2241
    %v2243 = vpop.f32.mrf.mxu0
    %v2244 = vadd.f32 %v2155, %v2243
    %2245 = vmatmul.bf16.gmra.mxu0 %v1341
    %v2246 = vpop.f32.mrf.mxu0
    %v2247 = vadd.f32 %v2158, %v2246
    %v2248 = vpop.f32.mrf.mxu0
    %v2249 = vadd.f32 %v2160, %v2248
    %2250 = vmatmul.bf16.gmra.mxu0 %v1343
    %v2251 = vpop.f32.mrf.mxu0
    %v2252 = vadd.f32 %v2163, %v2251
    %v2253 = vpop.f32.mrf.mxu0
    %v2254 = vadd.f32 %v2165, %v2253
    %2255 = vmatmul.bf16.gmra.mxu0 %v1345
    %v2256 = vpop.f32.mrf.mxu0
    %v2257 = vadd.f32 %v2168, %v2256
    %v2258 = vpop.f32.mrf.mxu0
    %v2259 = vadd.f32 %v2170, %v2258
    %2260 = vmatmul.bf16.gmra.mxu0 %v1347
    %v2261 = vpop.f32.mrf.mxu0
    %v2262 = vadd.f32 %v2173, %v2261
    %v2263 = vpop.f32.mrf.mxu0
    %v2264 = vadd.f32 %v2175, %v2263
    %2265 = vmatmul.bf16.gmra.mxu0 %v1349
    %v2266 = vpop.f32.mrf.mxu0
    %v2267 = vadd.f32 %v2178, %v2266
    %v2268 = vpop.f32.mrf.mxu0
    %v2269 = vadd.f32 %v2180, %v2268
    %2270 = vmatmul.bf16.gmra.mxu0 %v1351
    %v2271 = vpop.f32.mrf.mxu0
    %v2272 = vadd.f32 %v2183, %v2271
    %v2273 = vpop.f32.mrf.mxu0
    %v2274 = vadd.f32 %v2185, %v2273
    %2275 = vmatmul.bf16.gmra.mxu0 %v1353
    %v2276 = vpop.f32.mrf.mxu0
    %v2277 = vadd.f32 %v2188, %v2276
    %v2278 = vpop.f32.mrf.mxu0
    %v2279 = vadd.f32 %v2190, %v2278
    %2280 = vdwg.mxu0
    %2281 = vmatpush.bf16.msra.mxu0 %v1650
    %2282 = vmatpush.bf16.msra.mxu0 %v1646
    %2283 = vmatpush.bf16.msra.mxu0 %v1642
    %2284 = vmatpush.bf16.msra.mxu0 %v1638
    %2285 = vmatpush.bf16.msra.mxu0 %v1634
    %2286 = vmatpush.bf16.msra.mxu0 %v1630
    %2287 = vmatpush.bf16.msra.mxu0 %v1626
    %2288 = vmatpush.bf16.msra.mxu0 %v1622
    %2289 = vmatmul.bf16.gmra.mxu0 %v1322
    %v2290 = vpop.f32.mrf.mxu0
    %v2291 = vadd.f32 %v1422, %v2290
    %v2292 = vpop.f32.mrf.mxu0
    %v2293 = vadd.f32 %v1422, %v2292
    %2294 = vmatmul.bf16.gmra.mxu0 %v1324
    %v2295 = vpop.f32.mrf.mxu0
    %v2296 = vadd.f32 %v1422, %v2295
    %v2297 = vpop.f32.mrf.mxu0
    %v2298 = vadd.f32 %v1422, %v2297
    %2299 = vmatmul.bf16.gmra.mxu0 %v1326
    %v2300 = vpop.f32.mrf.mxu0
    %v2301 = vadd.f32 %v1422, %v2300
    %v2302 = vpop.f32.mrf.mxu0
    %v2303 = vadd.f32 %v1422, %v2302
    %2304 = vmatmul.bf16.gmra.mxu0 %v1328
    %v2305 = vpop.f32.mrf.mxu0
    %v2306 = vadd.f32 %v1422, %v2305
    %v2307 = vpop.f32.mrf.mxu0
    %v2308 = vadd.f32 %v1422, %v2307
    %2309 = vmatmul.bf16.gmra.mxu0 %v1330
    %v2310 = vpop.f32.mrf.mxu0
    %v2311 = vadd.f32 %v1422, %v2310
    %v2312 = vpop.f32.mrf.mxu0
    %v2313 = vadd.f32 %v1422, %v2312
    %2314 = vmatmul.bf16.gmra.mxu0 %v1332
    %v2315 = vpop.f32.mrf.mxu0
    %v2316 = vadd.f32 %v1422, %v2315
    %v2317 = vpop.f32.mrf.mxu0
    %v2318 = vadd.f32 %v1422, %v2317
    %2319 = vmatmul.bf16.gmra.mxu0 %v1334
    %v2320 = vpop.f32.mrf.mxu0
    %v2321 = vadd.f32 %v1422, %v2320
    %v2322 = vpop.f32.mrf.mxu0
    %v2323 = vadd.f32 %v1422, %v2322
    %2324 = vmatmul.bf16.gmra.mxu0 %v1336
    %v2325 = vpop.f32.mrf.mxu0
    %v2326 = vadd.f32 %v1422, %v2325
    %v2327 = vpop.f32.mrf.mxu0
    %v2328 = vadd.f32 %v1422, %v2327
    %2329 = vmatmul.bf16.gmra.mxu0 %v1338
    %v2330 = vpop.f32.mrf.mxu0
    %v2331 = vadd.f32 %v1422, %v2330
    %v2332 = vpop.f32.mrf.mxu0
    %v2333 = vadd.f32 %v1422, %v2332
    %2334 = vmatmul.bf16.gmra.mxu0 %v1340
    %v2335 = vpop.f32.mrf.mxu0
    %v2336 = vadd.f32 %v1422, %v2335
    %v2337 = vpop.f32.mrf.mxu0
    %v2338 = vadd.f32 %v1422, %v2337
    %2339 = vmatmul.bf16.gmra.mxu0 %v1342
    %v2340 = vpop.f32.mrf.mxu0
    %v2341 = vadd.f32 %v1422, %v2340
    %v2342 = vpop.f32.mrf.mxu0
    %v2343 = vadd.f32 %v1422, %v2342
    %2344 = vmatmul.bf16.gmra.mxu0 %v1344
    %v2345 = vpop.f32.mrf.mxu0
    %v2346 = vadd.f32 %v1422, %v2345
    %v2347 = vpop.f32.mrf.mxu0
    %v2348 = vadd.f32 %v1422, %v2347
    %2349 = vmatmul.bf16.gmra.mxu0 %v1346
    %v2350 = vpop.f32.mrf.mxu0
    %v2351 = vadd.f32 %v1422, %v2350
    %v2352 = vpop.f32.mrf.mxu0
    %v2353 = vadd.f32 %v1422, %v2352
    %2354 = vmatmul.bf16.gmra.mxu0 %v1348
    %v2355 = vpop.f32.mrf.mxu0
    %v2356 = vadd.f32 %v1422, %v2355
    %v2357 = vpop.f32.mrf.mxu0
    %v2358 = vadd.f32 %v1422, %v2357
    %2359 = vmatmul.bf16.gmra.mxu0 %v1350
    %v2360 = vpop.f32.mrf.mxu0
    %v2361 = vadd.f32 %v1422, %v2360
    %v2362 = vpop.f32.mrf.mxu0
    %v2363 = vadd.f32 %v1422, %v2362
    %2364 = vmatmul.bf16.gmra.mxu0 %v1352
    %v2365 = vpop.f32.mrf.mxu0
    %v2366 = vadd.f32 %v1422, %v2365
    %v2367 = vpop.f32.mrf.mxu0
    %v2368 = vadd.f32 %v1422, %v2367
    %2369 = vdwg.mxu0
    %2370 = vmatpush.bf16.msra.mxu0 %v1682
    %2371 = vmatpush.bf16.msra.mxu0 %v1678
    %2372 = vmatpush.bf16.msra.mxu0 %v1674
    %2373 = vmatpush.bf16.msra.mxu0 %v1670
    %2374 = vmatpush.bf16.msra.mxu0 %v1666
    %2375 = vmatpush.bf16.msra.mxu0 %v1662
    %2376 = vmatpush.bf16.msra.mxu0 %v1658
    %2377 = vmatpush.bf16.msra.mxu0 %v1654
    %2378 = vmatmul.bf16.gmra.mxu0 %v1323
    %v2379 = vpop.f32.mrf.mxu0
    %v2380 = vadd.f32 %v2291, %v2379
    %v2381 = vpop.f32.mrf.mxu0
    %v2382 = vadd.f32 %v2293, %v2381
    %2383 = vmatmul.bf16.gmra.mxu0 %v1325
    %v2384 = vpop.f32.mrf.mxu0
    %v2385 = vadd.f32 %v2296, %v2384
    %v2386 = vpop.f32.mrf.mxu0
    %v2387 = vadd.f32 %v2298, %v2386
    %2388 = vmatmul.bf16.gmra.mxu0 %v1327
    %v2389 = vpop.f32.mrf.mxu0
    %v2390 = vadd.f32 %v2301, %v2389
    %v2391 = vpop.f32.mrf.mxu0
    %v2392 = vadd.f32 %v2303, %v2391
    %2393 = vmatmul.bf16.gmra.mxu0 %v1329
    %v2394 = vpop.f32.mrf.mxu0
    %v2395 = vadd.f32 %v2306, %v2394
    %v2396 = vpop.f32.mrf.mxu0
    %v2397 = vadd.f32 %v2308, %v2396
    %2398 = vmatmul.bf16.gmra.mxu0 %v1331
    %v2399 = vpop.f32.mrf.mxu0
    %v2400 = vadd.f32 %v2311, %v2399
    %v2401 = vpop.f32.mrf.mxu0
    %v2402 = vadd.f32 %v2313, %v2401
    %2403 = vmatmul.bf16.gmra.mxu0 %v1333
    %v2404 = vpop.f32.mrf.mxu0
    %v2405 = vadd.f32 %v2316, %v2404
    %v2406 = vpop.f32.mrf.mxu0
    %v2407 = vadd.f32 %v2318, %v2406
    %2408 = vmatmul.bf16.gmra.mxu0 %v1335
    %v2409 = vpop.f32.mrf.mxu0
    %v2410 = vadd.f32 %v2321, %v2409
    %v2411 = vpop.f32.mrf.mxu0
    %v2412 = vadd.f32 %v2323, %v2411
    %2413 = vmatmul.bf16.gmra.mxu0 %v1337
    %v2414 = vpop.f32.mrf.mxu0
    %v2415 = vadd.f32 %v2326, %v2414
    %v2416 = vpop.f32.mrf.mxu0
    %v2417 = vadd.f32 %v2328, %v2416
    %2418 = vmatmul.bf16.gmra.mxu0 %v1339
    %v2419 = vpop.f32.mrf.mxu0
    %v2420 = vadd.f32 %v2331, %v2419
    %v2421 = vpop.f32.mrf.mxu0
    %v2422 = vadd.f32 %v2333, %v2421
    %2423 = vmatmul.bf16.gmra.mxu0 %v1341
    %v2424 = vpop.f32.mrf.mxu0
    %v2425 = vadd.f32 %v2336, %v2424
    %v2426 = vpop.f32.mrf.mxu0
    %v2427 = vadd.f32 %v2338, %v2426
    %2428 = vmatmul.bf16.gmra.mxu0 %v1343
    %v2429 = vpop.f32.mrf.mxu0
    %v2430 = vadd.f32 %v2341, %v2429
    %v2431 = vpop.f32.mrf.mxu0
    %v2432 = vadd.f32 %v2343, %v2431
    %2433 = vmatmul.bf16.gmra.mxu0 %v1345
    %v2434 = vpop.f32.mrf.mxu0
    %v2435 = vadd.f32 %v2346, %v2434
    %v2436 = vpop.f32.mrf.mxu0
    %v2437 = vadd.f32 %v2348, %v2436
    %2438 = vmatmul.bf16.gmra.mxu0 %v1347
    %v2439 = vpop.f32.mrf.mxu0
    %v2440 = vadd.f32 %v2351, %v2439
    %v2441 = vpop.f32.mrf.mxu0
    %v2442 = vadd.f32 %v2353, %v2441
    %2443 = vmatmul.bf16.gmra.mxu0 %v1349
    %v2444 = vpop.f32.mrf.mxu0
    %v2445 = vadd.f32 %v2356, %v2444
    %v2446 = vpop.f32.mrf.mxu0
    %v2447 = vadd.f32 %v2358, %v2446
    %2448 = vmatmul.bf16.gmra.mxu0 %v1351
    %v2449 = vpop.f32.mrf.mxu0
    %v2450 = vadd.f32 %v2361, %v2449
    %v2451 = vpop.f32.mrf.mxu0
    %v2452 = vadd.f32 %v2363, %v2451
    %2453 = vmatmul.bf16.gmra.mxu0 %v1353
    %v2454 = vpop.f32.mrf.mxu0
    %v2455 = vadd.f32 %v2366, %v2454
    %v2456 = vpop.f32.mrf.mxu0
    %v2457 = vadd.f32 %v2368, %v2456
    %2458 = vdwg.mxu0
    %vm2459 = vcmp.ge.f32.partialorder %v1846, 0.0
    %vm2460 = vcmp.ge.f32.partialorder %v2024, 0.0
    %vm2461 = vcmp.ge.f32.partialorder %v2202, 0.0
    %vm2462 = vcmp.ge.f32.partialorder %v2380, 0.0
    %vm2463 = vcmp.ge.f32.partialorder %v1848, 0.0
    %vm2464 = vcmp.ge.f32.partialorder %v2026, 0.0
    %vm2465 = vcmp.ge.f32.partialorder %v2204, 0.0
    %vm2466 = vcmp.ge.f32.partialorder %v2382, 0.0
    %vm2467 = vcmp.ge.f32.partialorder %v1851, 0.0
    %vm2468 = vcmp.ge.f32.partialorder %v2029, 0.0
    %vm2469 = vcmp.ge.f32.partialorder %v2207, 0.0
    %vm2470 = vcmp.ge.f32.partialorder %v2385, 0.0
    %vm2471 = vcmp.ge.f32.partialorder %v1853, 0.0
    %vm2472 = vcmp.ge.f32.partialorder %v2031, 0.0
    %vm2473 = vcmp.ge.f32.partialorder %v2209, 0.0
    %vm2474 = vcmp.ge.f32.partialorder %v2387, 0.0
    %vm2475 = vcmp.ge.f32.partialorder %v1856, 0.0
    %vm2476 = vcmp.ge.f32.partialorder %v2034, 0.0
    %vm2477 = vcmp.ge.f32.partialorder %v2212, 0.0
    %vm2478 = vcmp.ge.f32.partialorder %v2390, 0.0
    %vm2479 = vcmp.ge.f32.partialorder %v1858, 0.0
    %vm2480 = vcmp.ge.f32.partialorder %v2036, 0.0
    %vm2481 = vcmp.ge.f32.partialorder %v2214, 0.0
    %vm2482 = vcmp.ge.f32.partialorder %v2392, 0.0
    %vm2483 = vcmp.ge.f32.partialorder %v1861, 0.0
    %vm2484 = vcmp.ge.f32.partialorder %v2039, 0.0
    %vm2485 = vcmp.ge.f32.partialorder %v2217, 0.0
    %vm2486 = vcmp.ge.f32.partialorder %v2395, 0.0
    %vm2487 = vcmp.ge.f32.partialorder %v1863, 0.0
    %vm2488 = vcmp.ge.f32.partialorder %v2041, 0.0
    %vm2489 = vcmp.ge.f32.partialorder %v2219, 0.0
    %vm2490 = vcmp.ge.f32.partialorder %v2397, 0.0
    %vm2491 = vcmp.ge.f32.partialorder %v1866, 0.0
    %vm2492 = vcmp.ge.f32.partialorder %v2044, 0.0
    %vm2493 = vcmp.ge.f32.partialorder %v2222, 0.0
    %vm2494 = vcmp.ge.f32.partialorder %v2400, 0.0
    %vm2495 = vcmp.ge.f32.partialorder %v1868, 0.0
    %vm2496 = vcmp.ge.f32.partialorder %v2046, 0.0
    %vm2497 = vcmp.ge.f32.partialorder %v2224, 0.0
    %vm2498 = vcmp.ge.f32.partialorder %v2402, 0.0
    %vm2499 = vcmp.ge.f32.partialorder %v1871, 0.0
    %vm2500 = vcmp.ge.f32.partialorder %v2049, 0.0
    %vm2501 = vcmp.ge.f32.partialorder %v2227, 0.0
    %vm2502 = vcmp.ge.f32.partialorder %v2405, 0.0
    %vm2503 = vcmp.ge.f32.partialorder %v1873, 0.0
    %vm2504 = vcmp.ge.f32.partialorder %v2051, 0.0
    %vm2505 = vcmp.ge.f32.partialorder %v2229, 0.0
    %vm2506 = vcmp.ge.f32.partialorder %v2407, 0.0
    %vm2507 = vcmp.ge.f32.partialorder %v1876, 0.0
    %vm2508 = vcmp.ge.f32.partialorder %v2054, 0.0
    %vm2509 = vcmp.ge.f32.partialorder %v2232, 0.0
    %vm2510 = vcmp.ge.f32.partialorder %v2410, 0.0
    %vm2511 = vcmp.ge.f32.partialorder %v1878, 0.0
    %vm2512 = vcmp.ge.f32.partialorder %v2056, 0.0
    %vm2513 = vcmp.ge.f32.partialorder %v2234, 0.0
    %vm2514 = vcmp.ge.f32.partialorder %v2412, 0.0
    %vm2515 = vcmp.ge.f32.partialorder %v1881, 0.0
    %vm2516 = vcmp.ge.f32.partialorder %v2059, 0.0
    %vm2517 = vcmp.ge.f32.partialorder %v2237, 0.0
    %vm2518 = vcmp.ge.f32.partialorder %v2415, 0.0
    %vm2519 = vcmp.ge.f32.partialorder %v1883, 0.0
    %vm2520 = vcmp.ge.f32.partialorder %v2061, 0.0
    %vm2521 = vcmp.ge.f32.partialorder %v2239, 0.0
    %vm2522 = vcmp.ge.f32.partialorder %v2417, 0.0
    %vm2523 = vcmp.ge.f32.partialorder %v1886, 0.0
    %vm2524 = vcmp.ge.f32.partialorder %v2064, 0.0
    %vm2525 = vcmp.ge.f32.partialorder %v2242, 0.0
    %vm2526 = vcmp.ge.f32.partialorder %v2420, 0.0
    %vm2527 = vcmp.ge.f32.partialorder %v1888, 0.0
    %vm2528 = vcmp.ge.f32.partialorder %v2066, 0.0
    %vm2529 = vcmp.ge.f32.partialorder %v2244, 0.0
    %vm2530 = vcmp.ge.f32.partialorder %v2422, 0.0
    %vm2531 = vcmp.ge.f32.partialorder %v1891, 0.0
    %vm2532 = vcmp.ge.f32.partialorder %v2069, 0.0
    %vm2533 = vcmp.ge.f32.partialorder %v2247, 0.0
    %vm2534 = vcmp.ge.f32.partialorder %v2425, 0.0
    %vm2535 = vcmp.ge.f32.partialorder %v1893, 0.0
    %vm2536 = vcmp.ge.f32.partialorder %v2071, 0.0
    %vm2537 = vcmp.ge.f32.partialorder %v2249, 0.0
    %vm2538 = vcmp.ge.f32.partialorder %v2427, 0.0
    %vm2539 = vcmp.ge.f32.partialorder %v1896, 0.0
    %vm2540 = vcmp.ge.f32.partialorder %v2074, 0.0
    %vm2541 = vcmp.ge.f32.partialorder %v2252, 0.0
    %vm2542 = vcmp.ge.f32.partialorder %v2430, 0.0
    %vm2543 = vcmp.ge.f32.partialorder %v1898, 0.0
    %vm2544 = vcmp.ge.f32.partialorder %v2076, 0.0
    %vm2545 = vcmp.ge.f32.partialorder %v2254, 0.0
    %vm2546 = vcmp.ge.f32.partialorder %v2432, 0.0
    %vm2547 = vcmp.ge.f32.partialorder %v1901, 0.0
    %vm2548 = vcmp.ge.f32.partialorder %v2079, 0.0
    %vm2549 = vcmp.ge.f32.partialorder %v2257, 0.0
    %vm2550 = vcmp.ge.f32.partialorder %v2435, 0.0
    %vm2551 = vcmp.ge.f32.partialorder %v1903, 0.0
    %vm2552 = vcmp.ge.f32.partialorder %v2081, 0.0
    %vm2553 = vcmp.ge.f32.partialorder %v2259, 0.0
    %vm2554 = vcmp.ge.f32.partialorder %v2437, 0.0
    %vm2555 = vcmp.ge.f32.partialorder %v1906, 0.0
    %vm2556 = vcmp.ge.f32.partialorder %v2084, 0.0
    %vm2557 = vcmp.ge.f32.partialorder %v2262, 0.0
    %vm2558 = vcmp.ge.f32.partialorder %v2440, 0.0
    %vm2559 = vcmp.ge.f32.partialorder %v1908, 0.0
    %vm2560 = vcmp.ge.f32.partialorder %v2086, 0.0
    %vm2561 = vcmp.ge.f32.partialorder %v2264, 0.0
    %vm2562 = vcmp.ge.f32.partialorder %v2442, 0.0
    %vm2563 = vcmp.ge.f32.partialorder %v1911, 0.0
    %vm2564 = vcmp.ge.f32.partialorder %v2089, 0.0
    %vm2565 = vcmp.ge.f32.partialorder %v2267, 0.0
    %vm2566 = vcmp.ge.f32.partialorder %v2445, 0.0
    %vm2567 = vcmp.ge.f32.partialorder %v1913, 0.0
    %vm2568 = vcmp.ge.f32.partialorder %v2091, 0.0
    %vm2569 = vcmp.ge.f32.partialorder %v2269, 0.0
    %vm2570 = vcmp.ge.f32.partialorder %v2447, 0.0
    %vm2571 = vcmp.ge.f32.partialorder %v1916, 0.0
    %vm2572 = vcmp.ge.f32.partialorder %v2094, 0.0
    %vm2573 = vcmp.ge.f32.partialorder %v2272, 0.0
    %vm2574 = vcmp.ge.f32.partialorder %v2450, 0.0
    %vm2575 = vcmp.ge.f32.partialorder %v1918, 0.0
    %vm2576 = vcmp.ge.f32.partialorder %v2096, 0.0
    %vm2577 = vcmp.ge.f32.partialorder %v2274, 0.0
    %vm2578 = vcmp.ge.f32.partialorder %v2452, 0.0
    %vm2579 = vcmp.ge.f32.partialorder %v1921, 0.0
    %vm2580 = vcmp.ge.f32.partialorder %v2099, 0.0
    %vm2581 = vcmp.ge.f32.partialorder %v2277, 0.0
    %vm2582 = vcmp.ge.f32.partialorder %v2455, 0.0
    %vm2583 = vcmp.ge.f32.partialorder %v1923, 0.0
    %vm2584 = vcmp.ge.f32.partialorder %v2101, 0.0
    %vm2585 = vcmp.ge.f32.partialorder %v2279, 0.0
    %vm2586 = vcmp.ge.f32.partialorder %v2457, 0.0
    %v2587 = vmul.f32 %v1846, 0.01
    %v2588 = vmul.f32 %v2024, 0.01
    %v2589 = vmul.f32 %v2202, 0.01
    %v2590 = vmul.f32 %v2380, 0.01
    %v2591 = vmul.f32 %v1848, 0.01
    %v2592 = vmul.f32 %v2026, 0.01
    %v2593 = vmul.f32 %v2204, 0.01
    %v2594 = vmul.f32 %v2382, 0.01
    %v2595 = vmul.f32 %v1851, 0.01
    %v2596 = vmul.f32 %v2029, 0.01
    %v2597 = vmul.f32 %v2207, 0.01
    %v2598 = vmul.f32 %v2385, 0.01
    %v2599 = vmul.f32 %v1853, 0.01
    %v2600 = vmul.f32 %v2031, 0.01
    %v2601 = vmul.f32 %v2209, 0.01
    %v2602 = vmul.f32 %v2387, 0.01
    %v2603 = vmul.f32 %v1856, 0.01
    %v2604 = vmul.f32 %v2034, 0.01
    %v2605 = vmul.f32 %v2212, 0.01
    %v2606 = vmul.f32 %v2390, 0.01
    %v2607 = vmul.f32 %v1858, 0.01
    %v2608 = vmul.f32 %v2036, 0.01
    %v2609 = vmul.f32 %v2214, 0.01
    %v2610 = vmul.f32 %v2392, 0.01
    %v2611 = vmul.f32 %v1861, 0.01
    %v2612 = vmul.f32 %v2039, 0.01
    %v2613 = vmul.f32 %v2217, 0.01
    %v2614 = vmul.f32 %v2395, 0.01
    %v2615 = vmul.f32 %v1863, 0.01
    %v2616 = vmul.f32 %v2041, 0.01
    %v2617 = vmul.f32 %v2219, 0.01
    %v2618 = vmul.f32 %v2397, 0.01
    %v2619 = vmul.f32 %v1866, 0.01
    %v2620 = vmul.f32 %v2044, 0.01
    %v2621 = vmul.f32 %v2222, 0.01
    %v2622 = vmul.f32 %v2400, 0.01
    %v2623 = vmul.f32 %v1868, 0.01
    %v2624 = vmul.f32 %v2046, 0.01
    %v2625 = vmul.f32 %v2224, 0.01
    %v2626 = vmul.f32 %v2402, 0.01
    %v2627 = vmul.f32 %v1871, 0.01
    %v2628 = vmul.f32 %v2049, 0.01
    %v2629 = vmul.f32 %v2227, 0.01
    %v2630 = vmul.f32 %v2405, 0.01
    %v2631 = vmul.f32 %v1873, 0.01
    %v2632 = vmul.f32 %v2051, 0.01
    %v2633 = vmul.f32 %v2229, 0.01
    %v2634 = vmul.f32 %v2407, 0.01
    %v2635 = vmul.f32 %v1876, 0.01
    %v2636 = vmul.f32 %v2054, 0.01
    %v2637 = vmul.f32 %v2232, 0.01
    %v2638 = vmul.f32 %v2410, 0.01
    %v2639 = vmul.f32 %v1878, 0.01
    %v2640 = vmul.f32 %v2056, 0.01
    %v2641 = vmul.f32 %v2234, 0.01
    %v2642 = vmul.f32 %v2412, 0.01
    %v2643 = vmul.f32 %v1881, 0.01
    %v2644 = vmul.f32 %v2059, 0.01
    %v2645 = vmul.f32 %v2237, 0.01
    %v2646 = vmul.f32 %v2415, 0.01
    %v2647 = vmul.f32 %v1883, 0.01
    %v2648 = vmul.f32 %v2061, 0.01
    %v2649 = vmul.f32 %v2239, 0.01
    %v2650 = vmul.f32 %v2417, 0.01
    %v2651 = vmul.f32 %v1886, 0.01
    %v2652 = vmul.f32 %v2064, 0.01
    %v2653 = vmul.f32 %v2242, 0.01
    %v2654 = vmul.f32 %v2420, 0.01
    %v2655 = vmul.f32 %v1888, 0.01
    %v2656 = vmul.f32 %v2066, 0.01
    %v2657 = vmul.f32 %v2244, 0.01
    %v2658 = vmul.f32 %v2422, 0.01
    %v2659 = vmul.f32 %v1891, 0.01
    %v2660 = vmul.f32 %v2069, 0.01
    %v2661 = vmul.f32 %v2247, 0.01
    %v2662 = vmul.f32 %v2425, 0.01
    %v2663 = vmul.f32 %v1893, 0.01
    %v2664 = vmul.f32 %v2071, 0.01
    %v2665 = vmul.f32 %v2249, 0.01
    %v2666 = vmul.f32 %v2427, 0.01
    %v2667 = vmul.f32 %v1896, 0.01
    %v2668 = vmul.f32 %v2074, 0.01
    %v2669 = vmul.f32 %v2252, 0.01
    %v2670 = vmul.f32 %v2430, 0.01
    %v2671 = vmul.f32 %v1898, 0.01
    %v2672 = vmul.f32 %v2076, 0.01
    %v2673 = vmul.f32 %v2254, 0.01
    %v2674 = vmul.f32 %v2432, 0.01
    %v2675 = vmul.f32 %v1901, 0.01
    %v2676 = vmul.f32 %v2079, 0.01
    %v2677 = vmul.f32 %v2257, 0.01
    %v2678 = vmul.f32 %v2435, 0.01
    %v2679 = vmul.f32 %v1903, 0.01
    %v2680 = vmul.f32 %v2081, 0.01
    %v2681 = vmul.f32 %v2259, 0.01
    %v2682 = vmul.f32 %v2437, 0.01
    %v2683 = vmul.f32 %v1906, 0.01
    %v2684 = vmul.f32 %v2084, 0.01
    %v2685 = vmul.f32 %v2262, 0.01
    %v2686 = vmul.f32 %v2440, 0.01
    %v2687 = vmul.f32 %v1908, 0.01
    %v2688 = vmul.f32 %v2086, 0.01
    %v2689 = vmul.f32 %v2264, 0.01
    %v2690 = vmul.f32 %v2442, 0.01
    %v2691 = vmul.f32 %v1911, 0.01
    %v2692 = vmul.f32 %v2089, 0.01
    %v2693 = vmul.f32 %v2267, 0.01
    %v2694 = vmul.f32 %v2445, 0.01
    %v2695 = vmul.f32 %v1913, 0.01
    %v2696 = vmul.f32 %v2091, 0.01
    %v2697 = vmul.f32 %v2269, 0.01
    %v2698 = vmul.f32 %v2447, 0.01
    %v2699 = vmul.f32 %v1916, 0.01
    %v2700 = vmul.f32 %v2094, 0.01
    %v2701 = vmul.f32 %v2272, 0.01
    %v2702 = vmul.f32 %v2450, 0.01
    %v2703 = vmul.f32 %v1918, 0.01
    %v2704 = vmul.f32 %v2096, 0.01
    %v2705 = vmul.f32 %v2274, 0.01
    %v2706 = vmul.f32 %v2452, 0.01
    %v2707 = vmul.f32 %v1921, 0.01
    %v2708 = vmul.f32 %v2099, 0.01
    %v2709 = vmul.f32 %v2277, 0.01
    %v2710 = vmul.f32 %v2455, 0.01
    %v2711 = vmul.f32 %v1923, 0.01
    %v2712 = vmul.f32 %v2101, 0.01
    %v2713 = vmul.f32 %v2279, 0.01
    %v2714 = vmul.f32 %v2457, 0.01
    %v2715 = vsel %vm2459, %v1846, %v2587
    %v2716 = vsel %vm2460, %v2024, %v2588
    %v2717 = vsel %vm2461, %v2202, %v2589
    %v2718 = vsel %vm2462, %v2380, %v2590
    %v2719 = vsel %vm2463, %v1848, %v2591
    %v2720 = vsel %vm2464, %v2026, %v2592
    %v2721 = vsel %vm2465, %v2204, %v2593
    %v2722 = vsel %vm2466, %v2382, %v2594
    %v2723 = vsel %vm2467, %v1851, %v2595
    %v2724 = vsel %vm2468, %v2029, %v2596
    %v2725 = vsel %vm2469, %v2207, %v2597
    %v2726 = vsel %vm2470, %v2385, %v2598
    %v2727 = vsel %vm2471, %v1853, %v2599
    %v2728 = vsel %vm2472, %v2031, %v2600
    %v2729 = vsel %vm2473, %v2209, %v2601
    %v2730 = vsel %vm2474, %v2387, %v2602
    %v2731 = vsel %vm2475, %v1856, %v2603
    %v2732 = vsel %vm2476, %v2034, %v2604
    %v2733 = vsel %vm2477, %v2212, %v2605
    %v2734 = vsel %vm2478, %v2390, %v2606
    %v2735 = vsel %vm2479, %v1858, %v2607
    %v2736 = vsel %vm2480, %v2036, %v2608
    %v2737 = vsel %vm2481, %v2214, %v2609
    %v2738 = vsel %vm2482, %v2392, %v2610
    %v2739 = vsel %vm2483, %v1861, %v2611
    %v2740 = vsel %vm2484, %v2039, %v2612
    %v2741 = vsel %vm2485, %v2217, %v2613
    %v2742 = vsel %vm2486, %v2395, %v2614
    %v2743 = vsel %vm2487, %v1863, %v2615
    %v2744 = vsel %vm2488, %v2041, %v2616
    %v2745 = vsel %vm2489, %v2219, %v2617
    %v2746 = vsel %vm2490, %v2397, %v2618
    %v2747 = vsel %vm2491, %v1866, %v2619
    %v2748 = vsel %vm2492, %v2044, %v2620
    %v2749 = vsel %vm2493, %v2222, %v2621
    %v2750 = vsel %vm2494, %v2400, %v2622
    %v2751 = vsel %vm2495, %v1868, %v2623
    %v2752 = vsel %vm2496, %v2046, %v2624
    %v2753 = vsel %vm2497, %v2224, %v2625
    %v2754 = vsel %vm2498, %v2402, %v2626
    %v2755 = vsel %vm2499, %v1871, %v2627
    %v2756 = vsel %vm2500, %v2049, %v2628
    %v2757 = vsel %vm2501, %v2227, %v2629
    %v2758 = vsel %vm2502, %v2405, %v2630
    %v2759 = vsel %vm2503, %v1873, %v2631
    %v2760 = vsel %vm2504, %v2051, %v2632
    %v2761 = vsel %vm2505, %v2229, %v2633
    %v2762 = vsel %vm2506, %v2407, %v2634
    %v2763 = vsel %vm2507, %v1876, %v2635
    %v2764 = vsel %vm2508, %v2054, %v2636
    %v2765 = vsel %vm2509, %v2232, %v2637
    %v2766 = vsel %vm2510, %v2410, %v2638
    %v2767 = vsel %vm2511, %v1878, %v2639
    %v2768 = vsel %vm2512, %v2056, %v2640
    %v2769 = vsel %vm2513, %v2234, %v2641
    %v2770 = vsel %vm2514, %v2412, %v2642
    %v2771 = vsel %vm2515, %v1881, %v2643
    %v2772 = vsel %vm2516, %v2059, %v2644
    %v2773 = vsel %vm2517, %v2237, %v2645
    %v2774 = vsel %vm2518, %v2415, %v2646
    %v2775 = vsel %vm2519, %v1883, %v2647
    %v2776 = vsel %vm2520, %v2061, %v2648
    %v2777 = vsel %vm2521, %v2239, %v2649
    %v2778 = vsel %vm2522, %v2417, %v2650
    %v2779 = vsel %vm2523, %v1886, %v2651
    %v2780 = vsel %vm2524, %v2064, %v2652
    %v2781 = vsel %vm2525, %v2242, %v2653
    %v2782 = vsel %vm2526, %v2420, %v2654
    %v2783 = vsel %vm2527, %v1888, %v2655
    %v2784 = vsel %vm2528, %v2066, %v2656
    %v2785 = vsel %vm2529, %v2244, %v2657
    %v2786 = vsel %vm2530, %v2422, %v2658
    %v2787 = vsel %vm2531, %v1891, %v2659
    %v2788 = vsel %vm2532, %v2069, %v2660
    %v2789 = vsel %vm2533, %v2247, %v2661
    %v2790 = vsel %vm2534, %v2425, %v2662
    %v2791 = vsel %vm2535, %v1893, %v2663
    %v2792 = vsel %vm2536, %v2071, %v2664
    %v2793 = vsel %vm2537, %v2249, %v2665
    %v2794 = vsel %vm2538, %v2427, %v2666
    %v2795 = vsel %vm2539, %v1896, %v2667
    %v2796 = vsel %vm2540, %v2074, %v2668
    %v2797 = vsel %vm2541, %v2252, %v2669
    %v2798 = vsel %vm2542, %v2430, %v2670
    %v2799 = vsel %vm2543, %v1898, %v2671
    %v2800 = vsel %vm2544, %v2076, %v2672
    %v2801 = vsel %vm2545, %v2254, %v2673
    %v2802 = vsel %vm2546, %v2432, %v2674
    %v2803 = vsel %vm2547, %v1901, %v2675
    %v2804 = vsel %vm2548, %v2079, %v2676
    %v2805 = vsel %vm2549, %v2257, %v2677
    %v2806 = vsel %vm2550, %v2435, %v2678
    %v2807 = vsel %vm2551, %v1903, %v2679
    %v2808 = vsel %vm2552, %v2081, %v2680
    %v2809 = vsel %vm2553, %v2259, %v2681
    %v2810 = vsel %vm2554, %v2437, %v2682
    %v2811 = vsel %vm2555, %v1906, %v2683
    %v2812 = vsel %vm2556, %v2084, %v2684
    %v2813 = vsel %vm2557, %v2262, %v2685
    %v2814 = vsel %vm2558, %v2440, %v2686
    %v2815 = vsel %vm2559, %v1908, %v2687
    %v2816 = vsel %vm2560, %v2086, %v2688
    %v2817 = vsel %vm2561, %v2264, %v2689
    %v2818 = vsel %vm2562, %v2442, %v2690
    %v2819 = vsel %vm2563, %v1911, %v2691
    %v2820 = vsel %vm2564, %v2089, %v2692
    %v2821 = vsel %vm2565, %v2267, %v2693
    %v2822 = vsel %vm2566, %v2445, %v2694
    %v2823 = vsel %vm2567, %v1913, %v2695
    %v2824 = vsel %vm2568, %v2091, %v2696
    %v2825 = vsel %vm2569, %v2269, %v2697
    %v2826 = vsel %vm2570, %v2447, %v2698
    %v2827 = vsel %vm2571, %v1916, %v2699
    %v2828 = vsel %vm2572, %v2094, %v2700
    %v2829 = vsel %vm2573, %v2272, %v2701
    %v2830 = vsel %vm2574, %v2450, %v2702
    %v2831 = vsel %vm2575, %v1918, %v2703
    %v2832 = vsel %vm2576, %v2096, %v2704
    %v2833 = vsel %vm2577, %v2274, %v2705
    %v2834 = vsel %vm2578, %v2452, %v2706
    %v2835 = vsel %vm2579, %v1921, %v2707
    %v2836 = vsel %vm2580, %v2099, %v2708
    %v2837 = vsel %vm2581, %v2277, %v2709
    %v2838 = vsel %vm2582, %v2455, %v2710
    %v2839 = vsel %vm2583, %v1923, %v2711
    %v2840 = vsel %vm2584, %v2101, %v2712
    %v2841 = vsel %vm2585, %v2279, %v2713
    %v2842 = vsel %vm2586, %v2457, %v2714
    %v2843 = vpack.c.bf16 %v2719, %v2715
    %v2844 = vpack.c.bf16 %v2720, %v2716
    %v2845 = vpack.c.bf16 %v2721, %v2717
    %v2846 = vpack.c.bf16 %v2722, %v2718
    %v2847 = vpack.c.bf16 %v2727, %v2723
    %v2848 = vpack.c.bf16 %v2728, %v2724
    %v2849 = vpack.c.bf16 %v2729, %v2725
    %v2850 = vpack.c.bf16 %v2730, %v2726
    %v2851 = vpack.c.bf16 %v2735, %v2731
    %v2852 = vpack.c.bf16 %v2736, %v2732
    %v2853 = vpack.c.bf16 %v2737, %v2733
    %v2854 = vpack.c.bf16 %v2738, %v2734
    %v2855 = vpack.c.bf16 %v2743, %v2739
    %v2856 = vpack.c.bf16 %v2744, %v2740
    %v2857 = vpack.c.bf16 %v2745, %v2741
    %v2858 = vpack.c.bf16 %v2746, %v2742
    %v2859 = vpack.c.bf16 %v2751, %v2747
    %v2860 = vpack.c.bf16 %v2752, %v2748
    %v2861 = vpack.c.bf16 %v2753, %v2749
    %v2862 = vpack.c.bf16 %v2754, %v2750
    %v2863 = vpack.c.bf16 %v2759, %v2755
    %v2864 = vpack.c.bf16 %v2760, %v2756
    %v2865 = vpack.c.bf16 %v2761, %v2757
    %v2866 = vpack.c.bf16 %v2762, %v2758
    %v2867 = vpack.c.bf16 %v2767, %v2763
    %v2868 = vpack.c.bf16 %v2768, %v2764
    %v2869 = vpack.c.bf16 %v2769, %v2765
    %v2870 = vpack.c.bf16 %v2770, %v2766
    %v2871 = vpack.c.bf16 %v2775, %v2771
    %v2872 = vpack.c.bf16 %v2776, %v2772
    %v2873 = vpack.c.bf16 %v2777, %v2773
    %v2874 = vpack.c.bf16 %v2778, %v2774
    %v2875 = vpack.c.bf16 %v2783, %v2779
    %v2876 = vpack.c.bf16 %v2784, %v2780
    %v2877 = vpack.c.bf16 %v2785, %v2781
    %v2878 = vpack.c.bf16 %v2786, %v2782
    %v2879 = vpack.c.bf16 %v2791, %v2787
    %v2880 = vpack.c.bf16 %v2792, %v2788
    %v2881 = vpack.c.bf16 %v2793, %v2789
    %v2882 = vpack.c.bf16 %v2794, %v2790
    %v2883 = vpack.c.bf16 %v2799, %v2795
    %v2884 = vpack.c.bf16 %v2800, %v2796
    %v2885 = vpack.c.bf16 %v2801, %v2797
    %v2886 = vpack.c.bf16 %v2802, %v2798
    %v2887 = vpack.c.bf16 %v2807, %v2803
    %v2888 = vpack.c.bf16 %v2808, %v2804
    %v2889 = vpack.c.bf16 %v2809, %v2805
    %v2890 = vpack.c.bf16 %v2810, %v2806
    %v2891 = vpack.c.bf16 %v2815, %v2811
    %v2892 = vpack.c.bf16 %v2816, %v2812
    %v2893 = vpack.c.bf16 %v2817, %v2813
    %v2894 = vpack.c.bf16 %v2818, %v2814
    %v2895 = vpack.c.bf16 %v2823, %v2819
    %v2896 = vpack.c.bf16 %v2824, %v2820
    %v2897 = vpack.c.bf16 %v2825, %v2821
    %v2898 = vpack.c.bf16 %v2826, %v2822
    %v2899 = vpack.c.bf16 %v2831, %v2827
    %v2900 = vpack.c.bf16 %v2832, %v2828
    %v2901 = vpack.c.bf16 %v2833, %v2829
    %v2902 = vpack.c.bf16 %v2834, %v2830
    %v2903 = vpack.c.bf16 %v2839, %v2835
    %v2904 = vpack.c.bf16 %v2840, %v2836
    %v2905 = vpack.c.bf16 %v2841, %v2837
    %v2906 = vpack.c.bf16 %v2842, %v2838
    %v2907 = vld [vmem:[#allocation5] sm:$0xf]
    %v2908 = vld [vmem:[#allocation5 + $0x4] sm:$0xf]
    %v2909 = vld [vmem:[#allocation5 + $0x8] sm:$0xf]
    %v2910 = vld [vmem:[#allocation5 + $0xc] sm:$0xf]
    %v2911 = vld [vmem:[#allocation5 + $0x10] sm:$0xf]
    %v2912 = vld [vmem:[#allocation5 + $0x14] sm:$0xf]
    %v2913 = vld [vmem:[#allocation5 + $0x18] sm:$0xf]
    %v2914 = vld [vmem:[#allocation5 + $0x1c] sm:$0xf]
    %v2915 = vld [vmem:[#allocation5 + $0x20] sm:$0xf]
    %v2916 = vld [vmem:[#allocation5 + $0x24] sm:$0xf]
    %v2917 = vld [vmem:[#allocation5 + $0x28] sm:$0xf]
    %v2918 = vld [vmem:[#allocation5 + $0x2c] sm:$0xf]
    %v2919 = vld [vmem:[#allocation5 + $0x30] sm:$0xf]
    %v2920 = vld [vmem:[#allocation5 + $0x34] sm:$0xf]
    %v2921 = vld [vmem:[#allocation5 + $0x38] sm:$0xf]
    %v2922 = vld [vmem:[#allocation5 + $0x3c] sm:$0xf]
    %v2923 = vld [vmem:[#allocation5 + $0x40] sm:$0xf]
    %v2924 = vld [vmem:[#allocation5 + $0x44] sm:$0xf]
    %v2925 = vld [vmem:[#allocation5 + $0x48] sm:$0xf]
    %v2926 = vld [vmem:[#allocation5 + $0x4c] sm:$0xf]
    %v2927 = vld [vmem:[#allocation5 + $0x50] sm:$0xf]
    %v2928 = vld [vmem:[#allocation5 + $0x54] sm:$0xf]
    %v2929 = vld [vmem:[#allocation5 + $0x58] sm:$0xf]
    %v2930 = vld [vmem:[#allocation5 + $0x5c] sm:$0xf]
    %v2931 = vld [vmem:[#allocation5 + $0x60] sm:$0xf]
    %v2932 = vld [vmem:[#allocation5 + $0x64] sm:$0xf]
    %v2933 = vld [vmem:[#allocation5 + $0x68] sm:$0xf]
    %v2934 = vld [vmem:[#allocation5 + $0x6c] sm:$0xf]
    %v2935 = vld [vmem:[#allocation5 + $0x70] sm:$0xf]
    %v2936 = vld [vmem:[#allocation5 + $0x74] sm:$0xf]
    %v2937 = vld [vmem:[#allocation5 + $0x78] sm:$0xf]
    %v2938 = vld [vmem:[#allocation5 + $0x7c] sm:$0xf]
    %v2939 = vld [vmem:[#allocation5 + $0x80] sm:$0xf]
    %v2940 = vld [vmem:[#allocation5 + $0x84] sm:$0xf]
    %v2941 = vld [vmem:[#allocation5 + $0x88] sm:$0xf]
    %v2942 = vld [vmem:[#allocation5 + $0x8c] sm:$0xf]
    %v2943 = vld [vmem:[#allocation5 + $0x90] sm:$0xf]
    %v2944 = vld [vmem:[#allocation5 + $0x94] sm:$0xf]
    %v2945 = vld [vmem:[#allocation5 + $0x98] sm:$0xf]
    %v2946 = vld [vmem:[#allocation5 + $0x9c] sm:$0xf]
    %v2947 = vld [vmem:[#allocation5 + $0xa0] sm:$0xf]
    %v2948 = vld [vmem:[#allocation5 + $0xa4] sm:$0xf]
    %v2949 = vld [vmem:[#allocation5 + $0xa8] sm:$0xf]
    %v2950 = vld [vmem:[#allocation5 + $0xac] sm:$0xf]
    %v2951 = vld [vmem:[#allocation5 + $0xb0] sm:$0xf]
    %v2952 = vld [vmem:[#allocation5 + $0xb4] sm:$0xf]
    %v2953 = vld [vmem:[#allocation5 + $0xb8] sm:$0xf]
    %v2954 = vld [vmem:[#allocation5 + $0xbc] sm:$0xf]
    %v2955 = vld [vmem:[#allocation5 + $0xc0] sm:$0xf]
    %v2956 = vld [vmem:[#allocation5 + $0xc4] sm:$0xf]
    %v2957 = vld [vmem:[#allocation5 + $0xc8] sm:$0xf]
    %v2958 = vld [vmem:[#allocation5 + $0xcc] sm:$0xf]
    %v2959 = vld [vmem:[#allocation5 + $0xd0] sm:$0xf]
    %v2960 = vld [vmem:[#allocation5 + $0xd4] sm:$0xf]
    %v2961 = vld [vmem:[#allocation5 + $0xd8] sm:$0xf]
    %v2962 = vld [vmem:[#allocation5 + $0xdc] sm:$0xf]
    %v2963 = vld [vmem:[#allocation5 + $0xe0] sm:$0xf]
    %v2964 = vld [vmem:[#allocation5 + $0xe4] sm:$0xf]
    %v2965 = vld [vmem:[#allocation5 + $0xe8] sm:$0xf]
    %v2966 = vld [vmem:[#allocation5 + $0xec] sm:$0xf]
    %v2967 = vld [vmem:[#allocation5 + $0xf0] sm:$0xf]
    %v2968 = vld [vmem:[#allocation5 + $0xf4] sm:$0xf]
    %v2969 = vld [vmem:[#allocation5 + $0xf8] sm:$0xf]
    %v2970 = vld [vmem:[#allocation5 + $0xfc] sm:$0xf]
    %v2972 = vperm.slane %v60, 0
    %v3038 = vunpack.c.l.b16 %v2907
    %v3039 = vunpack.c.l.b16 %v2908
    %v3040 = vunpack.c.l.b16 %v2909
    %v3041 = vunpack.c.l.b16 %v2910
    %v3042 = vunpack.c.l.b16 %v2911
    %v3043 = vunpack.c.l.b16 %v2912
    %v3044 = vunpack.c.l.b16 %v2913
    %v3045 = vunpack.c.l.b16 %v2914
    %v3046 = vunpack.c.l.b16 %v2915
    %v3047 = vunpack.c.l.b16 %v2916
    %v3048 = vunpack.c.l.b16 %v2917
    %v3049 = vunpack.c.l.b16 %v2918
    %v3050 = vunpack.c.l.b16 %v2919
    %v3051 = vunpack.c.l.b16 %v2920
    %v3052 = vunpack.c.l.b16 %v2921
    %v3053 = vunpack.c.l.b16 %v2922
    %v3054 = vunpack.c.l.b16 %v2923
    %v3055 = vunpack.c.l.b16 %v2924
    %v3056 = vunpack.c.l.b16 %v2925
    %v3057 = vunpack.c.l.b16 %v2926
    %v3058 = vunpack.c.l.b16 %v2927
    %v3059 = vunpack.c.l.b16 %v2928
    %v3060 = vunpack.c.l.b16 %v2929
    %v3061 = vunpack.c.l.b16 %v2930
    %v3062 = vunpack.c.l.b16 %v2931
    %v3063 = vunpack.c.l.b16 %v2932
    %v3064 = vunpack.c.l.b16 %v2933
    %v3065 = vunpack.c.l.b16 %v2934
    %v3066 = vunpack.c.l.b16 %v2935
    %v3067 = vunpack.c.l.b16 %v2936
    %v3068 = vunpack.c.l.b16 %v2937
    %v3069 = vunpack.c.l.b16 %v2938
    %v3070 = vunpack.c.l.b16 %v2939
    %v3071 = vunpack.c.l.b16 %v2940
    %v3072 = vunpack.c.l.b16 %v2941
    %v3073 = vunpack.c.l.b16 %v2942
    %v3074 = vunpack.c.l.b16 %v2943
    %v3075 = vunpack.c.l.b16 %v2944
    %v3076 = vunpack.c.l.b16 %v2945
    %v3077 = vunpack.c.l.b16 %v2946
    %v3078 = vunpack.c.l.b16 %v2947
    %v3079 = vunpack.c.l.b16 %v2948
    %v3080 = vunpack.c.l.b16 %v2949
    %v3081 = vunpack.c.l.b16 %v2950
    %v3082 = vunpack.c.l.b16 %v2951
    %v3083 = vunpack.c.l.b16 %v2952
    %v3084 = vunpack.c.l.b16 %v2953
    %v3085 = vunpack.c.l.b16 %v2954
    %v3086 = vunpack.c.l.b16 %v2955
    %v3087 = vunpack.c.l.b16 %v2956
    %v3088 = vunpack.c.l.b16 %v2957
    %v3089 = vunpack.c.l.b16 %v2958
    %v3090 = vunpack.c.l.b16 %v2959
    %v3091 = vunpack.c.l.b16 %v2960
    %v3092 = vunpack.c.l.b16 %v2961
    %v3093 = vunpack.c.l.b16 %v2962
    %v3094 = vunpack.c.l.b16 %v2963
    %v3095 = vunpack.c.l.b16 %v2964
    %v3096 = vunpack.c.l.b16 %v2965
    %v3097 = vunpack.c.l.b16 %v2966
    %v3098 = vunpack.c.l.b16 %v2967
    %v3099 = vunpack.c.l.b16 %v2968
    %v3100 = vunpack.c.l.b16 %v2969
    %v3101 = vunpack.c.l.b16 %v2970
    %v3102 = vpack.c.b16 %v3039, %v3038
    %v3103 = vpack.c.b16 %v3041, %v3040
    %v3104 = vpack.c.b16 %v3043, %v3042
    %v3105 = vpack.c.b16 %v3045, %v3044
    %v3106 = vpack.c.b16 %v3047, %v3046
    %v3107 = vpack.c.b16 %v3049, %v3048
    %v3108 = vpack.c.b16 %v3051, %v3050
    %v3109 = vpack.c.b16 %v3053, %v3052
    %v3110 = vpack.c.b16 %v3055, %v3054
    %v3111 = vpack.c.b16 %v3057, %v3056
    %v3112 = vpack.c.b16 %v3059, %v3058
    %v3113 = vpack.c.b16 %v3061, %v3060
    %v3114 = vpack.c.b16 %v3063, %v3062
    %v3115 = vpack.c.b16 %v3065, %v3064
    %v3116 = vpack.c.b16 %v3067, %v3066
    %v3117 = vpack.c.b16 %v3069, %v3068
    %v3118 = vpack.c.b16 %v3071, %v3070
    %v3119 = vpack.c.b16 %v3073, %v3072
    %v3120 = vpack.c.b16 %v3075, %v3074
    %v3121 = vpack.c.b16 %v3077, %v3076
    %v3122 = vpack.c.b16 %v3079, %v3078
    %v3123 = vpack.c.b16 %v3081, %v3080
    %v3124 = vpack.c.b16 %v3083, %v3082
    %v3125 = vpack.c.b16 %v3085, %v3084
    %v3126 = vpack.c.b16 %v3087, %v3086
    %v3127 = vpack.c.b16 %v3089, %v3088
    %v3128 = vpack.c.b16 %v3091, %v3090
    %v3129 = vpack.c.b16 %v3093, %v3092
    %v3130 = vpack.c.b16 %v3095, %v3094
    %v3131 = vpack.c.b16 %v3097, %v3096
    %v3132 = vpack.c.b16 %v3099, %v3098
    %v3133 = vpack.c.b16 %v3101, %v3100
    %3166 = vmatpush.bf16.msra.mxu0 %v3109
    %3167 = vmatpush.bf16.msra.mxu0 %v3108
    %3168 = vmatpush.bf16.msra.mxu0 %v3107
    %3169 = vmatpush.bf16.msra.mxu0 %v3106
    %3170 = vmatpush.bf16.msra.mxu0 %v3105
    %3171 = vmatpush.bf16.msra.mxu0 %v3104
    %3172 = vmatpush.bf16.msra.mxu0 %v3103
    %3173 = vmatpush.bf16.msra.mxu0 %v3102
    %3174 = vmatmul.bf16.gmra.mxu0 %v2843
    %v3175 = vpop.f32.mrf.mxu0
    %v3176 = vadd.f32 %v2972, %v3175
    %v3177 = vpop.f32.mrf.mxu0
    %v3178 = vadd.f32 %v2972, %v3177
    %3179 = vmatmul.bf16.gmra.mxu0 %v2847
    %v3180 = vpop.f32.mrf.mxu0
    %v3181 = vadd.f32 %v2972, %v3180
    %v3182 = vpop.f32.mrf.mxu0
    %v3183 = vadd.f32 %v2972, %v3182
    %3184 = vmatmul.bf16.gmra.mxu0 %v2851
    %v3185 = vpop.f32.mrf.mxu0
    %v3186 = vadd.f32 %v2972, %v3185
    %v3187 = vpop.f32.mrf.mxu0
    %v3188 = vadd.f32 %v2972, %v3187
    %3189 = vmatmul.bf16.gmra.mxu0 %v2855
    %v3190 = vpop.f32.mrf.mxu0
    %v3191 = vadd.f32 %v2972, %v3190
    %v3192 = vpop.f32.mrf.mxu0
    %v3193 = vadd.f32 %v2972, %v3192
    %3194 = vmatmul.bf16.gmra.mxu0 %v2859
    %v3195 = vpop.f32.mrf.mxu0
    %v3196 = vadd.f32 %v2972, %v3195
    %v3197 = vpop.f32.mrf.mxu0
    %v3198 = vadd.f32 %v2972, %v3197
    %3199 = vmatmul.bf16.gmra.mxu0 %v2863
    %v3200 = vpop.f32.mrf.mxu0
    %v3201 = vadd.f32 %v2972, %v3200
    %v3202 = vpop.f32.mrf.mxu0
    %v3203 = vadd.f32 %v2972, %v3202
    %3204 = vmatmul.bf16.gmra.mxu0 %v2867
    %v3205 = vpop.f32.mrf.mxu0
    %v3206 = vadd.f32 %v2972, %v3205
    %v3207 = vpop.f32.mrf.mxu0
    %v3208 = vadd.f32 %v2972, %v3207
    %3209 = vmatmul.bf16.gmra.mxu0 %v2871
    %v3210 = vpop.f32.mrf.mxu0
    %v3211 = vadd.f32 %v2972, %v3210
    %v3212 = vpop.f32.mrf.mxu0
    %v3213 = vadd.f32 %v2972, %v3212
    %3214 = vmatmul.bf16.gmra.mxu0 %v2875
    %v3215 = vpop.f32.mrf.mxu0
    %v3216 = vadd.f32 %v2972, %v3215
    %v3217 = vpop.f32.mrf.mxu0
    %v3218 = vadd.f32 %v2972, %v3217
    %3219 = vmatmul.bf16.gmra.mxu0 %v2879
    %v3220 = vpop.f32.mrf.mxu0
    %v3221 = vadd.f32 %v2972, %v3220
    %v3222 = vpop.f32.mrf.mxu0
    %v3223 = vadd.f32 %v2972, %v3222
    %3224 = vmatmul.bf16.gmra.mxu0 %v2883
    %v3225 = vpop.f32.mrf.mxu0
    %v3226 = vadd.f32 %v2972, %v3225
    %v3227 = vpop.f32.mrf.mxu0
    %v3228 = vadd.f32 %v2972, %v3227
    %3229 = vmatmul.bf16.gmra.mxu0 %v2887
    %v3230 = vpop.f32.mrf.mxu0
    %v3231 = vadd.f32 %v2972, %v3230
    %v3232 = vpop.f32.mrf.mxu0
    %v3233 = vadd.f32 %v2972, %v3232
    %3234 = vmatmul.bf16.gmra.mxu0 %v2891
    %v3235 = vpop.f32.mrf.mxu0
    %v3236 = vadd.f32 %v2972, %v3235
    %v3237 = vpop.f32.mrf.mxu0
    %v3238 = vadd.f32 %v2972, %v3237
    %3239 = vmatmul.bf16.gmra.mxu0 %v2895
    %v3240 = vpop.f32.mrf.mxu0
    %v3241 = vadd.f32 %v2972, %v3240
    %v3242 = vpop.f32.mrf.mxu0
    %v3243 = vadd.f32 %v2972, %v3242
    %3244 = vmatmul.bf16.gmra.mxu0 %v2899
    %v3245 = vpop.f32.mrf.mxu0
    %v3246 = vadd.f32 %v2972, %v3245
    %v3247 = vpop.f32.mrf.mxu0
    %v3248 = vadd.f32 %v2972, %v3247
    %3249 = vmatmul.bf16.gmra.mxu0 %v2903
    %v3250 = vpop.f32.mrf.mxu0
    %v3251 = vadd.f32 %v2972, %v3250
    %v3252 = vpop.f32.mrf.mxu0
    %v3253 = vadd.f32 %v2972, %v3252
    %3254 = vdwg.mxu0
    %3255 = vmatpush.bf16.msra.mxu0 %v3117
    %3256 = vmatpush.bf16.msra.mxu0 %v3116
    %3257 = vmatpush.bf16.msra.mxu0 %v3115
    %3258 = vmatpush.bf16.msra.mxu0 %v3114
    %3259 = vmatpush.bf16.msra.mxu0 %v3113
    %3260 = vmatpush.bf16.msra.mxu0 %v3112
    %3261 = vmatpush.bf16.msra.mxu0 %v3111
    %3262 = vmatpush.bf16.msra.mxu0 %v3110
    %3263 = vmatmul.bf16.gmra.mxu0 %v2844
    %v3264 = vpop.f32.mrf.mxu0
    %v3265 = vadd.f32 %v3176, %v3264
    %v3266 = vpop.f32.mrf.mxu0
    %v3267 = vadd.f32 %v3178, %v3266
    %3268 = vmatmul.bf16.gmra.mxu0 %v2848
    %v3269 = vpop.f32.mrf.mxu0
    %v3270 = vadd.f32 %v3181, %v3269
    %v3271 = vpop.f32.mrf.mxu0
    %v3272 = vadd.f32 %v3183, %v3271
    %3273 = vmatmul.bf16.gmra.mxu0 %v2852
    %v3274 = vpop.f32.mrf.mxu0
    %v3275 = vadd.f32 %v3186, %v3274
    %v3276 = vpop.f32.mrf.mxu0
    %v3277 = vadd.f32 %v3188, %v3276
    %3278 = vmatmul.bf16.gmra.mxu0 %v2856
    %v3279 = vpop.f32.mrf.mxu0
    %v3280 = vadd.f32 %v3191, %v3279
    %v3281 = vpop.f32.mrf.mxu0
    %v3282 = vadd.f32 %v3193, %v3281
    %3283 = vmatmul.bf16.gmra.mxu0 %v2860
    %v3284 = vpop.f32.mrf.mxu0
    %v3285 = vadd.f32 %v3196, %v3284
    %v3286 = vpop.f32.mrf.mxu0
    %v3287 = vadd.f32 %v3198, %v3286
    %3288 = vmatmul.bf16.gmra.mxu0 %v2864
    %v3289 = vpop.f32.mrf.mxu0
    %v3290 = vadd.f32 %v3201, %v3289
    %v3291 = vpop.f32.mrf.mxu0
    %v3292 = vadd.f32 %v3203, %v3291
    %3293 = vmatmul.bf16.gmra.mxu0 %v2868
    %v3294 = vpop.f32.mrf.mxu0
    %v3295 = vadd.f32 %v3206, %v3294
    %v3296 = vpop.f32.mrf.mxu0
    %v3297 = vadd.f32 %v3208, %v3296
    %3298 = vmatmul.bf16.gmra.mxu0 %v2872
    %v3299 = vpop.f32.mrf.mxu0
    %v3300 = vadd.f32 %v3211, %v3299
    %v3301 = vpop.f32.mrf.mxu0
    %v3302 = vadd.f32 %v3213, %v3301
    %3303 = vmatmul.bf16.gmra.mxu0 %v2876
    %v3304 = vpop.f32.mrf.mxu0
    %v3305 = vadd.f32 %v3216, %v3304
    %v3306 = vpop.f32.mrf.mxu0
    %v3307 = vadd.f32 %v3218, %v3306
    %3308 = vmatmul.bf16.gmra.mxu0 %v2880
    %v3309 = vpop.f32.mrf.mxu0
    %v3310 = vadd.f32 %v3221, %v3309
    %v3311 = vpop.f32.mrf.mxu0
    %v3312 = vadd.f32 %v3223, %v3311
    %3313 = vmatmul.bf16.gmra.mxu0 %v2884
    %v3314 = vpop.f32.mrf.mxu0
    %v3315 = vadd.f32 %v3226, %v3314
    %v3316 = vpop.f32.mrf.mxu0
    %v3317 = vadd.f32 %v3228, %v3316
    %3318 = vmatmul.bf16.gmra.mxu0 %v2888
    %v3319 = vpop.f32.mrf.mxu0
    %v3320 = vadd.f32 %v3231, %v3319
    %v3321 = vpop.f32.mrf.mxu0
    %v3322 = vadd.f32 %v3233, %v3321
    %3323 = vmatmul.bf16.gmra.mxu0 %v2892
    %v3324 = vpop.f32.mrf.mxu0
    %v3325 = vadd.f32 %v3236, %v3324
    %v3326 = vpop.f32.mrf.mxu0
    %v3327 = vadd.f32 %v3238, %v3326
    %3328 = vmatmul.bf16.gmra.mxu0 %v2896
    %v3329 = vpop.f32.mrf.mxu0
    %v3330 = vadd.f32 %v3241, %v3329
    %v3331 = vpop.f32.mrf.mxu0
    %v3332 = vadd.f32 %v3243, %v3331
    %3333 = vmatmul.bf16.gmra.mxu0 %v2900
    %v3334 = vpop.f32.mrf.mxu0
    %v3335 = vadd.f32 %v3246, %v3334
    %v3336 = vpop.f32.mrf.mxu0
    %v3337 = vadd.f32 %v3248, %v3336
    %3338 = vmatmul.bf16.gmra.mxu0 %v2904
    %v3339 = vpop.f32.mrf.mxu0
    %v3340 = vadd.f32 %v3251, %v3339
    %v3341 = vpop.f32.mrf.mxu0
    %v3342 = vadd.f32 %v3253, %v3341
    %3343 = vdwg.mxu0
    %3344 = vmatpush.bf16.msra.mxu0 %v3125
    %3345 = vmatpush.bf16.msra.mxu0 %v3124
    %3346 = vmatpush.bf16.msra.mxu0 %v3123
    %3347 = vmatpush.bf16.msra.mxu0 %v3122
    %3348 = vmatpush.bf16.msra.mxu0 %v3121
    %3349 = vmatpush.bf16.msra.mxu0 %v3120
    %3350 = vmatpush.bf16.msra.mxu0 %v3119
    %3351 = vmatpush.bf16.msra.mxu0 %v3118
    %3352 = vmatmul.bf16.gmra.mxu0 %v2845
    %v3353 = vpop.f32.mrf.mxu0
    %v3354 = vadd.f32 %v3265, %v3353
    %v3355 = vpop.f32.mrf.mxu0
    %v3356 = vadd.f32 %v3267, %v3355
    %3357 = vmatmul.bf16.gmra.mxu0 %v2849
    %v3358 = vpop.f32.mrf.mxu0
    %v3359 = vadd.f32 %v3270, %v3358
    %v3360 = vpop.f32.mrf.mxu0
    %v3361 = vadd.f32 %v3272, %v3360
    %3362 = vmatmul.bf16.gmra.mxu0 %v2853
    %v3363 = vpop.f32.mrf.mxu0
    %v3364 = vadd.f32 %v3275, %v3363
    %v3365 = vpop.f32.mrf.mxu0
    %v3366 = vadd.f32 %v3277, %v3365
    %3367 = vmatmul.bf16.gmra.mxu0 %v2857
    %v3368 = vpop.f32.mrf.mxu0
    %v3369 = vadd.f32 %v3280, %v3368
    %v3370 = vpop.f32.mrf.mxu0
    %v3371 = vadd.f32 %v3282, %v3370
    %3372 = vmatmul.bf16.gmra.mxu0 %v2861
    %v3373 = vpop.f32.mrf.mxu0
    %v3374 = vadd.f32 %v3285, %v3373
    %v3375 = vpop.f32.mrf.mxu0
    %v3376 = vadd.f32 %v3287, %v3375
    %3377 = vmatmul.bf16.gmra.mxu0 %v2865
    %v3378 = vpop.f32.mrf.mxu0
    %v3379 = vadd.f32 %v3290, %v3378
    %v3380 = vpop.f32.mrf.mxu0
    %v3381 = vadd.f32 %v3292, %v3380
    %3382 = vmatmul.bf16.gmra.mxu0 %v2869
    %v3383 = vpop.f32.mrf.mxu0
    %v3384 = vadd.f32 %v3295, %v3383
    %v3385 = vpop.f32.mrf.mxu0
    %v3386 = vadd.f32 %v3297, %v3385
    %3387 = vmatmul.bf16.gmra.mxu0 %v2873
    %v3388 = vpop.f32.mrf.mxu0
    %v3389 = vadd.f32 %v3300, %v3388
    %v3390 = vpop.f32.mrf.mxu0
    %v3391 = vadd.f32 %v3302, %v3390
    %3392 = vmatmul.bf16.gmra.mxu0 %v2877
    %v3393 = vpop.f32.mrf.mxu0
    %v3394 = vadd.f32 %v3305, %v3393
    %v3395 = vpop.f32.mrf.mxu0
    %v3396 = vadd.f32 %v3307, %v3395
    %3397 = vmatmul.bf16.gmra.mxu0 %v2881
    %v3398 = vpop.f32.mrf.mxu0
    %v3399 = vadd.f32 %v3310, %v3398
    %v3400 = vpop.f32.mrf.mxu0
    %v3401 = vadd.f32 %v3312, %v3400
    %3402 = vmatmul.bf16.gmra.mxu0 %v2885
    %v3403 = vpop.f32.mrf.mxu0
    %v3404 = vadd.f32 %v3315, %v3403
    %v3405 = vpop.f32.mrf.mxu0
    %v3406 = vadd.f32 %v3317, %v3405
    %3407 = vmatmul.bf16.gmra.mxu0 %v2889
    %v3408 = vpop.f32.mrf.mxu0
    %v3409 = vadd.f32 %v3320, %v3408
    %v3410 = vpop.f32.mrf.mxu0
    %v3411 = vadd.f32 %v3322, %v3410
    %3412 = vmatmul.bf16.gmra.mxu0 %v2893
    %v3413 = vpop.f32.mrf.mxu0
    %v3414 = vadd.f32 %v3325, %v3413
    %v3415 = vpop.f32.mrf.mxu0
    %v3416 = vadd.f32 %v3327, %v3415
    %3417 = vmatmul.bf16.gmra.mxu0 %v2897
    %v3418 = vpop.f32.mrf.mxu0
    %v3419 = vadd.f32 %v3330, %v3418
    %v3420 = vpop.f32.mrf.mxu0
    %v3421 = vadd.f32 %v3332, %v3420
    %3422 = vmatmul.bf16.gmra.mxu0 %v2901
    %v3423 = vpop.f32.mrf.mxu0
    %v3424 = vadd.f32 %v3335, %v3423
    %v3425 = vpop.f32.mrf.mxu0
    %v3426 = vadd.f32 %v3337, %v3425
    %3427 = vmatmul.bf16.gmra.mxu0 %v2905
    %v3428 = vpop.f32.mrf.mxu0
    %v3429 = vadd.f32 %v3340, %v3428
    %v3430 = vpop.f32.mrf.mxu0
    %v3431 = vadd.f32 %v3342, %v3430
    %3432 = vdwg.mxu0
    %3433 = vmatpush.bf16.msra.mxu0 %v3133
    %3434 = vmatpush.bf16.msra.mxu0 %v3132
    %3435 = vmatpush.bf16.msra.mxu0 %v3131
    %3436 = vmatpush.bf16.msra.mxu0 %v3130
    %3437 = vmatpush.bf16.msra.mxu0 %v3129
    %3438 = vmatpush.bf16.msra.mxu0 %v3128
    %3439 = vmatpush.bf16.msra.mxu0 %v3127
    %3440 = vmatpush.bf16.msra.mxu0 %v3126
    %3441 = vmatmul.bf16.gmra.mxu0 %v2846
    %v3442 = vpop.f32.mrf.mxu0
    %v3443 = vadd.f32 %v3354, %v3442
    %v3444 = vpop.f32.mrf.mxu0
    %v3445 = vadd.f32 %v3356, %v3444
    %3446 = vmatmul.bf16.gmra.mxu0 %v2850
    %v3447 = vpop.f32.mrf.mxu0
    %v3448 = vadd.f32 %v3359, %v3447
    %v3449 = vpop.f32.mrf.mxu0
    %v3450 = vadd.f32 %v3361, %v3449
    %3451 = vmatmul.bf16.gmra.mxu0 %v2854
    %v3452 = vpop.f32.mrf.mxu0
    %v3453 = vadd.f32 %v3364, %v3452
    %v3454 = vpop.f32.mrf.mxu0
    %v3455 = vadd.f32 %v3366, %v3454
    %3456 = vmatmul.bf16.gmra.mxu0 %v2858
    %v3457 = vpop.f32.mrf.mxu0
    %v3458 = vadd.f32 %v3369, %v3457
    %v3459 = vpop.f32.mrf.mxu0
    %v3460 = vadd.f32 %v3371, %v3459
    %3461 = vmatmul.bf16.gmra.mxu0 %v2862
    %v3462 = vpop.f32.mrf.mxu0
    %v3463 = vadd.f32 %v3374, %v3462
    %v3464 = vpop.f32.mrf.mxu0
    %v3465 = vadd.f32 %v3376, %v3464
    %3466 = vmatmul.bf16.gmra.mxu0 %v2866
    %v3467 = vpop.f32.mrf.mxu0
    %v3468 = vadd.f32 %v3379, %v3467
    %v3469 = vpop.f32.mrf.mxu0
    %v3470 = vadd.f32 %v3381, %v3469
    %3471 = vmatmul.bf16.gmra.mxu0 %v2870
    %v3472 = vpop.f32.mrf.mxu0
    %v3473 = vadd.f32 %v3384, %v3472
    %v3474 = vpop.f32.mrf.mxu0
    %v3475 = vadd.f32 %v3386, %v3474
    %3476 = vmatmul.bf16.gmra.mxu0 %v2874
    %v3477 = vpop.f32.mrf.mxu0
    %v3478 = vadd.f32 %v3389, %v3477
    %v3479 = vpop.f32.mrf.mxu0
    %v3480 = vadd.f32 %v3391, %v3479
    %3481 = vmatmul.bf16.gmra.mxu0 %v2878
    %v3482 = vpop.f32.mrf.mxu0
    %v3483 = vadd.f32 %v3394, %v3482
    %v3484 = vpop.f32.mrf.mxu0
    %v3485 = vadd.f32 %v3396, %v3484
    %3486 = vmatmul.bf16.gmra.mxu0 %v2882
    %v3487 = vpop.f32.mrf.mxu0
    %v3488 = vadd.f32 %v3399, %v3487
    %v3489 = vpop.f32.mrf.mxu0
    %v3490 = vadd.f32 %v3401, %v3489
    %3491 = vmatmul.bf16.gmra.mxu0 %v2886
    %v3492 = vpop.f32.mrf.mxu0
    %v3493 = vadd.f32 %v3404, %v3492
    %v3494 = vpop.f32.mrf.mxu0
    %v3495 = vadd.f32 %v3406, %v3494
    %3496 = vmatmul.bf16.gmra.mxu0 %v2890
    %v3497 = vpop.f32.mrf.mxu0
    %v3498 = vadd.f32 %v3409, %v3497
    %v3499 = vpop.f32.mrf.mxu0
    %v3500 = vadd.f32 %v3411, %v3499
    %3501 = vmatmul.bf16.gmra.mxu0 %v2894
    %v3502 = vpop.f32.mrf.mxu0
    %v3503 = vadd.f32 %v3414, %v3502
    %v3504 = vpop.f32.mrf.mxu0
    %v3505 = vadd.f32 %v3416, %v3504
    %3506 = vmatmul.bf16.gmra.mxu0 %v2898
    %v3507 = vpop.f32.mrf.mxu0
    %v3508 = vadd.f32 %v3419, %v3507
    %v3509 = vpop.f32.mrf.mxu0
    %v3510 = vadd.f32 %v3421, %v3509
    %3511 = vmatmul.bf16.gmra.mxu0 %v2902
    %v3512 = vpop.f32.mrf.mxu0
    %v3513 = vadd.f32 %v3424, %v3512
    %v3514 = vpop.f32.mrf.mxu0
    %v3515 = vadd.f32 %v3426, %v3514
    %3516 = vmatmul.bf16.gmra.mxu0 %v2906
    %v3517 = vpop.f32.mrf.mxu0
    %v3518 = vadd.f32 %v3429, %v3517
    %v3519 = vpop.f32.mrf.mxu0
    %v3520 = vadd.f32 %v3431, %v3519
    %3521 = vdwg.mxu0
    %v3522 = vlaneseq
    %v3523 = vand.u32 %v3522, 127
    %vm3524 = vcmp.lt.s32.totalorder %v3523, 8
    %v3525 = vsel %vm3524, %v3443, 0.0
    %v3526 = vsel %vm3524, %v3445, 0.0
    %v3527 = vsel %vm3524, %v3448, 0.0
    %v3528 = vsel %vm3524, %v3450, 0.0
    %v3529 = vsel %vm3524, %v3453, 0.0
    %v3530 = vsel %vm3524, %v3455, 0.0
    %v3531 = vsel %vm3524, %v3458, 0.0
    %v3532 = vsel %vm3524, %v3460, 0.0
    %v3533 = vsel %vm3524, %v3463, 0.0
    %v3534 = vsel %vm3524, %v3465, 0.0
    %v3535 = vsel %vm3524, %v3468, 0.0
    %v3536 = vsel %vm3524, %v3470, 0.0
    %v3537 = vsel %vm3524, %v3473, 0.0
    %v3538 = vsel %vm3524, %v3475, 0.0
    %v3539 = vsel %vm3524, %v3478, 0.0
    %v3540 = vsel %vm3524, %v3480, 0.0
    %v3541 = vsel %vm3524, %v3483, 0.0
    %v3542 = vsel %vm3524, %v3485, 0.0
    %v3543 = vsel %vm3524, %v3488, 0.0
    %v3544 = vsel %vm3524, %v3490, 0.0
    %v3545 = vsel %vm3524, %v3493, 0.0
    %v3546 = vsel %vm3524, %v3495, 0.0
    %v3547 = vsel %vm3524, %v3498, 0.0
    %v3548 = vsel %vm3524, %v3500, 0.0
    %v3549 = vsel %vm3524, %v3503, 0.0
    %v3550 = vsel %vm3524, %v3505, 0.0
    %v3551 = vsel %vm3524, %v3508, 0.0
    %v3552 = vsel %vm3524, %v3510, 0.0
    %v3553 = vsel %vm3524, %v3513, 0.0
    %v3554 = vsel %vm3524, %v3515, 0.0
    %v3555 = vsel %vm3524, %v3518, 0.0
    %v3556 = vsel %vm3524, %v3520, 0.0
    %3557 = vadd.xlane.f32.xlu0 %v3525
    %v3558 = vpop.xlane.xlu0 %3557
    %3559 = vadd.xlane.f32.xlu0 %v3526
    %v3560 = vpop.xlane.xlu0 %3559
    %3561 = vadd.xlane.f32.xlu0 %v3527
    %v3562 = vpop.xlane.xlu0 %3561
    %3563 = vadd.xlane.f32.xlu0 %v3528
    %v3564 = vpop.xlane.xlu0 %3563
    %3565 = vadd.xlane.f32.xlu0 %v3529
    %v3566 = vpop.xlane.xlu0 %3565
    %3567 = vadd.xlane.f32.xlu0 %v3530
    %v3568 = vpop.xlane.xlu0 %3567
    %3569 = vadd.xlane.f32.xlu0 %v3531
    %v3570 = vpop.xlane.xlu0 %3569
    %3571 = vadd.xlane.f32.xlu0 %v3532
    %v3572 = vpop.xlane.xlu0 %3571
    %3573 = vadd.xlane.f32.xlu0 %v3533
    %v3574 = vpop.xlane.xlu0 %3573
    %3575 = vadd.xlane.f32.xlu0 %v3534
    %v3576 = vpop.xlane.xlu0 %3575
    %3577 = vadd.xlane.f32.xlu0 %v3535
    %v3578 = vpop.xlane.xlu0 %3577
    %3579 = vadd.xlane.f32.xlu0 %v3536
    %v3580 = vpop.xlane.xlu0 %3579
    %3581 = vadd.xlane.f32.xlu0 %v3537
    %v3582 = vpop.xlane.xlu0 %3581
    %3583 = vadd.xlane.f32.xlu0 %v3538
    %v3584 = vpop.xlane.xlu0 %3583
    %3585 = vadd.xlane.f32.xlu0 %v3539
    %v3586 = vpop.xlane.xlu0 %3585
    %3587 = vadd.xlane.f32.xlu0 %v3540
    %v3588 = vpop.xlane.xlu0 %3587
    %3589 = vadd.xlane.f32.xlu0 %v3541
    %v3590 = vpop.xlane.xlu0 %3589
    %3591 = vadd.xlane.f32.xlu0 %v3542
    %v3592 = vpop.xlane.xlu0 %3591
    %3593 = vadd.xlane.f32.xlu0 %v3543
    %v3594 = vpop.xlane.xlu0 %3593
    %3595 = vadd.xlane.f32.xlu0 %v3544
    %v3596 = vpop.xlane.xlu0 %3595
    %3597 = vadd.xlane.f32.xlu0 %v3545
    %v3598 = vpop.xlane.xlu0 %3597
    %3599 = vadd.xlane.f32.xlu0 %v3546
    %v3600 = vpop.xlane.xlu0 %3599
    %3601 = vadd.xlane.f32.xlu0 %v3547
    %v3602 = vpop.xlane.xlu0 %3601
    %3603 = vadd.xlane.f32.xlu0 %v3548
    %v3604 = vpop.xlane.xlu0 %3603
    %3605 = vadd.xlane.f32.xlu0 %v3549
    %v3606 = vpop.xlane.xlu0 %3605
    %3607 = vadd.xlane.f32.xlu0 %v3550
    %v3608 = vpop.xlane.xlu0 %3607
    %3609 = vadd.xlane.f32.xlu0 %v3551
    %v3610 = vpop.xlane.xlu0 %3609
    %3611 = vadd.xlane.f32.xlu0 %v3552
    %v3612 = vpop.xlane.xlu0 %3611
    %3613 = vadd.xlane.f32.xlu0 %v3553
    %v3614 = vpop.xlane.xlu0 %3613
    %3615 = vadd.xlane.f32.xlu0 %v3554
    %v3616 = vpop.xlane.xlu0 %3615
    %3617 = vadd.xlane.f32.xlu0 %v3555
    %v3618 = vpop.xlane.xlu0 %3617
    %3619 = vadd.xlane.f32.xlu0 %v3556
    %v3620 = vpop.xlane.xlu0 %3619
    %vm3621 = vcmp.eq.s32.totalorder %v3523, 8
    %v3622 = vsel %vm3621, %v3443, 0.0
    %v3623 = vsel %vm3621, %v3445, 0.0
    %v3624 = vsel %vm3621, %v3448, 0.0
    %v3625 = vsel %vm3621, %v3450, 0.0
    %v3626 = vsel %vm3621, %v3453, 0.0
    %v3627 = vsel %vm3621, %v3455, 0.0
    %v3628 = vsel %vm3621, %v3458, 0.0
    %v3629 = vsel %vm3621, %v3460, 0.0
    %v3630 = vsel %vm3621, %v3463, 0.0
    %v3631 = vsel %vm3621, %v3465, 0.0
    %v3632 = vsel %vm3621, %v3468, 0.0
    %v3633 = vsel %vm3621, %v3470, 0.0
    %v3634 = vsel %vm3621, %v3473, 0.0
    %v3635 = vsel %vm3621, %v3475, 0.0
    %v3636 = vsel %vm3621, %v3478, 0.0
    %v3637 = vsel %vm3621, %v3480, 0.0
    %v3638 = vsel %vm3621, %v3483, 0.0
    %v3639 = vsel %vm3621, %v3485, 0.0
    %v3640 = vsel %vm3621, %v3488, 0.0
    %v3641 = vsel %vm3621, %v3490, 0.0
    %v3642 = vsel %vm3621, %v3493, 0.0
    %v3643 = vsel %vm3621, %v3495, 0.0
    %v3644 = vsel %vm3621, %v3498, 0.0
    %v3645 = vsel %vm3621, %v3500, 0.0
    %v3646 = vsel %vm3621, %v3503, 0.0
    %v3647 = vsel %vm3621, %v3505, 0.0
    %v3648 = vsel %vm3621, %v3508, 0.0
    %v3649 = vsel %vm3621, %v3510, 0.0
    %v3650 = vsel %vm3621, %v3513, 0.0
    %v3651 = vsel %vm3621, %v3515, 0.0
    %v3652 = vsel %vm3621, %v3518, 0.0
    %v3653 = vsel %vm3621, %v3520, 0.0
    %3654 = vadd.xlane.f32.xlu0 %v3622
    %v3655 = vpop.xlane.xlu0 %3654
    %3656 = vadd.xlane.f32.xlu0 %v3623
    %v3657 = vpop.xlane.xlu0 %3656
    %3658 = vadd.xlane.f32.xlu0 %v3624
    %v3659 = vpop.xlane.xlu0 %3658
    %3660 = vadd.xlane.f32.xlu0 %v3625
    %v3661 = vpop.xlane.xlu0 %3660
    %3662 = vadd.xlane.f32.xlu0 %v3626
    %v3663 = vpop.xlane.xlu0 %3662
    %3664 = vadd.xlane.f32.xlu0 %v3627
    %v3665 = vpop.xlane.xlu0 %3664
    %3666 = vadd.xlane.f32.xlu0 %v3628
    %v3667 = vpop.xlane.xlu0 %3666
    %3668 = vadd.xlane.f32.xlu0 %v3629
    %v3669 = vpop.xlane.xlu0 %3668
    %3670 = vadd.xlane.f32.xlu0 %v3630
    %v3671 = vpop.xlane.xlu0 %3670
    %3672 = vadd.xlane.f32.xlu0 %v3631
    %v3673 = vpop.xlane.xlu0 %3672
    %3674 = vadd.xlane.f32.xlu0 %v3632
    %v3675 = vpop.xlane.xlu0 %3674
    %3676 = vadd.xlane.f32.xlu0 %v3633
    %v3677 = vpop.xlane.xlu0 %3676
    %3678 = vadd.xlane.f32.xlu0 %v3634
    %v3679 = vpop.xlane.xlu0 %3678
    %3680 = vadd.xlane.f32.xlu0 %v3635
    %v3681 = vpop.xlane.xlu0 %3680
    %3682 = vadd.xlane.f32.xlu0 %v3636
    %v3683 = vpop.xlane.xlu0 %3682
    %3684 = vadd.xlane.f32.xlu0 %v3637
    %v3685 = vpop.xlane.xlu0 %3684
    %3686 = vadd.xlane.f32.xlu0 %v3638
    %v3687 = vpop.xlane.xlu0 %3686
    %3688 = vadd.xlane.f32.xlu0 %v3639
    %v3689 = vpop.xlane.xlu0 %3688
    %3690 = vadd.xlane.f32.xlu0 %v3640
    %v3691 = vpop.xlane.xlu0 %3690
    %3692 = vadd.xlane.f32.xlu0 %v3641
    %v3693 = vpop.xlane.xlu0 %3692
    %3694 = vadd.xlane.f32.xlu0 %v3642
    %v3695 = vpop.xlane.xlu0 %3694
    %3696 = vadd.xlane.f32.xlu0 %v3643
    %v3697 = vpop.xlane.xlu0 %3696
    %3698 = vadd.xlane.f32.xlu0 %v3644
    %v3699 = vpop.xlane.xlu0 %3698
    %3700 = vadd.xlane.f32.xlu0 %v3645
    %v3701 = vpop.xlane.xlu0 %3700
    %3702 = vadd.xlane.f32.xlu0 %v3646
    %v3703 = vpop.xlane.xlu0 %3702
    %3704 = vadd.xlane.f32.xlu0 %v3647
    %v3705 = vpop.xlane.xlu0 %3704
    %3706 = vadd.xlane.f32.xlu0 %v3648
    %v3707 = vpop.xlane.xlu0 %3706
    %3708 = vadd.xlane.f32.xlu0 %v3649
    %v3709 = vpop.xlane.xlu0 %3708
    %3710 = vadd.xlane.f32.xlu0 %v3650
    %v3711 = vpop.xlane.xlu0 %3710
    %3712 = vadd.xlane.f32.xlu0 %v3651
    %v3713 = vpop.xlane.xlu0 %3712
    %3714 = vadd.xlane.f32.xlu0 %v3652
    %v3715 = vpop.xlane.xlu0 %3714
    %3716 = vadd.xlane.f32.xlu0 %v3653
    %v3717 = vpop.xlane.xlu0 %3716
    %v3718 = vadd.f32 %v3443, %v3655
    %v3719 = vadd.f32 %v3445, %v3657
    %v3720 = vadd.f32 %v3448, %v3659
    %v3721 = vadd.f32 %v3450, %v3661
    %v3722 = vadd.f32 %v3453, %v3663
    %v3723 = vadd.f32 %v3455, %v3665
    %v3724 = vadd.f32 %v3458, %v3667
    %v3725 = vadd.f32 %v3460, %v3669
    %v3726 = vadd.f32 %v3463, %v3671
    %v3727 = vadd.f32 %v3465, %v3673
    %v3728 = vadd.f32 %v3468, %v3675
    %v3729 = vadd.f32 %v3470, %v3677
    %v3730 = vadd.f32 %v3473, %v3679
    %v3731 = vadd.f32 %v3475, %v3681
    %v3732 = vadd.f32 %v3478, %v3683
    %v3733 = vadd.f32 %v3480, %v3685
    %v3734 = vadd.f32 %v3483, %v3687
    %v3735 = vadd.f32 %v3485, %v3689
    %v3736 = vadd.f32 %v3488, %v3691
    %v3737 = vadd.f32 %v3490, %v3693
    %v3738 = vadd.f32 %v3493, %v3695
    %v3739 = vadd.f32 %v3495, %v3697
    %v3740 = vadd.f32 %v3498, %v3699
    %v3741 = vadd.f32 %v3500, %v3701
    %v3742 = vadd.f32 %v3503, %v3703
    %v3743 = vadd.f32 %v3505, %v3705
    %v3744 = vadd.f32 %v3508, %v3707
    %v3745 = vadd.f32 %v3510, %v3709
    %v3746 = vadd.f32 %v3513, %v3711
    %v3747 = vadd.f32 %v3515, %v3713
    %v3748 = vadd.f32 %v3518, %v3715
    %v3749 = vadd.f32 %v3520, %v3717
    %v3750 = vmul.f32 %v3558, 0.125
    %v3751 = vmul.f32 %v3560, 0.125
    %v3752 = vmul.f32 %v3562, 0.125
    %v3753 = vmul.f32 %v3564, 0.125
    %v3754 = vmul.f32 %v3566, 0.125
    %v3755 = vmul.f32 %v3568, 0.125
    %v3756 = vmul.f32 %v3570, 0.125
    %v3757 = vmul.f32 %v3572, 0.125
    %v3758 = vmul.f32 %v3574, 0.125
    %v3759 = vmul.f32 %v3576, 0.125
    %v3760 = vmul.f32 %v3578, 0.125
    %v3761 = vmul.f32 %v3580, 0.125
    %v3762 = vmul.f32 %v3582, 0.125
    %v3763 = vmul.f32 %v3584, 0.125
    %v3764 = vmul.f32 %v3586, 0.125
    %v3765 = vmul.f32 %v3588, 0.125
    %v3766 = vmul.f32 %v3590, 0.125
    %v3767 = vmul.f32 %v3592, 0.125
    %v3768 = vmul.f32 %v3594, 0.125
    %v3769 = vmul.f32 %v3596, 0.125
    %v3770 = vmul.f32 %v3598, 0.125
    %v3771 = vmul.f32 %v3600, 0.125
    %v3772 = vmul.f32 %v3602, 0.125
    %v3773 = vmul.f32 %v3604, 0.125
    %v3774 = vmul.f32 %v3606, 0.125
    %v3775 = vmul.f32 %v3608, 0.125
    %v3776 = vmul.f32 %v3610, 0.125
    %v3777 = vmul.f32 %v3612, 0.125
    %v3778 = vmul.f32 %v3614, 0.125
    %v3779 = vmul.f32 %v3616, 0.125
    %v3780 = vmul.f32 %v3618, 0.125
    %v3781 = vmul.f32 %v3620, 0.125
    %v3782 = vsub.f32 %v3718, %v3750
    %v3783 = vsub.f32 %v3719, %v3751
    %v3784 = vsub.f32 %v3720, %v3752
    %v3785 = vsub.f32 %v3721, %v3753
    %v3786 = vsub.f32 %v3722, %v3754
    %v3787 = vsub.f32 %v3723, %v3755
    %v3788 = vsub.f32 %v3724, %v3756
    %v3789 = vsub.f32 %v3725, %v3757
    %v3790 = vsub.f32 %v3726, %v3758
    %v3791 = vsub.f32 %v3727, %v3759
    %v3792 = vsub.f32 %v3728, %v3760
    %v3793 = vsub.f32 %v3729, %v3761
    %v3794 = vsub.f32 %v3730, %v3762
    %v3795 = vsub.f32 %v3731, %v3763
    %v3796 = vsub.f32 %v3732, %v3764
    %v3797 = vsub.f32 %v3733, %v3765
    %v3798 = vsub.f32 %v3734, %v3766
    %v3799 = vsub.f32 %v3735, %v3767
    %v3800 = vsub.f32 %v3736, %v3768
    %v3801 = vsub.f32 %v3737, %v3769
    %v3802 = vsub.f32 %v3738, %v3770
    %v3803 = vsub.f32 %v3739, %v3771
    %v3804 = vsub.f32 %v3740, %v3772
    %v3805 = vsub.f32 %v3741, %v3773
    %v3806 = vsub.f32 %v3742, %v3774
    %v3807 = vsub.f32 %v3743, %v3775
    %v3808 = vsub.f32 %v3744, %v3776
    %v3809 = vsub.f32 %v3745, %v3777
    %v3810 = vsub.f32 %v3746, %v3778
    %v3811 = vsub.f32 %v3747, %v3779
    %v3812 = vsub.f32 %v3748, %v3780
    %v3813 = vsub.f32 %v3749, %v3781
    %3814 = vst [vmem:[#allocation7] sm:$0xff] %v3782
    %3815 = vst [vmem:[#allocation7 + $0x8] sm:$0xff] %v3783
    %3816 = vst [vmem:[#allocation7 + $0x10] sm:$0xff] %v3784
    %3817 = vst [vmem:[#allocation7 + $0x18] sm:$0xff] %v3785
    %3818 = vst [vmem:[#allocation7 + $0x20] sm:$0xff] %v3786
    %3819 = vst [vmem:[#allocation7 + $0x28] sm:$0xff] %v3787
    %3820 = vst [vmem:[#allocation7 + $0x30] sm:$0xff] %v3788
    %3821 = vst [vmem:[#allocation7 + $0x38] sm:$0xff] %v3789
    %3822 = vst [vmem:[#allocation7 + $0x40] sm:$0xff] %v3790
    %3823 = vst [vmem:[#allocation7 + $0x48] sm:$0xff] %v3791
    %3824 = vst [vmem:[#allocation7 + $0x50] sm:$0xff] %v3792
    %3825 = vst [vmem:[#allocation7 + $0x58] sm:$0xff] %v3793
    %3826 = vst [vmem:[#allocation7 + $0x60] sm:$0xff] %v3794
    %3827 = vst [vmem:[#allocation7 + $0x68] sm:$0xff] %v3795
    %3828 = vst [vmem:[#allocation7 + $0x70] sm:$0xff] %v3796
    %3829 = vst [vmem:[#allocation7 + $0x78] sm:$0xff] %v3797
    %3830 = vst [vmem:[#allocation7 + $0x80] sm:$0xff] %v3798
    %3831 = vst [vmem:[#allocation7 + $0x88] sm:$0xff] %v3799
    %3832 = vst [vmem:[#allocation7 + $0x90] sm:$0xff] %v3800
    %3833 = vst [vmem:[#allocation7 + $0x98] sm:$0xff] %v3801
    %3834 = vst [vmem:[#allocation7 + $0xa0] sm:$0xff] %v3802
    %3835 = vst [vmem:[#allocation7 + $0xa8] sm:$0xff] %v3803
    %3836 = vst [vmem:[#allocation7 + $0xb0] sm:$0xff] %v3804
    %3837 = vst [vmem:[#allocation7 + $0xb8] sm:$0xff] %v3805
    %3838 = vst [vmem:[#allocation7 + $0xc0] sm:$0xff] %v3806
    %3839 = vst [vmem:[#allocation7 + $0xc8] sm:$0xff] %v3807
    %3840 = vst [vmem:[#allocation7 + $0xd0] sm:$0xff] %v3808
    %3841 = vst [vmem:[#allocation7 + $0xd8] sm:$0xff] %v3809
    %3842 = vst [vmem:[#allocation7 + $0xe0] sm:$0xff] %v3810
    %3843 = vst [vmem:[#allocation7 + $0xe8] sm:$0xff] %v3811
    %3844 = vst [vmem:[#allocation7 + $0xf0] sm:$0xff] %v3812
    %3845 = vst [vmem:[#allocation7 + $0xf8] sm:$0xff] %v3813
    // Predicated region
    $region34: #{tpu_custom_call.1} parent=1 // pred_check
      _
    $region35: #{tpu_custom_call.1} parent=1 // pred_check_branch
      %3847 = sbr.rel (0) target = $region37
    $region36: #{tpu_custom_call.1} parent=1 // pred_region
      %3849 = vsyncadd [#allocation4], 0
      %s3850 = sshll.u32 [#allocation7], 4
      %s3851 = int_to_ptr.vmem [resolvable:$true] %s3850
      %s3852 = sshll.u32 %s6, 4
      %s3853 = int_to_ptr.hbm [resolvable:$true] %s3852
      %3858 = dma.vmem_to_hbm [thread:$0]  %s3851, 4096, %s3853, [#allocation4], 128, 128, 8
    $region37: #{tpu_custom_call.1} parent=1 // pred_fallthru
      _
    // Predicated region
    $region38: #{tpu_custom_call.1} parent=1 // pred_check
      _
    $region39: #{tpu_custom_call.1} parent=1 // pred_check_branch
      %3860 = sbr.rel (0) target = $region41
    $region40: #{tpu_custom_call.1} parent=1 // pred_region
      %3862 = dma.done [#allocation4], 4096
    $region41: #{tpu_custom_call.1} parent=1 // pred_fallthru
      _
    %3863 = vsyncpa [#allocation3], 1
    %3864 = vsyncpa [#allocation6], 1
    %3865 = vsyncpa [#allocation4], 1

</llo_original>
